<compile_context>
chip_gen: v6e
topology: v6e:2x2x1
jax: 0.10.0
libtpu: 0.0.40
codegen_flags: <defaults>
</compile_context>

<pallas_src>
import functools

import jax
import jax.numpy as jnp
import numpy as np
from jax.experimental import pallas as pl
from jax.experimental.pallas import tpu as pltpu


def _lstm_kernel(num_layers, hidden_size, seq_len, *refs):
    """Stacked-LSTM wavefront recurrence + linear head + log-softmax, VMEM resident.

    refs layout:
      inputs : xc (S, Din0) f32, h0 (L, H) f32, c0 (L, H) f32,
               [w_ihT (Din_l, 4H) f32, w_hhT (H, 4H) f32, b (1, 4H) f32] * L,
               w_fcT (H, O) f32, b_fc (1, O) f32
      outputs: logp (S, O) f32, hn (L, H) f32, cn (L, H) f32
    """
    L, H, S = num_layers, hidden_size, seq_len
    n_in = 3 + 3 * L + 2
    in_refs = refs[:n_in]
    logp_ref, hn_ref, cn_ref = refs[n_in:]

    xc_ref, h0_ref, c0_ref = in_refs[0:3]
    layer_refs = in_refs[3:3 + 3 * L]
    w_fcT_ref, b_fc_ref = in_refs[3 + 3 * L:]

    h0 = h0_ref[...]                                   # (L, H) f32
    c0 = c0_ref[...]                                   # (L, H) f32

    w_ihT = [layer_refs[3 * l + 0][...] for l in range(L)]   # (Din_l, 4H)
    w_hhT = [layer_refs[3 * l + 1][...] for l in range(L)]   # (H, 4H)
    bias = [layer_refs[3 * l + 2][...] for l in range(L)]    # (1, 4H) = b_ih + b_hh

    # Hoisted layer-0 input projection: one batched MXU matmul for the whole sequence,
    # combined bias folded in.  Nothing input-dependent remains on the wavefront path
    # for layer 0 except the tiny recurrent matmul.
    proj0 = jnp.dot(xc_ref[...], w_ihT[0],
                    preferred_element_type=jnp.float32) + bias[0]        # (S, 4H) f32

    h = [h0[l:l + 1, :] for l in range(L)]             # per-layer (1, H) f32
    c = [c0[l:l + 1, :] for l in range(L)]
    top = [None] * S                                   # layer L-1 outputs per timestep

    def lstm_cell(gates, c_prev):
        sg = jax.nn.sigmoid(gates)                     # full-vreg EUP pass
        g_g = jnp.tanh(gates[:, 2 * H:3 * H])          # tanh only on the g slice
        i_g = sg[:, 0:H]
        f_g = sg[:, H:2 * H]
        o_g = sg[:, 3 * H:4 * H]
        c_new = f_g * c_prev + i_g * g_g
        h_new = o_g * jnp.tanh(c_new)
        return h_new, c_new

    # Wavefront over (layer, time).  Cell (l, t) needs h_{l-1, t} and h_{l, t-1}, both
    # from wave w-1, so all cells in a wave are independent -> their matmuls pipeline in
    # the MXU and the serial chain is S+L-1 waves instead of S*L cells.  States are
    # committed only after the whole wave so every cell reads previous-wave values.
    for w in range(S + L - 1):
        updates = []
        for l in range(L):
            t = w - l
            if not (0 <= t < S):
                continue
            if l == 0:
                gates = proj0[t:t + 1, :] + jnp.dot(
                    h[0], w_hhT[0], preferred_element_type=jnp.float32)      # (1, 4H)
            else:
                gates = (jnp.dot(h[l - 1], w_ihT[l],
                                 preferred_element_type=jnp.float32)
                         + jnp.dot(h[l], w_hhT[l],
                                   preferred_element_type=jnp.float32)
                         + bias[l])                                          # (1, 4H)
            h_new, c_new = lstm_cell(gates, c[l])
            updates.append((l, t, h_new, c_new))
        for l, t, h_new, c_new in updates:
            h[l] = h_new
            c[l] = c_new
            if l == L - 1:
                top[t] = h_new

    hn_ref[...] = jnp.concatenate(h, axis=0)           # single (L, H) store
    cn_ref[...] = jnp.concatenate(c, axis=0)

    # Final linear layer + LogSoftmax(dim=1) over the whole sequence.
    seq_top = jnp.concatenate(top, axis=0)             # (S, H)
    logits = jnp.dot(seq_top, w_fcT_ref[...],
                     preferred_element_type=jnp.float32) + b_fc_ref[...]     # (S, O)
    m = jnp.max(logits, axis=1, keepdims=True)
    z = logits - m
    logp_ref[...] = z - jnp.log(jnp.sum(jnp.exp(z), axis=1, keepdims=True))


def prepare_params(params, *, num_layers):
    """One-time transform of PyTorch-layout parameters into the kernel layout.

    Transposes weights for MXU layout, pre-sums b_ih + b_hh, and reshapes biases.
    Call once; pass the result to lstm_forward so no per-call transpose/convert XLA
    kernels (or HBM round-trips) run on the forward path.
    """
    prep = []
    for l in range(num_layers):
        prep.append(jnp.asarray(params[f"w_ih_{l}"], jnp.float32).T)          # (Din, 4H)
        prep.append(jnp.asarray(params[f"w_hh_{l}"], jnp.float32).T)          # (H, 4H)
        prep.append(jnp.asarray(params[f"b_ih_{l}"] + params[f"b_hh_{l}"],
                                jnp.float32).reshape(1, -1))                  # (1, 4H)
    prep.append(jnp.asarray(params["w_fc"], jnp.float32).T)                   # (H, O)
    prep.append(jnp.asarray(params["b_fc"], jnp.float32).reshape(1, -1))      # (1, O)
    return tuple(jax.device_put(p) for p in prep)


@functools.partial(jax.jit, static_argnames=("num_layers", "hidden_size"))
def lstm_forward(category, inp, hidden, prepared, *, num_layers, hidden_size):
    """Mirrors LSTM.forward(category, input, hidden) of the PyTorch module.

    `prepared` is the output of prepare_params (weights already in kernel layout).
    """
    h0, c0 = hidden
    xc = jnp.concatenate([category, inp], axis=1).astype(jnp.float32)   # torch.cat(.., 1)
    S = xc.shape[0]
    L, H = num_layers, hidden_size
    O = prepared[-1].shape[1]

    args = (xc, h0.astype(jnp.float32), c0.astype(jnp.float32)) + tuple(prepared)

    vmem = pl.BlockSpec(memory_space=pltpu.MemorySpace.VMEM)
    kernel = functools.partial(_lstm_kernel, L, H, S)

    logp, hn, cn = pl.pallas_call(
        kernel,
        out_shape=(
            jax.ShapeDtypeStruct((S, O), jnp.float32),
            jax.ShapeDtypeStruct((L, H), jnp.float32),
            jax.ShapeDtypeStruct((L, H), jnp.float32),
        ),
        in_specs=[vmem] * len(args),
        out_specs=(vmem, vmem, vmem),
    )(*args)
    return logp, (hn, cn)


def lstm_forward_ref(category, inp, hidden, params, *, num_layers, hidden_size):
    """Pure-JAX f32 reference (same math as PyTorch nn.LSTM + Linear + LogSoftmax)."""
    h0, c0 = hidden
    xc = jnp.concatenate([category, inp], axis=1)
    H = hidden_size
    seq = xc
    hs, cs = [], []
    for l in range(num_layers):
        w_ih = params[f"w_ih_{l}"]; w_hh = params[f"w_hh_{l}"]
        b_ih = params[f"b_ih_{l}"]; b_hh = params[f"b_hh_{l}"]
        h = h0[l]; c = c0[l]
        outs = []
        for t in range(seq.shape[0]):
            g = seq[t] @ w_ih.T + b_ih + h @ w_hh.T + b_hh
            i = jax.nn.sigmoid(g[0:H]); f = jax.nn.sigmoid(g[H:2 * H])
            gg = jnp.tanh(g[2 * H:3 * H]); o = jax.nn.sigmoid(g[3 * H:4 * H])
            c = f * c + i * gg
            h = o * jnp.tanh(c)
            outs.append(h)
        seq = jnp.stack(outs, axis=0)
        hs.append(h); cs.append(c)
    logits = seq @ params["w_fc"].T + params["b_fc"]
    logp = jax.nn.log_softmax(logits, axis=1)
    return logp, (jnp.stack(hs), jnp.stack(cs))


def init_params(key, input_size, num_cats, hidden_size, output_size, num_layers):
    """Deterministic init, PyTorch-style U(-1/sqrt(H), 1/sqrt(H))."""
    params = {}
    k = 1.0 / np.sqrt(hidden_size)
    d_in = input_size + num_cats
    for l in range(num_layers):
        din = d_in if l == 0 else hidden_size
        key, k1, k2, k3, k4 = jax.random.split(key, 5)
        params[f"w_ih_{l}"] = jax.random.uniform(k1, (4 * hidden_size, din),
                                                 jnp.float32, -k, k)
        params[f"w_hh_{l}"] = jax.random.uniform(k2, (4 * hidden_size, hidden_size),
                                                 jnp.float32, -k, k)
        params[f"b_ih_{l}"] = jax.random.uniform(k3, (4 * hidden_size,),
                                                 jnp.float32, -k, k)
        params[f"b_hh_{l}"] = jax.random.uniform(k4, (4 * hidden_size,),
                                                 jnp.float32, -k, k)
    key, k1, k2 = jax.random.split(key, 3)
    params["w_fc"] = jax.random.uniform(k1, (output_size, hidden_size),
                                        jnp.float32, -k, k)
    params["b_fc"] = jax.random.uniform(k2, (output_size,), jnp.float32, -k, k)
    return params


if __name__ == "__main__":
    # Small shapes consistent with the module's forward (unbatched char-RNN style).
    input_size = 10          # e.g. one-hot letters
    num_of_all_kinds = 6     # category one-hot width
    hidden_size = 32
    output_size = 12
    num_layers = 3           # LSTM_nums default
    seq_len = 8

    key = jax.random.PRNGKey(0)
    key, kp, kc, kx = jax.random.split(key, 4)
    params = init_params(kp, input_size, num_of_all_kinds, hidden_size,
                         output_size, num_layers)

    # One-time weight layout preparation (hoisted out of the per-call forward).
    prepared = prepare_params(params, num_layers=num_layers)

    category = jax.random.normal(kc, (seq_len, num_of_all_kinds), jnp.float32)
    x = jax.random.normal(kx, (seq_len, input_size), jnp.float32)
    # initHidden() -> zeros (num_layers, hidden_size) for h and c.
    h0 = jnp.zeros((num_layers, hidden_size), jnp.float32)
    c0 = jnp.zeros((num_layers, hidden_size), jnp.float32)

    logp, (hn, cn) = lstm_forward(category, x, (h0, c0), prepared,
                                  num_layers=num_layers, hidden_size=hidden_size)
    jax.block_until_ready((logp, hn, cn))

    logp_r, (hn_r, cn_r) = lstm_forward_ref(category, x, (h0, c0), params,
                                            num_layers=num_layers,
                                            hidden_size=hidden_size)
    assert logp.shape == (seq_len, output_size)
    assert hn.shape == (num_layers, hidden_size)
    assert cn.shape == (num_layers, hidden_size)
    # All-f32 kernel math typically matches the reference to ~1e-5; the tolerance is
    # kept conservative to be robust to MXU f32 pass decomposition differences.
    np.testing.assert_allclose(np.asarray(logp), np.asarray(logp_r), rtol=2e-2, atol=2e-2)
    np.testing.assert_allclose(np.asarray(hn), np.asarray(hn_r), rtol=2e-2, atol=2e-2)
    np.testing.assert_allclose(np.asarray(cn), np.asarray(cn_r), rtol=2e-2, atol=2e-2)

    print("KERNEL_OK")
</pallas_src>

<mosaic_0001>
module attributes {stable_mosaic.version = 11 : i64} {
  func.func @_lstm_kernel(%arg0: memref<8x16xf32, #tpu.memory_space<vmem>>, %arg1: memref<3x32xf32, #tpu.memory_space<vmem>>, %arg2: memref<3x32xf32, #tpu.memory_space<vmem>>, %arg3: memref<16x128xf32, #tpu.memory_space<vmem>>, %arg4: memref<32x128xf32, #tpu.memory_space<vmem>>, %arg5: memref<1x128xf32, #tpu.memory_space<vmem>>, %arg6: memref<32x128xf32, #tpu.memory_space<vmem>>, %arg7: memref<32x128xf32, #tpu.memory_space<vmem>>, %arg8: memref<1x128xf32, #tpu.memory_space<vmem>>, %arg9: memref<32x128xf32, #tpu.memory_space<vmem>>, %arg10: memref<32x128xf32, #tpu.memory_space<vmem>>, %arg11: memref<1x128xf32, #tpu.memory_space<vmem>>, %arg12: memref<32x12xf32, #tpu.memory_space<vmem>>, %arg13: memref<1x12xf32, #tpu.memory_space<vmem>>, %arg14: memref<8x12xf32, #tpu.memory_space<vmem>>, %arg15: memref<3x32xf32, #tpu.memory_space<vmem>>, %arg16: memref<3x32xf32, #tpu.memory_space<vmem>>) attributes {dimension_semantics = [], scalar_prefetch = 0 : i64, scratch_operands = 0 : i64, tpu.core_type = #tpu.core_type<tc>} {
    %c0 = arith.constant 0 : index
    %c0_0 = arith.constant 0 : index
    %0 = vector.load %arg1[%c0, %c0_0] : memref<3x32xf32, #tpu.memory_space<vmem>>, vector<3x32xf32>
    %c0_1 = arith.constant 0 : index
    %c0_2 = arith.constant 0 : index
    %1 = vector.load %arg2[%c0_1, %c0_2] : memref<3x32xf32, #tpu.memory_space<vmem>>, vector<3x32xf32>
    %c0_3 = arith.constant 0 : index
    %c0_4 = arith.constant 0 : index
    %2 = vector.load %arg3[%c0_3, %c0_4] : memref<16x128xf32, #tpu.memory_space<vmem>>, vector<16x128xf32>
    %c0_5 = arith.constant 0 : index
    %c0_6 = arith.constant 0 : index
    %3 = vector.load %arg6[%c0_5, %c0_6] : memref<32x128xf32, #tpu.memory_space<vmem>>, vector<32x128xf32>
    %c0_7 = arith.constant 0 : index
    %c0_8 = arith.constant 0 : index
    %4 = vector.load %arg9[%c0_7, %c0_8] : memref<32x128xf32, #tpu.memory_space<vmem>>, vector<32x128xf32>
    %c0_9 = arith.constant 0 : index
    %c0_10 = arith.constant 0 : index
    %5 = vector.load %arg4[%c0_9, %c0_10] : memref<32x128xf32, #tpu.memory_space<vmem>>, vector<32x128xf32>
    %c0_11 = arith.constant 0 : index
    %c0_12 = arith.constant 0 : index
    %6 = vector.load %arg7[%c0_11, %c0_12] : memref<32x128xf32, #tpu.memory_space<vmem>>, vector<32x128xf32>
    %c0_13 = arith.constant 0 : index
    %c0_14 = arith.constant 0 : index
    %7 = vector.load %arg10[%c0_13, %c0_14] : memref<32x128xf32, #tpu.memory_space<vmem>>, vector<32x128xf32>
    %c0_15 = arith.constant 0 : index
    %c0_16 = arith.constant 0 : index
    %8 = vector.load %arg5[%c0_15, %c0_16] : memref<1x128xf32, #tpu.memory_space<vmem>>, vector<1x128xf32>
    %c0_17 = arith.constant 0 : index
    %c0_18 = arith.constant 0 : index
    %9 = vector.load %arg8[%c0_17, %c0_18] : memref<1x128xf32, #tpu.memory_space<vmem>>, vector<1x128xf32>
    %c0_19 = arith.constant 0 : index
    %c0_20 = arith.constant 0 : index
    %10 = vector.load %arg11[%c0_19, %c0_20] : memref<1x128xf32, #tpu.memory_space<vmem>>, vector<1x128xf32>
    %c0_21 = arith.constant 0 : index
    %c0_22 = arith.constant 0 : index
    %11 = vector.load %arg0[%c0_21, %c0_22] : memref<8x16xf32, #tpu.memory_space<vmem>>, vector<8x16xf32>
    %cst = arith.constant dense<0.000000e+00> : vector<8x128xf32>
    %12 = tpu.matmul %11, %2, %cst {dimension_numbers = #tpu.dot_dimension_numbers<[1], [0], [0], [1], [0, 0, 1, 1], [], []>} : vector<8x16xf32>, vector<16x128xf32>, vector<8x128xf32> -> vector<8x128xf32>
    %13 = vector.broadcast %8 : vector<1x128xf32> to vector<8x128xf32>
    %14 = arith.addf %12, %13 : vector<8x128xf32>
    %15 = vector.extract_strided_slice %0 {offsets = [0, 0], sizes = [1, 32], strides = [1, 1]} : vector<3x32xf32> to vector<1x32xf32>
    %16 = vector.extract_strided_slice %0 {offsets = [1, 0], sizes = [1, 32], strides = [1, 1]} : vector<3x32xf32> to vector<1x32xf32>
    %17 = vector.extract_strided_slice %0 {offsets = [2, 0], sizes = [1, 32], strides = [1, 1]} : vector<3x32xf32> to vector<1x32xf32>
    %18 = vector.extract_strided_slice %1 {offsets = [0, 0], sizes = [1, 32], strides = [1, 1]} : vector<3x32xf32> to vector<1x32xf32>
    %19 = vector.extract_strided_slice %1 {offsets = [1, 0], sizes = [1, 32], strides = [1, 1]} : vector<3x32xf32> to vector<1x32xf32>
    %20 = vector.extract_strided_slice %1 {offsets = [2, 0], sizes = [1, 32], strides = [1, 1]} : vector<3x32xf32> to vector<1x32xf32>
    %21 = vector.extract_strided_slice %14 {offsets = [0, 0], sizes = [1, 128], strides = [1, 1]} : vector<8x128xf32> to vector<1x128xf32>
    %cst_23 = arith.constant dense<0.000000e+00> : vector<1x128xf32>
    %22 = tpu.matmul %15, %5, %cst_23 {dimension_numbers = #tpu.dot_dimension_numbers<[1], [0], [0], [1], [0, 0, 1, 1], [], []>} : vector<1x32xf32>, vector<32x128xf32>, vector<1x128xf32> -> vector<1x128xf32>
    %23 = arith.addf %21, %22 : vector<1x128xf32>
    %24 = arith.negf %23 : vector<1x128xf32>
    %25 = math.exp %24 : vector<1x128xf32>
    %cst_24 = arith.constant 1.000000e+00 : f32
    %26 = vector.broadcast %cst_24 : f32 to vector<1x128xf32>
    %27 = arith.addf %26, %25 : vector<1x128xf32>
    %28 = arith.divf %26, %27 : vector<1x128xf32>
    %29 = vector.extract_strided_slice %23 {offsets = [0, 64], sizes = [1, 32], strides = [1, 1]} : vector<1x128xf32> to vector<1x32xf32>
    %30 = math.tanh %29 : vector<1x32xf32>
    %31 = vector.extract_strided_slice %28 {offsets = [0, 0], sizes = [1, 32], strides = [1, 1]} : vector<1x128xf32> to vector<1x32xf32>
    %32 = vector.extract_strided_slice %28 {offsets = [0, 32], sizes = [1, 32], strides = [1, 1]} : vector<1x128xf32> to vector<1x32xf32>
    %33 = vector.extract_strided_slice %28 {offsets = [0, 96], sizes = [1, 32], strides = [1, 1]} : vector<1x128xf32> to vector<1x32xf32>
    %34 = arith.mulf %32, %18 : vector<1x32xf32>
    %35 = arith.mulf %31, %30 : vector<1x32xf32>
    %36 = arith.addf %34, %35 : vector<1x32xf32>
    %37 = math.tanh %36 : vector<1x32xf32>
    %38 = arith.mulf %33, %37 : vector<1x32xf32>
    %39 = vector.extract_strided_slice %14 {offsets = [1, 0], sizes = [1, 128], strides = [1, 1]} : vector<8x128xf32> to vector<1x128xf32>
    %cst_25 = arith.constant dense<0.000000e+00> : vector<1x128xf32>
    %40 = tpu.matmul %38, %5, %cst_25 {dimension_numbers = #tpu.dot_dimension_numbers<[1], [0], [0], [1], [0, 0, 1, 1], [], []>} : vector<1x32xf32>, vector<32x128xf32>, vector<1x128xf32> -> vector<1x128xf32>
    %41 = arith.addf %39, %40 : vector<1x128xf32>
    %42 = arith.negf %41 : vector<1x128xf32>
    %43 = math.exp %42 : vector<1x128xf32>
    %cst_26 = arith.constant 1.000000e+00 : f32
    %44 = vector.broadcast %cst_26 : f32 to vector<1x128xf32>
    %45 = arith.addf %44, %43 : vector<1x128xf32>
    %46 = arith.divf %44, %45 : vector<1x128xf32>
    %47 = vector.extract_strided_slice %41 {offsets = [0, 64], sizes = [1, 32], strides = [1, 1]} : vector<1x128xf32> to vector<1x32xf32>
    %48 = math.tanh %47 : vector<1x32xf32>
    %49 = vector.extract_strided_slice %46 {offsets = [0, 0], sizes = [1, 32], strides = [1, 1]} : vector<1x128xf32> to vector<1x32xf32>
    %50 = vector.extract_strided_slice %46 {offsets = [0, 32], sizes = [1, 32], strides = [1, 1]} : vector<1x128xf32> to vector<1x32xf32>
    %51 = vector.extract_strided_slice %46 {offsets = [0, 96], sizes = [1, 32], strides = [1, 1]} : vector<1x128xf32> to vector<1x32xf32>
    %52 = arith.mulf %50, %36 : vector<1x32xf32>
    %53 = arith.mulf %49, %48 : vector<1x32xf32>
    %54 = arith.addf %52, %53 : vector<1x32xf32>
    %55 = math.tanh %54 : vector<1x32xf32>
    %56 = arith.mulf %51, %55 : vector<1x32xf32>
    %cst_27 = arith.constant dense<0.000000e+00> : vector<1x128xf32>
    %57 = tpu.matmul %38, %3, %cst_27 {dimension_numbers = #tpu.dot_dimension_numbers<[1], [0], [0], [1], [0, 0, 1, 1], [], []>} : vector<1x32xf32>, vector<32x128xf32>, vector<1x128xf32> -> vector<1x128xf32>
    %cst_28 = arith.constant dense<0.000000e+00> : vector<1x128xf32>
    %58 = tpu.matmul %16, %6, %cst_28 {dimension_numbers = #tpu.dot_dimension_numbers<[1], [0], [0], [1], [0, 0, 1, 1], [], []>} : vector<1x32xf32>, vector<32x128xf32>, vector<1x128xf32> -> vector<1x128xf32>
    %59 = arith.addf %57, %58 : vector<1x128xf32>
    %60 = arith.addf %59, %9 : vector<1x128xf32>
    %61 = arith.negf %60 : vector<1x128xf32>
    %62 = math.exp %61 : vector<1x128xf32>
    %cst_29 = arith.constant 1.000000e+00 : f32
    %63 = vector.broadcast %cst_29 : f32 to vector<1x128xf32>
    %64 = arith.addf %63, %62 : vector<1x128xf32>
    %65 = arith.divf %63, %64 : vector<1x128xf32>
    %66 = vector.extract_strided_slice %60 {offsets = [0, 64], sizes = [1, 32], strides = [1, 1]} : vector<1x128xf32> to vector<1x32xf32>
    %67 = math.tanh %66 : vector<1x32xf32>
    %68 = vector.extract_strided_slice %65 {offsets = [0, 0], sizes = [1, 32], strides = [1, 1]} : vector<1x128xf32> to vector<1x32xf32>
    %69 = vector.extract_strided_slice %65 {offsets = [0, 32], sizes = [1, 32], strides = [1, 1]} : vector<1x128xf32> to vector<1x32xf32>
    %70 = vector.extract_strided_slice %65 {offsets = [0, 96], sizes = [1, 32], strides = [1, 1]} : vector<1x128xf32> to vector<1x32xf32>
    %71 = arith.mulf %69, %19 : vector<1x32xf32>
    %72 = arith.mulf %68, %67 : vector<1x32xf32>
    %73 = arith.addf %71, %72 : vector<1x32xf32>
    %74 = math.tanh %73 : vector<1x32xf32>
    %75 = arith.mulf %70, %74 : vector<1x32xf32>
    %76 = vector.extract_strided_slice %14 {offsets = [2, 0], sizes = [1, 128], strides = [1, 1]} : vector<8x128xf32> to vector<1x128xf32>
    %cst_30 = arith.constant dense<0.000000e+00> : vector<1x128xf32>
    %77 = tpu.matmul %56, %5, %cst_30 {dimension_numbers = #tpu.dot_dimension_numbers<[1], [0], [0], [1], [0, 0, 1, 1], [], []>} : vector<1x32xf32>, vector<32x128xf32>, vector<1x128xf32> -> vector<1x128xf32>
    %78 = arith.addf %76, %77 : vector<1x128xf32>
    %79 = arith.negf %78 : vector<1x128xf32>
    %80 = math.exp %79 : vector<1x128xf32>
    %cst_31 = arith.constant 1.000000e+00 : f32
    %81 = vector.broadcast %cst_31 : f32 to vector<1x128xf32>
    %82 = arith.addf %81, %80 : vector<1x128xf32>
    %83 = arith.divf %81, %82 : vector<1x128xf32>
    %84 = vector.extract_strided_slice %78 {offsets = [0, 64], sizes = [1, 32], strides = [1, 1]} : vector<1x128xf32> to vector<1x32xf32>
    %85 = math.tanh %84 : vector<1x32xf32>
    %86 = vector.extract_strided_slice %83 {offsets = [0, 0], sizes = [1, 32], strides = [1, 1]} : vector<1x128xf32> to vector<1x32xf32>
    %87 = vector.extract_strided_slice %83 {offsets = [0, 32], sizes = [1, 32], strides = [1, 1]} : vector<1x128xf32> to vector<1x32xf32>
    %88 = vector.extract_strided_slice %83 {offsets = [0, 96], sizes = [1, 32], strides = [1, 1]} : vector<1x128xf32> to vector<1x32xf32>
    %89 = arith.mulf %87, %54 : vector<1x32xf32>
    %90 = arith.mulf %86, %85 : vector<1x32xf32>
    %91 = arith.addf %89, %90 : vector<1x32xf32>
    %92 = math.tanh %91 : vector<1x32xf32>
    %93 = arith.mulf %88, %92 : vector<1x32xf32>
    %cst_32 = arith.constant dense<0.000000e+00> : vector<1x128xf32>
    %94 = tpu.matmul %56, %3, %cst_32 {dimension_numbers = #tpu.dot_dimension_numbers<[1], [0], [0], [1], [0, 0, 1, 1], [], []>} : vector<1x32xf32>, vector<32x128xf32>, vector<1x128xf32> -> vector<1x128xf32>
    %cst_33 = arith.constant dense<0.000000e+00> : vector<1x128xf32>
    %95 = tpu.matmul %75, %6, %cst_33 {dimension_numbers = #tpu.dot_dimension_numbers<[1], [0], [0], [1], [0, 0, 1, 1], [], []>} : vector<1x32xf32>, vector<32x128xf32>, vector<1x128xf32> -> vector<1x128xf32>
    %96 = arith.addf %94, %95 : vector<1x128xf32>
    %97 = arith.addf %96, %9 : vector<1x128xf32>
    %98 = arith.negf %97 : vector<1x128xf32>
    %99 = math.exp %98 : vector<1x128xf32>
    %cst_34 = arith.constant 1.000000e+00 : f32
    %100 = vector.broadcast %cst_34 : f32 to vector<1x128xf32>
    %101 = arith.addf %100, %99 : vector<1x128xf32>
    %102 = arith.divf %100, %101 : vector<1x128xf32>
    %103 = vector.extract_strided_slice %97 {offsets = [0, 64], sizes = [1, 32], strides = [1, 1]} : vector<1x128xf32> to vector<1x32xf32>
    %104 = math.tanh %103 : vector<1x32xf32>
    %105 = vector.extract_strided_slice %102 {offsets = [0, 0], sizes = [1, 32], strides = [1, 1]} : vector<1x128xf32> to vector<1x32xf32>
    %106 = vector.extract_strided_slice %102 {offsets = [0, 32], sizes = [1, 32], strides = [1, 1]} : vector<1x128xf32> to vector<1x32xf32>
    %107 = vector.extract_strided_slice %102 {offsets = [0, 96], sizes = [1, 32], strides = [1, 1]} : vector<1x128xf32> to vector<1x32xf32>
    %108 = arith.mulf %106, %73 : vector<1x32xf32>
    %109 = arith.mulf %105, %104 : vector<1x32xf32>
    %110 = arith.addf %108, %109 : vector<1x32xf32>
    %111 = math.tanh %110 : vector<1x32xf32>
    %112 = arith.mulf %107, %111 : vector<1x32xf32>
    %cst_35 = arith.constant dense<0.000000e+00> : vector<1x128xf32>
    %113 = tpu.matmul %75, %4, %cst_35 {dimension_numbers = #tpu.dot_dimension_numbers<[1], [0], [0], [1], [0, 0, 1, 1], [], []>} : vector<1x32xf32>, vector<32x128xf32>, vector<1x128xf32> -> vector<1x128xf32>
    %cst_36 = arith.constant dense<0.000000e+00> : vector<1x128xf32>
    %114 = tpu.matmul %17, %7, %cst_36 {dimension_numbers = #tpu.dot_dimension_numbers<[1], [0], [0], [1], [0, 0, 1, 1], [], []>} : vector<1x32xf32>, vector<32x128xf32>, vector<1x128xf32> -> vector<1x128xf32>
    %115 = arith.addf %113, %114 : vector<1x128xf32>
    %116 = arith.addf %115, %10 : vector<1x128xf32>
    %117 = arith.negf %116 : vector<1x128xf32>
    %118 = math.exp %117 : vector<1x128xf32>
    %cst_37 = arith.constant 1.000000e+00 : f32
    %119 = vector.broadcast %cst_37 : f32 to vector<1x128xf32>
    %120 = arith.addf %119, %118 : vector<1x128xf32>
    %121 = arith.divf %119, %120 : vector<1x128xf32>
    %122 = vector.extract_strided_slice %116 {offsets = [0, 64], sizes = [1, 32], strides = [1, 1]} : vector<1x128xf32> to vector<1x32xf32>
    %123 = math.tanh %122 : vector<1x32xf32>
    %124 = vector.extract_strided_slice %121 {offsets = [0, 0], sizes = [1, 32], strides = [1, 1]} : vector<1x128xf32> to vector<1x32xf32>
    %125 = vector.extract_strided_slice %121 {offsets = [0, 32], sizes = [1, 32], strides = [1, 1]} : vector<1x128xf32> to vector<1x32xf32>
    %126 = vector.extract_strided_slice %121 {offsets = [0, 96], sizes = [1, 32], strides = [1, 1]} : vector<1x128xf32> to vector<1x32xf32>
    %127 = arith.mulf %125, %20 : vector<1x32xf32>
    %128 = arith.mulf %124, %123 : vector<1x32xf32>
    %129 = arith.addf %127, %128 : vector<1x32xf32>
    %130 = math.tanh %129 : vector<1x32xf32>
    %131 = arith.mulf %126, %130 : vector<1x32xf32>
    %132 = vector.extract_strided_slice %14 {offsets = [3, 0], sizes = [1, 128], strides = [1, 1]} : vector<8x128xf32> to vector<1x128xf32>
    %cst_38 = arith.constant dense<0.000000e+00> : vector<1x128xf32>
    %133 = tpu.matmul %93, %5, %cst_38 {dimension_numbers = #tpu.dot_dimension_numbers<[1], [0], [0], [1], [0, 0, 1, 1], [], []>} : vector<1x32xf32>, vector<32x128xf32>, vector<1x128xf32> -> vector<1x128xf32>
    %134 = arith.addf %132, %133 : vector<1x128xf32>
    %135 = arith.negf %134 : vector<1x128xf32>
    %136 = math.exp %135 : vector<1x128xf32>
    %cst_39 = arith.constant 1.000000e+00 : f32
    %137 = vector.broadcast %cst_39 : f32 to vector<1x128xf32>
    %138 = arith.addf %137, %136 : vector<1x128xf32>
    %139 = arith.divf %137, %138 : vector<1x128xf32>
    %140 = vector.extract_strided_slice %134 {offsets = [0, 64], sizes = [1, 32], strides = [1, 1]} : vector<1x128xf32> to vector<1x32xf32>
    %141 = math.tanh %140 : vector<1x32xf32>
    %142 = vector.extract_strided_slice %139 {offsets = [0, 0], sizes = [1, 32], strides = [1, 1]} : vector<1x128xf32> to vector<1x32xf32>
    %143 = vector.extract_strided_slice %139 {offsets = [0, 32], sizes = [1, 32], strides = [1, 1]} : vector<1x128xf32> to vector<1x32xf32>
    %144 = vector.extract_strided_slice %139 {offsets = [0, 96], sizes = [1, 32], strides = [1, 1]} : vector<1x128xf32> to vector<1x32xf32>
    %145 = arith.mulf %143, %91 : vector<1x32xf32>
    %146 = arith.mulf %142, %141 : vector<1x32xf32>
    %147 = arith.addf %145, %146 : vector<1x32xf32>
    %148 = math.tanh %147 : vector<1x32xf32>
    %149 = arith.mulf %144, %148 : vector<1x32xf32>
    %cst_40 = arith.constant dense<0.000000e+00> : vector<1x128xf32>
    %150 = tpu.matmul %93, %3, %cst_40 {dimension_numbers = #tpu.dot_dimension_numbers<[1], [0], [0], [1], [0, 0, 1, 1], [], []>} : vector<1x32xf32>, vector<32x128xf32>, vector<1x128xf32> -> vector<1x128xf32>
    %cst_41 = arith.constant dense<0.000000e+00> : vector<1x128xf32>
    %151 = tpu.matmul %112, %6, %cst_41 {dimension_numbers = #tpu.dot_dimension_numbers<[1], [0], [0], [1], [0, 0, 1, 1], [], []>} : vector<1x32xf32>, vector<32x128xf32>, vector<1x128xf32> -> vector<1x128xf32>
    %152 = arith.addf %150, %151 : vector<1x128xf32>
    %153 = arith.addf %152, %9 : vector<1x128xf32>
    %154 = arith.negf %153 : vector<1x128xf32>
    %155 = math.exp %154 : vector<1x128xf32>
    %cst_42 = arith.constant 1.000000e+00 : f32
    %156 = vector.broadcast %cst_42 : f32 to vector<1x128xf32>
    %157 = arith.addf %156, %155 : vector<1x128xf32>
    %158 = arith.divf %156, %157 : vector<1x128xf32>
    %159 = vector.extract_strided_slice %153 {offsets = [0, 64], sizes = [1, 32], strides = [1, 1]} : vector<1x128xf32> to vector<1x32xf32>
    %160 = math.tanh %159 : vector<1x32xf32>
    %161 = vector.extract_strided_slice %158 {offsets = [0, 0], sizes = [1, 32], strides = [1, 1]} : vector<1x128xf32> to vector<1x32xf32>
    %162 = vector.extract_strided_slice %158 {offsets = [0, 32], sizes = [1, 32], strides = [1, 1]} : vector<1x128xf32> to vector<1x32xf32>
    %163 = vector.extract_strided_slice %158 {offsets = [0, 96], sizes = [1, 32], strides = [1, 1]} : vector<1x128xf32> to vector<1x32xf32>
    %164 = arith.mulf %162, %110 : vector<1x32xf32>
    %165 = arith.mulf %161, %160 : vector<1x32xf32>
    %166 = arith.addf %164, %165 : vector<1x32xf32>
    %167 = math.tanh %166 : vector<1x32xf32>
    %168 = arith.mulf %163, %167 : vector<1x32xf32>
    %cst_43 = arith.constant dense<0.000000e+00> : vector<1x128xf32>
    %169 = tpu.matmul %112, %4, %cst_43 {dimension_numbers = #tpu.dot_dimension_numbers<[1], [0], [0], [1], [0, 0, 1, 1], [], []>} : vector<1x32xf32>, vector<32x128xf32>, vector<1x128xf32> -> vector<1x128xf32>
    %cst_44 = arith.constant dense<0.000000e+00> : vector<1x128xf32>
    %170 = tpu.matmul %131, %7, %cst_44 {dimension_numbers = #tpu.dot_dimension_numbers<[1], [0], [0], [1], [0, 0, 1, 1], [], []>} : vector<1x32xf32>, vector<32x128xf32>, vector<1x128xf32> -> vector<1x128xf32>
    %171 = arith.addf %169, %170 : vector<1x128xf32>
    %172 = arith.addf %171, %10 : vector<1x128xf32>
    %173 = arith.negf %172 : vector<1x128xf32>
    %174 = math.exp %173 : vector<1x128xf32>
    %cst_45 = arith.constant 1.000000e+00 : f32
    %175 = vector.broadcast %cst_45 : f32 to vector<1x128xf32>
    %176 = arith.addf %175, %174 : vector<1x128xf32>
    %177 = arith.divf %175, %176 : vector<1x128xf32>
    %178 = vector.extract_strided_slice %172 {offsets = [0, 64], sizes = [1, 32], strides = [1, 1]} : vector<1x128xf32> to vector<1x32xf32>
    %179 = math.tanh %178 : vector<1x32xf32>
    %180 = vector.extract_strided_slice %177 {offsets = [0, 0], sizes = [1, 32], strides = [1, 1]} : vector<1x128xf32> to vector<1x32xf32>
    %181 = vector.extract_strided_slice %177 {offsets = [0, 32], sizes = [1, 32], strides = [1, 1]} : vector<1x128xf32> to vector<1x32xf32>
    %182 = vector.extract_strided_slice %177 {offsets = [0, 96], sizes = [1, 32], strides = [1, 1]} : vector<1x128xf32> to vector<1x32xf32>
    %183 = arith.mulf %181, %129 : vector<1x32xf32>
    %184 = arith.mulf %180, %179 : vector<1x32xf32>
    %185 = arith.addf %183, %184 : vector<1x32xf32>
    %186 = math.tanh %185 : vector<1x32xf32>
    %187 = arith.mulf %182, %186 : vector<1x32xf32>
    %188 = vector.extract_strided_slice %14 {offsets = [4, 0], sizes = [1, 128], strides = [1, 1]} : vector<8x128xf32> to vector<1x128xf32>
    %cst_46 = arith.constant dense<0.000000e+00> : vector<1x128xf32>
    %189 = tpu.matmul %149, %5, %cst_46 {dimension_numbers = #tpu.dot_dimension_numbers<[1], [0], [0], [1], [0, 0, 1, 1], [], []>} : vector<1x32xf32>, vector<32x128xf32>, vector<1x128xf32> -> vector<1x128xf32>
    %190 = arith.addf %188, %189 : vector<1x128xf32>
    %191 = arith.negf %190 : vector<1x128xf32>
    %192 = math.exp %191 : vector<1x128xf32>
    %cst_47 = arith.constant 1.000000e+00 : f32
    %193 = vector.broadcast %cst_47 : f32 to vector<1x128xf32>
    %194 = arith.addf %193, %192 : vector<1x128xf32>
    %195 = arith.divf %193, %194 : vector<1x128xf32>
    %196 = vector.extract_strided_slice %190 {offsets = [0, 64], sizes = [1, 32], strides = [1, 1]} : vector<1x128xf32> to vector<1x32xf32>
    %197 = math.tanh %196 : vector<1x32xf32>
    %198 = vector.extract_strided_slice %195 {offsets = [0, 0], sizes = [1, 32], strides = [1, 1]} : vector<1x128xf32> to vector<1x32xf32>
    %199 = vector.extract_strided_slice %195 {offsets = [0, 32], sizes = [1, 32], strides = [1, 1]} : vector<1x128xf32> to vector<1x32xf32>
    %200 = vector.extract_strided_slice %195 {offsets = [0, 96], sizes = [1, 32], strides = [1, 1]} : vector<1x128xf32> to vector<1x32xf32>
    %201 = arith.mulf %199, %147 : vector<1x32xf32>
    %202 = arith.mulf %198, %197 : vector<1x32xf32>
    %203 = arith.addf %201, %202 : vector<1x32xf32>
    %204 = math.tanh %203 : vector<1x32xf32>
    %205 = arith.mulf %200, %204 : vector<1x32xf32>
    %cst_48 = arith.constant dense<0.000000e+00> : vector<1x128xf32>
    %206 = tpu.matmul %149, %3, %cst_48 {dimension_numbers = #tpu.dot_dimension_numbers<[1], [0], [0], [1], [0, 0, 1, 1], [], []>} : vector<1x32xf32>, vector<32x128xf32>, vector<1x128xf32> -> vector<1x128xf32>
    %cst_49 = arith.constant dense<0.000000e+00> : vector<1x128xf32>
    %207 = tpu.matmul %168, %6, %cst_49 {dimension_numbers = #tpu.dot_dimension_numbers<[1], [0], [0], [1], [0, 0, 1, 1], [], []>} : vector<1x32xf32>, vector<32x128xf32>, vector<1x128xf32> -> vector<1x128xf32>
    %208 = arith.addf %206, %207 : vector<1x128xf32>
    %209 = arith.addf %208, %9 : vector<1x128xf32>
    %210 = arith.negf %209 : vector<1x128xf32>
    %211 = math.exp %210 : vector<1x128xf32>
    %cst_50 = arith.constant 1.000000e+00 : f32
    %212 = vector.broadcast %cst_50 : f32 to vector<1x128xf32>
    %213 = arith.addf %212, %211 : vector<1x128xf32>
    %214 = arith.divf %212, %213 : vector<1x128xf32>
    %215 = vector.extract_strided_slice %209 {offsets = [0, 64], sizes = [1, 32], strides = [1, 1]} : vector<1x128xf32> to vector<1x32xf32>
    %216 = math.tanh %215 : vector<1x32xf32>
    %217 = vector.extract_strided_slice %214 {offsets = [0, 0], sizes = [1, 32], strides = [1, 1]} : vector<1x128xf32> to vector<1x32xf32>
    %218 = vector.extract_strided_slice %214 {offsets = [0, 32], sizes = [1, 32], strides = [1, 1]} : vector<1x128xf32> to vector<1x32xf32>
    %219 = vector.extract_strided_slice %214 {offsets = [0, 96], sizes = [1, 32], strides = [1, 1]} : vector<1x128xf32> to vector<1x32xf32>
    %220 = arith.mulf %218, %166 : vector<1x32xf32>
    %221 = arith.mulf %217, %216 : vector<1x32xf32>
    %222 = arith.addf %220, %221 : vector<1x32xf32>
    %223 = math.tanh %222 : vector<1x32xf32>
    %224 = arith.mulf %219, %223 : vector<1x32xf32>
    %cst_51 = arith.constant dense<0.000000e+00> : vector<1x128xf32>
    %225 = tpu.matmul %168, %4, %cst_51 {dimension_numbers = #tpu.dot_dimension_numbers<[1], [0], [0], [1], [0, 0, 1, 1], [], []>} : vector<1x32xf32>, vector<32x128xf32>, vector<1x128xf32> -> vector<1x128xf32>
    %cst_52 = arith.constant dense<0.000000e+00> : vector<1x128xf32>
    %226 = tpu.matmul %187, %7, %cst_52 {dimension_numbers = #tpu.dot_dimension_numbers<[1], [0], [0], [1], [0, 0, 1, 1], [], []>} : vector<1x32xf32>, vector<32x128xf32>, vector<1x128xf32> -> vector<1x128xf32>
    %227 = arith.addf %225, %226 : vector<1x128xf32>
    %228 = arith.addf %227, %10 : vector<1x128xf32>
    %229 = arith.negf %228 : vector<1x128xf32>
    %230 = math.exp %229 : vector<1x128xf32>
    %cst_53 = arith.constant 1.000000e+00 : f32
    %231 = vector.broadcast %cst_53 : f32 to vector<1x128xf32>
    %232 = arith.addf %231, %230 : vector<1x128xf32>
    %233 = arith.divf %231, %232 : vector<1x128xf32>
    %234 = vector.extract_strided_slice %228 {offsets = [0, 64], sizes = [1, 32], strides = [1, 1]} : vector<1x128xf32> to vector<1x32xf32>
    %235 = math.tanh %234 : vector<1x32xf32>
    %236 = vector.extract_strided_slice %233 {offsets = [0, 0], sizes = [1, 32], strides = [1, 1]} : vector<1x128xf32> to vector<1x32xf32>
    %237 = vector.extract_strided_slice %233 {offsets = [0, 32], sizes = [1, 32], strides = [1, 1]} : vector<1x128xf32> to vector<1x32xf32>
    %238 = vector.extract_strided_slice %233 {offsets = [0, 96], sizes = [1, 32], strides = [1, 1]} : vector<1x128xf32> to vector<1x32xf32>
    %239 = arith.mulf %237, %185 : vector<1x32xf32>
    %240 = arith.mulf %236, %235 : vector<1x32xf32>
    %241 = arith.addf %239, %240 : vector<1x32xf32>
    %242 = math.tanh %241 : vector<1x32xf32>
    %243 = arith.mulf %238, %242 : vector<1x32xf32>
    %244 = vector.extract_strided_slice %14 {offsets = [5, 0], sizes = [1, 128], strides = [1, 1]} : vector<8x128xf32> to vector<1x128xf32>
    %cst_54 = arith.constant dense<0.000000e+00> : vector<1x128xf32>
    %245 = tpu.matmul %205, %5, %cst_54 {dimension_numbers = #tpu.dot_dimension_numbers<[1], [0], [0], [1], [0, 0, 1, 1], [], []>} : vector<1x32xf32>, vector<32x128xf32>, vector<1x128xf32> -> vector<1x128xf32>
    %246 = arith.addf %244, %245 : vector<1x128xf32>
    %247 = arith.negf %246 : vector<1x128xf32>
    %248 = math.exp %247 : vector<1x128xf32>
    %cst_55 = arith.constant 1.000000e+00 : f32
    %249 = vector.broadcast %cst_55 : f32 to vector<1x128xf32>
    %250 = arith.addf %249, %248 : vector<1x128xf32>
    %251 = arith.divf %249, %250 : vector<1x128xf32>
    %252 = vector.extract_strided_slice %246 {offsets = [0, 64], sizes = [1, 32], strides = [1, 1]} : vector<1x128xf32> to vector<1x32xf32>
    %253 = math.tanh %252 : vector<1x32xf32>
    %254 = vector.extract_strided_slice %251 {offsets = [0, 0], sizes = [1, 32], strides = [1, 1]} : vector<1x128xf32> to vector<1x32xf32>
    %255 = vector.extract_strided_slice %251 {offsets = [0, 32], sizes = [1, 32], strides = [1, 1]} : vector<1x128xf32> to vector<1x32xf32>
    %256 = vector.extract_strided_slice %251 {offsets = [0, 96], sizes = [1, 32], strides = [1, 1]} : vector<1x128xf32> to vector<1x32xf32>
    %257 = arith.mulf %255, %203 : vector<1x32xf32>
    %258 = arith.mulf %254, %253 : vector<1x32xf32>
    %259 = arith.addf %257, %258 : vector<1x32xf32>
    %260 = math.tanh %259 : vector<1x32xf32>
    %261 = arith.mulf %256, %260 : vector<1x32xf32>
    %cst_56 = arith.constant dense<0.000000e+00> : vector<1x128xf32>
    %262 = tpu.matmul %205, %3, %cst_56 {dimension_numbers = #tpu.dot_dimension_numbers<[1], [0], [0], [1], [0, 0, 1, 1], [], []>} : vector<1x32xf32>, vector<32x128xf32>, vector<1x128xf32> -> vector<1x128xf32>
    %cst_57 = arith.constant dense<0.000000e+00> : vector<1x128xf32>
    %263 = tpu.matmul %224, %6, %cst_57 {dimension_numbers = #tpu.dot_dimension_numbers<[1], [0], [0], [1], [0, 0, 1, 1], [], []>} : vector<1x32xf32>, vector<32x128xf32>, vector<1x128xf32> -> vector<1x128xf32>
    %264 = arith.addf %262, %263 : vector<1x128xf32>
    %265 = arith.addf %264, %9 : vector<1x128xf32>
    %266 = arith.negf %265 : vector<1x128xf32>
    %267 = math.exp %266 : vector<1x128xf32>
    %cst_58 = arith.constant 1.000000e+00 : f32
    %268 = vector.broadcast %cst_58 : f32 to vector<1x128xf32>
    %269 = arith.addf %268, %267 : vector<1x128xf32>
    %270 = arith.divf %268, %269 : vector<1x128xf32>
    %271 = vector.extract_strided_slice %265 {offsets = [0, 64], sizes = [1, 32], strides = [1, 1]} : vector<1x128xf32> to vector<1x32xf32>
    %272 = math.tanh %271 : vector<1x32xf32>
    %273 = vector.extract_strided_slice %270 {offsets = [0, 0], sizes = [1, 32], strides = [1, 1]} : vector<1x128xf32> to vector<1x32xf32>
    %274 = vector.extract_strided_slice %270 {offsets = [0, 32], sizes = [1, 32], strides = [1, 1]} : vector<1x128xf32> to vector<1x32xf32>
    %275 = vector.extract_strided_slice %270 {offsets = [0, 96], sizes = [1, 32], strides = [1, 1]} : vector<1x128xf32> to vector<1x32xf32>
    %276 = arith.mulf %274, %222 : vector<1x32xf32>
    %277 = arith.mulf %273, %272 : vector<1x32xf32>
    %278 = arith.addf %276, %277 : vector<1x32xf32>
    %279 = math.tanh %278 : vector<1x32xf32>
    %280 = arith.mulf %275, %279 : vector<1x32xf32>
    %cst_59 = arith.constant dense<0.000000e+00> : vector<1x128xf32>
    %281 = tpu.matmul %224, %4, %cst_59 {dimension_numbers = #tpu.dot_dimension_numbers<[1], [0], [0], [1], [0, 0, 1, 1], [], []>} : vector<1x32xf32>, vector<32x128xf32>, vector<1x128xf32> -> vector<1x128xf32>
    %cst_60 = arith.constant dense<0.000000e+00> : vector<1x128xf32>
    %282 = tpu.matmul %243, %7, %cst_60 {dimension_numbers = #tpu.dot_dimension_numbers<[1], [0], [0], [1], [0, 0, 1, 1], [], []>} : vector<1x32xf32>, vector<32x128xf32>, vector<1x128xf32> -> vector<1x128xf32>
    %283 = arith.addf %281, %282 : vector<1x128xf32>
    %284 = arith.addf %283, %10 : vector<1x128xf32>
    %285 = arith.negf %284 : vector<1x128xf32>
    %286 = math.exp %285 : vector<1x128xf32>
    %cst_61 = arith.constant 1.000000e+00 : f32
    %287 = vector.broadcast %cst_61 : f32 to vector<1x128xf32>
    %288 = arith.addf %287, %286 : vector<1x128xf32>
    %289 = arith.divf %287, %288 : vector<1x128xf32>
    %290 = vector.extract_strided_slice %284 {offsets = [0, 64], sizes = [1, 32], strides = [1, 1]} : vector<1x128xf32> to vector<1x32xf32>
    %291 = math.tanh %290 : vector<1x32xf32>
    %292 = vector.extract_strided_slice %289 {offsets = [0, 0], sizes = [1, 32], strides = [1, 1]} : vector<1x128xf32> to vector<1x32xf32>
    %293 = vector.extract_strided_slice %289 {offsets = [0, 32], sizes = [1, 32], strides = [1, 1]} : vector<1x128xf32> to vector<1x32xf32>
    %294 = vector.extract_strided_slice %289 {offsets = [0, 96], sizes = [1, 32], strides = [1, 1]} : vector<1x128xf32> to vector<1x32xf32>
    %295 = arith.mulf %293, %241 : vector<1x32xf32>
    %296 = arith.mulf %292, %291 : vector<1x32xf32>
    %297 = arith.addf %295, %296 : vector<1x32xf32>
    %298 = math.tanh %297 : vector<1x32xf32>
    %299 = arith.mulf %294, %298 : vector<1x32xf32>
    %300 = vector.extract_strided_slice %14 {offsets = [6, 0], sizes = [1, 128], strides = [1, 1]} : vector<8x128xf32> to vector<1x128xf32>
    %cst_62 = arith.constant dense<0.000000e+00> : vector<1x128xf32>
    %301 = tpu.matmul %261, %5, %cst_62 {dimension_numbers = #tpu.dot_dimension_numbers<[1], [0], [0], [1], [0, 0, 1, 1], [], []>} : vector<1x32xf32>, vector<32x128xf32>, vector<1x128xf32> -> vector<1x128xf32>
    %302 = arith.addf %300, %301 : vector<1x128xf32>
    %303 = arith.negf %302 : vector<1x128xf32>
    %304 = math.exp %303 : vector<1x128xf32>
    %cst_63 = arith.constant 1.000000e+00 : f32
    %305 = vector.broadcast %cst_63 : f32 to vector<1x128xf32>
    %306 = arith.addf %305, %304 : vector<1x128xf32>
    %307 = arith.divf %305, %306 : vector<1x128xf32>
    %308 = vector.extract_strided_slice %302 {offsets = [0, 64], sizes = [1, 32], strides = [1, 1]} : vector<1x128xf32> to vector<1x32xf32>
    %309 = math.tanh %308 : vector<1x32xf32>
    %310 = vector.extract_strided_slice %307 {offsets = [0, 0], sizes = [1, 32], strides = [1, 1]} : vector<1x128xf32> to vector<1x32xf32>
    %311 = vector.extract_strided_slice %307 {offsets = [0, 32], sizes = [1, 32], strides = [1, 1]} : vector<1x128xf32> to vector<1x32xf32>
    %312 = vector.extract_strided_slice %307 {offsets = [0, 96], sizes = [1, 32], strides = [1, 1]} : vector<1x128xf32> to vector<1x32xf32>
    %313 = arith.mulf %311, %259 : vector<1x32xf32>
    %314 = arith.mulf %310, %309 : vector<1x32xf32>
    %315 = arith.addf %313, %314 : vector<1x32xf32>
    %316 = math.tanh %315 : vector<1x32xf32>
    %317 = arith.mulf %312, %316 : vector<1x32xf32>
    %cst_64 = arith.constant dense<0.000000e+00> : vector<1x128xf32>
    %318 = tpu.matmul %261, %3, %cst_64 {dimension_numbers = #tpu.dot_dimension_numbers<[1], [0], [0], [1], [0, 0, 1, 1], [], []>} : vector<1x32xf32>, vector<32x128xf32>, vector<1x128xf32> -> vector<1x128xf32>
    %cst_65 = arith.constant dense<0.000000e+00> : vector<1x128xf32>
    %319 = tpu.matmul %280, %6, %cst_65 {dimension_numbers = #tpu.dot_dimension_numbers<[1], [0], [0], [1], [0, 0, 1, 1], [], []>} : vector<1x32xf32>, vector<32x128xf32>, vector<1x128xf32> -> vector<1x128xf32>
    %320 = arith.addf %318, %319 : vector<1x128xf32>
    %321 = arith.addf %320, %9 : vector<1x128xf32>
    %322 = arith.negf %321 : vector<1x128xf32>
    %323 = math.exp %322 : vector<1x128xf32>
    %cst_66 = arith.constant 1.000000e+00 : f32
    %324 = vector.broadcast %cst_66 : f32 to vector<1x128xf32>
    %325 = arith.addf %324, %323 : vector<1x128xf32>
    %326 = arith.divf %324, %325 : vector<1x128xf32>
    %327 = vector.extract_strided_slice %321 {offsets = [0, 64], sizes = [1, 32], strides = [1, 1]} : vector<1x128xf32> to vector<1x32xf32>
    %328 = math.tanh %327 : vector<1x32xf32>
    %329 = vector.extract_strided_slice %326 {offsets = [0, 0], sizes = [1, 32], strides = [1, 1]} : vector<1x128xf32> to vector<1x32xf32>
    %330 = vector.extract_strided_slice %326 {offsets = [0, 32], sizes = [1, 32], strides = [1, 1]} : vector<1x128xf32> to vector<1x32xf32>
    %331 = vector.extract_strided_slice %326 {offsets = [0, 96], sizes = [1, 32], strides = [1, 1]} : vector<1x128xf32> to vector<1x32xf32>
    %332 = arith.mulf %330, %278 : vector<1x32xf32>
    %333 = arith.mulf %329, %328 : vector<1x32xf32>
    %334 = arith.addf %332, %333 : vector<1x32xf32>
    %335 = math.tanh %334 : vector<1x32xf32>
    %336 = arith.mulf %331, %335 : vector<1x32xf32>
    %cst_67 = arith.constant dense<0.000000e+00> : vector<1x128xf32>
    %337 = tpu.matmul %280, %4, %cst_67 {dimension_numbers = #tpu.dot_dimension_numbers<[1], [0], [0], [1], [0, 0, 1, 1], [], []>} : vector<1x32xf32>, vector<32x128xf32>, vector<1x128xf32> -> vector<1x128xf32>
    %cst_68 = arith.constant dense<0.000000e+00> : vector<1x128xf32>
    %338 = tpu.matmul %299, %7, %cst_68 {dimension_numbers = #tpu.dot_dimension_numbers<[1], [0], [0], [1], [0, 0, 1, 1], [], []>} : vector<1x32xf32>, vector<32x128xf32>, vector<1x128xf32> -> vector<1x128xf32>
    %339 = arith.addf %337, %338 : vector<1x128xf32>
    %340 = arith.addf %339, %10 : vector<1x128xf32>
    %341 = arith.negf %340 : vector<1x128xf32>
    %342 = math.exp %341 : vector<1x128xf32>
    %cst_69 = arith.constant 1.000000e+00 : f32
    %343 = vector.broadcast %cst_69 : f32 to vector<1x128xf32>
    %344 = arith.addf %343, %342 : vector<1x128xf32>
    %345 = arith.divf %343, %344 : vector<1x128xf32>
    %346 = vector.extract_strided_slice %340 {offsets = [0, 64], sizes = [1, 32], strides = [1, 1]} : vector<1x128xf32> to vector<1x32xf32>
    %347 = math.tanh %346 : vector<1x32xf32>
    %348 = vector.extract_strided_slice %345 {offsets = [0, 0], sizes = [1, 32], strides = [1, 1]} : vector<1x128xf32> to vector<1x32xf32>
    %349 = vector.extract_strided_slice %345 {offsets = [0, 32], sizes = [1, 32], strides = [1, 1]} : vector<1x128xf32> to vector<1x32xf32>
    %350 = vector.extract_strided_slice %345 {offsets = [0, 96], sizes = [1, 32], strides = [1, 1]} : vector<1x128xf32> to vector<1x32xf32>
    %351 = arith.mulf %349, %297 : vector<1x32xf32>
    %352 = arith.mulf %348, %347 : vector<1x32xf32>
    %353 = arith.addf %351, %352 : vector<1x32xf32>
    %354 = math.tanh %353 : vector<1x32xf32>
    %355 = arith.mulf %350, %354 : vector<1x32xf32>
    %356 = vector.extract_strided_slice %14 {offsets = [7, 0], sizes = [1, 128], strides = [1, 1]} : vector<8x128xf32> to vector<1x128xf32>
    %cst_70 = arith.constant dense<0.000000e+00> : vector<1x128xf32>
    %357 = tpu.matmul %317, %5, %cst_70 {dimension_numbers = #tpu.dot_dimension_numbers<[1], [0], [0], [1], [0, 0, 1, 1], [], []>} : vector<1x32xf32>, vector<32x128xf32>, vector<1x128xf32> -> vector<1x128xf32>
    %358 = arith.addf %356, %357 : vector<1x128xf32>
    %359 = arith.negf %358 : vector<1x128xf32>
    %360 = math.exp %359 : vector<1x128xf32>
    %cst_71 = arith.constant 1.000000e+00 : f32
    %361 = vector.broadcast %cst_71 : f32 to vector<1x128xf32>
    %362 = arith.addf %361, %360 : vector<1x128xf32>
    %363 = arith.divf %361, %362 : vector<1x128xf32>
    %364 = vector.extract_strided_slice %358 {offsets = [0, 64], sizes = [1, 32], strides = [1, 1]} : vector<1x128xf32> to vector<1x32xf32>
    %365 = math.tanh %364 : vector<1x32xf32>
    %366 = vector.extract_strided_slice %363 {offsets = [0, 0], sizes = [1, 32], strides = [1, 1]} : vector<1x128xf32> to vector<1x32xf32>
    %367 = vector.extract_strided_slice %363 {offsets = [0, 32], sizes = [1, 32], strides = [1, 1]} : vector<1x128xf32> to vector<1x32xf32>
    %368 = vector.extract_strided_slice %363 {offsets = [0, 96], sizes = [1, 32], strides = [1, 1]} : vector<1x128xf32> to vector<1x32xf32>
    %369 = arith.mulf %367, %315 : vector<1x32xf32>
    %370 = arith.mulf %366, %365 : vector<1x32xf32>
    %371 = arith.addf %369, %370 : vector<1x32xf32>
    %372 = math.tanh %371 : vector<1x32xf32>
    %373 = arith.mulf %368, %372 : vector<1x32xf32>
    %cst_72 = arith.constant dense<0.000000e+00> : vector<1x128xf32>
    %374 = tpu.matmul %317, %3, %cst_72 {dimension_numbers = #tpu.dot_dimension_numbers<[1], [0], [0], [1], [0, 0, 1, 1], [], []>} : vector<1x32xf32>, vector<32x128xf32>, vector<1x128xf32> -> vector<1x128xf32>
    %cst_73 = arith.constant dense<0.000000e+00> : vector<1x128xf32>
    %375 = tpu.matmul %336, %6, %cst_73 {dimension_numbers = #tpu.dot_dimension_numbers<[1], [0], [0], [1], [0, 0, 1, 1], [], []>} : vector<1x32xf32>, vector<32x128xf32>, vector<1x128xf32> -> vector<1x128xf32>
    %376 = arith.addf %374, %375 : vector<1x128xf32>
    %377 = arith.addf %376, %9 : vector<1x128xf32>
    %378 = arith.negf %377 : vector<1x128xf32>
    %379 = math.exp %378 : vector<1x128xf32>
    %cst_74 = arith.constant 1.000000e+00 : f32
    %380 = vector.broadcast %cst_74 : f32 to vector<1x128xf32>
    %381 = arith.addf %380, %379 : vector<1x128xf32>
    %382 = arith.divf %380, %381 : vector<1x128xf32>
    %383 = vector.extract_strided_slice %377 {offsets = [0, 64], sizes = [1, 32], strides = [1, 1]} : vector<1x128xf32> to vector<1x32xf32>
    %384 = math.tanh %383 : vector<1x32xf32>
    %385 = vector.extract_strided_slice %382 {offsets = [0, 0], sizes = [1, 32], strides = [1, 1]} : vector<1x128xf32> to vector<1x32xf32>
    %386 = vector.extract_strided_slice %382 {offsets = [0, 32], sizes = [1, 32], strides = [1, 1]} : vector<1x128xf32> to vector<1x32xf32>
    %387 = vector.extract_strided_slice %382 {offsets = [0, 96], sizes = [1, 32], strides = [1, 1]} : vector<1x128xf32> to vector<1x32xf32>
    %388 = arith.mulf %386, %334 : vector<1x32xf32>
    %389 = arith.mulf %385, %384 : vector<1x32xf32>
    %390 = arith.addf %388, %389 : vector<1x32xf32>
    %391 = math.tanh %390 : vector<1x32xf32>
    %392 = arith.mulf %387, %391 : vector<1x32xf32>
    %cst_75 = arith.constant dense<0.000000e+00> : vector<1x128xf32>
    %393 = tpu.matmul %336, %4, %cst_75 {dimension_numbers = #tpu.dot_dimension_numbers<[1], [0], [0], [1], [0, 0, 1, 1], [], []>} : vector<1x32xf32>, vector<32x128xf32>, vector<1x128xf32> -> vector<1x128xf32>
    %cst_76 = arith.constant dense<0.000000e+00> : vector<1x128xf32>
    %394 = tpu.matmul %355, %7, %cst_76 {dimension_numbers = #tpu.dot_dimension_numbers<[1], [0], [0], [1], [0, 0, 1, 1], [], []>} : vector<1x32xf32>, vector<32x128xf32>, vector<1x128xf32> -> vector<1x128xf32>
    %395 = arith.addf %393, %394 : vector<1x128xf32>
    %396 = arith.addf %395, %10 : vector<1x128xf32>
    %397 = arith.negf %396 : vector<1x128xf32>
    %398 = math.exp %397 : vector<1x128xf32>
    %cst_77 = arith.constant 1.000000e+00 : f32
    %399 = vector.broadcast %cst_77 : f32 to vector<1x128xf32>
    %400 = arith.addf %399, %398 : vector<1x128xf32>
    %401 = arith.divf %399, %400 : vector<1x128xf32>
    %402 = vector.extract_strided_slice %396 {offsets = [0, 64], sizes = [1, 32], strides = [1, 1]} : vector<1x128xf32> to vector<1x32xf32>
    %403 = math.tanh %402 : vector<1x32xf32>
    %404 = vector.extract_strided_slice %401 {offsets = [0, 0], sizes = [1, 32], strides = [1, 1]} : vector<1x128xf32> to vector<1x32xf32>
    %405 = vector.extract_strided_slice %401 {offsets = [0, 32], sizes = [1, 32], strides = [1, 1]} : vector<1x128xf32> to vector<1x32xf32>
    %406 = vector.extract_strided_slice %401 {offsets = [0, 96], sizes = [1, 32], strides = [1, 1]} : vector<1x128xf32> to vector<1x32xf32>
    %407 = arith.mulf %405, %353 : vector<1x32xf32>
    %408 = arith.mulf %404, %403 : vector<1x32xf32>
    %409 = arith.addf %407, %408 : vector<1x32xf32>
    %410 = math.tanh %409 : vector<1x32xf32>
    %411 = arith.mulf %406, %410 : vector<1x32xf32>
    %cst_78 = arith.constant dense<0.000000e+00> : vector<1x128xf32>
    %412 = tpu.matmul %373, %3, %cst_78 {dimension_numbers = #tpu.dot_dimension_numbers<[1], [0], [0], [1], [0, 0, 1, 1], [], []>} : vector<1x32xf32>, vector<32x128xf32>, vector<1x128xf32> -> vector<1x128xf32>
    %cst_79 = arith.constant dense<0.000000e+00> : vector<1x128xf32>
    %413 = tpu.matmul %392, %6, %cst_79 {dimension_numbers = #tpu.dot_dimension_numbers<[1], [0], [0], [1], [0, 0, 1, 1], [], []>} : vector<1x32xf32>, vector<32x128xf32>, vector<1x128xf32> -> vector<1x128xf32>
    %414 = arith.addf %412, %413 : vector<1x128xf32>
    %415 = arith.addf %414, %9 : vector<1x128xf32>
    %416 = arith.negf %415 : vector<1x128xf32>
    %417 = math.exp %416 : vector<1x128xf32>
    %cst_80 = arith.constant 1.000000e+00 : f32
    %418 = vector.broadcast %cst_80 : f32 to vector<1x128xf32>
    %419 = arith.addf %418, %417 : vector<1x128xf32>
    %420 = arith.divf %418, %419 : vector<1x128xf32>
    %421 = vector.extract_strided_slice %415 {offsets = [0, 64], sizes = [1, 32], strides = [1, 1]} : vector<1x128xf32> to vector<1x32xf32>
    %422 = math.tanh %421 : vector<1x32xf32>
    %423 = vector.extract_strided_slice %420 {offsets = [0, 0], sizes = [1, 32], strides = [1, 1]} : vector<1x128xf32> to vector<1x32xf32>
    %424 = vector.extract_strided_slice %420 {offsets = [0, 32], sizes = [1, 32], strides = [1, 1]} : vector<1x128xf32> to vector<1x32xf32>
    %425 = vector.extract_strided_slice %420 {offsets = [0, 96], sizes = [1, 32], strides = [1, 1]} : vector<1x128xf32> to vector<1x32xf32>
    %426 = arith.mulf %424, %390 : vector<1x32xf32>
    %427 = arith.mulf %423, %422 : vector<1x32xf32>
    %428 = arith.addf %426, %427 : vector<1x32xf32>
    %429 = math.tanh %428 : vector<1x32xf32>
    %430 = arith.mulf %425, %429 : vector<1x32xf32>
    %cst_81 = arith.constant dense<0.000000e+00> : vector<1x128xf32>
    %431 = tpu.matmul %392, %4, %cst_81 {dimension_numbers = #tpu.dot_dimension_numbers<[1], [0], [0], [1], [0, 0, 1, 1], [], []>} : vector<1x32xf32>, vector<32x128xf32>, vector<1x128xf32> -> vector<1x128xf32>
    %cst_82 = arith.constant dense<0.000000e+00> : vector<1x128xf32>
    %432 = tpu.matmul %411, %7, %cst_82 {dimension_numbers = #tpu.dot_dimension_numbers<[1], [0], [0], [1], [0, 0, 1, 1], [], []>} : vector<1x32xf32>, vector<32x128xf32>, vector<1x128xf32> -> vector<1x128xf32>
    %433 = arith.addf %431, %432 : vector<1x128xf32>
    %434 = arith.addf %433, %10 : vector<1x128xf32>
    %435 = arith.negf %434 : vector<1x128xf32>
    %436 = math.exp %435 : vector<1x128xf32>
    %cst_83 = arith.constant 1.000000e+00 : f32
    %437 = vector.broadcast %cst_83 : f32 to vector<1x128xf32>
    %438 = arith.addf %437, %436 : vector<1x128xf32>
    %439 = arith.divf %437, %438 : vector<1x128xf32>
    %440 = vector.extract_strided_slice %434 {offsets = [0, 64], sizes = [1, 32], strides = [1, 1]} : vector<1x128xf32> to vector<1x32xf32>
    %441 = math.tanh %440 : vector<1x32xf32>
    %442 = vector.extract_strided_slice %439 {offsets = [0, 0], sizes = [1, 32], strides = [1, 1]} : vector<1x128xf32> to vector<1x32xf32>
    %443 = vector.extract_strided_slice %439 {offsets = [0, 32], sizes = [1, 32], strides = [1, 1]} : vector<1x128xf32> to vector<1x32xf32>
    %444 = vector.extract_strided_slice %439 {offsets = [0, 96], sizes = [1, 32], strides = [1, 1]} : vector<1x128xf32> to vector<1x32xf32>
    %445 = arith.mulf %443, %409 : vector<1x32xf32>
    %446 = arith.mulf %442, %441 : vector<1x32xf32>
    %447 = arith.addf %445, %446 : vector<1x32xf32>
    %448 = math.tanh %447 : vector<1x32xf32>
    %449 = arith.mulf %444, %448 : vector<1x32xf32>
    %cst_84 = arith.constant dense<0.000000e+00> : vector<1x128xf32>
    %450 = tpu.matmul %430, %4, %cst_84 {dimension_numbers = #tpu.dot_dimension_numbers<[1], [0], [0], [1], [0, 0, 1, 1], [], []>} : vector<1x32xf32>, vector<32x128xf32>, vector<1x128xf32> -> vector<1x128xf32>
    %cst_85 = arith.constant dense<0.000000e+00> : vector<1x128xf32>
    %451 = tpu.matmul %449, %7, %cst_85 {dimension_numbers = #tpu.dot_dimension_numbers<[1], [0], [0], [1], [0, 0, 1, 1], [], []>} : vector<1x32xf32>, vector<32x128xf32>, vector<1x128xf32> -> vector<1x128xf32>
    %452 = arith.addf %450, %451 : vector<1x128xf32>
    %453 = arith.addf %452, %10 : vector<1x128xf32>
    %454 = arith.negf %453 : vector<1x128xf32>
    %455 = math.exp %454 : vector<1x128xf32>
    %cst_86 = arith.constant 1.000000e+00 : f32
    %456 = vector.broadcast %cst_86 : f32 to vector<1x128xf32>
    %457 = arith.addf %456, %455 : vector<1x128xf32>
    %458 = arith.divf %456, %457 : vector<1x128xf32>
    %459 = vector.extract_strided_slice %453 {offsets = [0, 64], sizes = [1, 32], strides = [1, 1]} : vector<1x128xf32> to vector<1x32xf32>
    %460 = math.tanh %459 : vector<1x32xf32>
    %461 = vector.extract_strided_slice %458 {offsets = [0, 0], sizes = [1, 32], strides = [1, 1]} : vector<1x128xf32> to vector<1x32xf32>
    %462 = vector.extract_strided_slice %458 {offsets = [0, 32], sizes = [1, 32], strides = [1, 1]} : vector<1x128xf32> to vector<1x32xf32>
    %463 = vector.extract_strided_slice %458 {offsets = [0, 96], sizes = [1, 32], strides = [1, 1]} : vector<1x128xf32> to vector<1x32xf32>
    %464 = arith.mulf %462, %447 : vector<1x32xf32>
    %465 = arith.mulf %461, %460 : vector<1x32xf32>
    %466 = arith.addf %464, %465 : vector<1x32xf32>
    %467 = math.tanh %466 : vector<1x32xf32>
    %468 = arith.mulf %463, %467 : vector<1x32xf32>
    %469 = tpu.concatenate %373, %430, %468 in 0 : vector<1x32xf32>, vector<1x32xf32>, vector<1x32xf32> -> vector<3x32xf32>
    %c0_87 = arith.constant 0 : index
    %c0_88 = arith.constant 0 : index
    %470 = vector.load %arg15[%c0_87, %c0_88] : memref<3x32xf32, #tpu.memory_space<vmem>>, vector<3x32xf32>
    tpu.vector_store %arg15[%c0_87, %c0_88], %469 {strides = array<i32>} : memref<3x32xf32, #tpu.memory_space<vmem>>, vector<3x32xf32>,
    %471 = tpu.concatenate %371, %428, %466 in 0 : vector<1x32xf32>, vector<1x32xf32>, vector<1x32xf32> -> vector<3x32xf32>
    %c0_89 = arith.constant 0 : index
    %c0_90 = arith.constant 0 : index
    %472 = vector.load %arg16[%c0_89, %c0_90] : memref<3x32xf32, #tpu.memory_space<vmem>>, vector<3x32xf32>
    tpu.vector_store %arg16[%c0_89, %c0_90], %471 {strides = array<i32>} : memref<3x32xf32, #tpu.memory_space<vmem>>, vector<3x32xf32>,
    %473 = tpu.concatenate %131, %187, %243, %299, %355, %411, %449, %468 in 0 : vector<1x32xf32>, vector<1x32xf32>, vector<1x32xf32>, vector<1x32xf32>, vector<1x32xf32>, vector<1x32xf32>, vector<1x32xf32>, vector<1x32xf32> -> vector<8x32xf32>
    %c0_91 = arith.constant 0 : index
    %c0_92 = arith.constant 0 : index
    %474 = vector.load %arg12[%c0_91, %c0_92] : memref<32x12xf32, #tpu.memory_space<vmem>>, vector<32x12xf32>
    %cst_93 = arith.constant dense<0.000000e+00> : vector<8x12xf32>
    %475 = tpu.matmul %473, %474, %cst_93 {dimension_numbers = #tpu.dot_dimension_numbers<[1], [0], [0], [1], [0, 0, 1, 1], [], []>} : vector<8x32xf32>, vector<32x12xf32>, vector<8x12xf32> -> vector<8x12xf32>
    %c0_94 = arith.constant 0 : index
    %c0_95 = arith.constant 0 : index
    %476 = vector.load %arg13[%c0_94, %c0_95] : memref<1x12xf32, #tpu.memory_space<vmem>>, vector<1x12xf32>
    %477 = vector.broadcast %476 : vector<1x12xf32> to vector<8x12xf32>
    %478 = arith.addf %475, %477 : vector<8x12xf32>
    %cst_96 = arith.constant dense<0xFF800000> : vector<8xf32>
    %479 = vector.multi_reduction <maximumf>, %478, %cst_96 [1] : vector<8x12xf32> to vector<8xf32>
    %480 = vector.shape_cast %479 : vector<8xf32> to vector<8x1xf32>
    %481 = vector.broadcast %480 : vector<8x1xf32> to vector<8x12xf32>
    %482 = arith.subf %478, %481 : vector<8x12xf32>
    %483 = math.exp %482 : vector<8x12xf32>
    %cst_97 = arith.constant dense<0.000000e+00> : vector<8xf32>
    %484 = vector.multi_reduction <add>, %483, %cst_97 [1] : vector<8x12xf32> to vector<8xf32>
    %485 = vector.shape_cast %484 : vector<8xf32> to vector<8x1xf32>
    %486 = math.log %485 : vector<8x1xf32>
    %487 = vector.broadcast %486 : vector<8x1xf32> to vector<8x12xf32>
    %488 = arith.subf %482, %487 : vector<8x12xf32>
    %c0_98 = arith.constant 0 : index
    %c0_99 = arith.constant 0 : index
    %489 = vector.load %arg14[%c0_98, %c0_99] : memref<8x12xf32, #tpu.memory_space<vmem>>, vector<8x12xf32>
    tpu.vector_store %arg14[%c0_98, %c0_99], %488 {strides = array<i32>} : memref<8x12xf32, #tpu.memory_space<vmem>>, vector<8x12xf32>,
    return
  }
}

</mosaic_0001>

<llo_original>
// kernel: lstm_forward.1
$region0: #{lstm_forward.1}
  #allocation0 [shape = 'u32[]', space=smem, size = 0x4, offset = 0x4, fixed_abs, tag = 'smem constant byte address 0x4 - core index']
  #allocation1 [shape = 'u32[144,128]{1,0:T(1,128)}', space=vmem, size = 0x12000, scoped, tag = 'internal scratch']
  %s0 = inlined_call_operand.vmem [shape: f32[8,16], index: 0, kind: input, shape index: {}]
  %s1 = inlined_call_operand.hbm [shape: f32[3,32], index: 1, kind: input, shape index: {}]
  %s2 = inlined_call_operand.hbm [shape: f32[3,32], index: 2, kind: input, shape index: {}]
  %s3 = inlined_call_operand.hbm [shape: f32[16,128], index: 3, kind: input, shape index: {}]
  %s4 = inlined_call_operand.vmem [shape: f32[32,128], index: 4, kind: input, shape index: {}]
  %s5 = inlined_call_operand.vmem [shape: f32[1,128], index: 5, kind: input, shape index: {}]
  %s6 = inlined_call_operand.vmem [shape: f32[32,128], index: 6, kind: input, shape index: {}]
  %s7 = inlined_call_operand.hbm [shape: f32[32,128], index: 7, kind: input, shape index: {}]
  %s8 = inlined_call_operand.vmem [shape: f32[1,128], index: 8, kind: input, shape index: {}]
  %s9 = inlined_call_operand.hbm [shape: f32[32,128], index: 9, kind: input, shape index: {}]
  %s10 = inlined_call_operand.hbm [shape: f32[32,128], index: 10, kind: input, shape index: {}]
  %s11 = inlined_call_operand.vmem [shape: f32[1,128], index: 11, kind: input, shape index: {}]
  %s12 = inlined_call_operand.vmem [shape: f32[32,12], index: 12, kind: input, shape index: {}]
  %s13 = inlined_call_operand.vmem [shape: f32[1,12], index: 13, kind: input, shape index: {}]
  %s14 = inlined_call_operand.hbm [shape: f32[8,12], index: 14, kind: output, shape index: {0}]
  %s15 = inlined_call_operand.hbm [shape: f32[3,32], index: 15, kind: output, shape index: {1}]
  %s16 = inlined_call_operand.hbm [shape: f32[3,32], index: 16, kind: output, shape index: {2}]
  %17 = xla_tuple %s14, %s15, %s16
  %s18 = sld [smem:[#allocation0]]
  $region106: #{lstm_forward.1} parent=0
    _
  %s20 = ssub.s32 1, %s18
  %s21 = scalar_select 0, %s20, %s18
  $region1: #{lstm_forward.1} parent=0
    #allocation2 [shape = 'u8[2048]{0}', space=vmem, size = 0x800, scoped, tag = 'input window, operand 1, single buffered']
    #allocation3 [shape = 's32[1]{0}', space=sflag, size = 0x4, scoped, tag = 'scoped memory for lstm_forward.1']
    #allocation4 [shape = 's32[1]{0}', space=sflag, size = 0x4, scoped, tag = 'scoped memory for lstm_forward.1']
    #allocation5 [shape = 'u8[2048]{0}', space=vmem, size = 0x800, scoped, tag = 'input window, operand 2, single buffered']
    #allocation6 [shape = 's32[1]{0}', space=sflag, size = 0x4, scoped, tag = 'scoped memory for lstm_forward.1']
    #allocation7 [shape = 'u8[8192]{0}', space=vmem, size = 0x2000, scoped, tag = 'input window, operand 3, single buffered']
    #allocation8 [shape = 'u8[16384]{0}', space=vmem, size = 0x4000, scoped, tag = 'input window, operand 7, single buffered']
    #allocation9 [shape = 's32[1]{0}', space=sflag, size = 0x4, scoped, tag = 'scoped memory for lstm_forward.1']
    #allocation10 [shape = 'u8[16384]{0}', space=vmem, size = 0x4000, scoped, tag = 'input window, operand 9, single buffered']
    #allocation11 [shape = 'u8[16384]{0}', space=vmem, size = 0x4000, scoped, tag = 'input window, operand 10, single buffered']
    #allocation12 [shape = 's32[1]{0}', space=sflag, size = 0x4, scoped, tag = 'scoped memory for lstm_forward.1']
    #allocation13 [shape = 'u8[4096]{0}', space=vmem, size = 0x1000, scoped, tag = 'output window, operand 0, single buffered']
    #allocation14 [shape = 'u8[2048]{0}', space=vmem, size = 0x800, scoped, tag = 'output window, operand 1, single buffered']
    #allocation15 [shape = 's32[1]{0}', space=sflag, size = 0x4, scoped, tag = 'scoped memory for lstm_forward.1']
    #allocation16 [shape = 'u8[2048]{0}', space=vmem, size = 0x800, scoped, tag = 'output window, operand 2, single buffered']
    %22 = vsyncpa [#allocation3], 0
    %23 = vsyncpa [#allocation6], 0
    %24 = vsyncpa [#allocation9], 0
    %25 = vsyncpa [#allocation12], 0
    %26 = vsyncpa [#allocation4], 0
    %27 = vsyncpa [#allocation15], 0
    // Predicated region
    $region2: #{lstm_forward.1} parent=1 // pred_check
      _
    $region3: #{lstm_forward.1} parent=1 // pred_check_branch
      %29 = sbr.rel (0) target = $region5
    $region4: #{lstm_forward.1} parent=1 // pred_region
      _
    $region5: #{lstm_forward.1} parent=1 // pred_fallthru
      _
    // Predicated region
    $region6: #{lstm_forward.1} parent=1 // pred_check
      _
    $region7: #{lstm_forward.1} parent=1 // pred_check_branch
      %31 = sbr.rel (0) target = $region9
    $region8: #{lstm_forward.1} parent=1 // pred_region
      %s33 = ssub.s32 64, 64
      %34 = vsyncadd [#allocation3], %s33
      %s36 = sshll.u32 [#allocation2], 4
      %s37 = int_to_ptr.vmem [resolvable:$true] %s36
      %39 = dma.hbm_to_vmem [thread:$0]  %s1, 64, %s37, [#allocation3]
    $region9: #{lstm_forward.1} parent=1 // pred_fallthru
      _
    // Predicated region
    $region10: #{lstm_forward.1} parent=1 // pred_check
      _
    $region11: #{lstm_forward.1} parent=1 // pred_check_branch
      %41 = sbr.rel (0) target = $region13
    $region12: #{lstm_forward.1} parent=1 // pred_region
      %s43 = ssub.s32 64, 64
      %44 = vsyncadd [#allocation6], %s43
      %s46 = sshll.u32 [#allocation5], 4
      %s47 = int_to_ptr.vmem [resolvable:$true] %s46
      %49 = dma.hbm_to_vmem [thread:$0]  %s2, 64, %s47, [#allocation6]
    $region13: #{lstm_forward.1} parent=1 // pred_fallthru
      _
    // Predicated region
    $region14: #{lstm_forward.1} parent=1 // pred_check
      _
    $region15: #{lstm_forward.1} parent=1 // pred_check_branch
      %51 = sbr.rel (0) target = $region17
    $region16: #{lstm_forward.1} parent=1 // pred_region
      %s53 = ssub.s32 256, 256
      %54 = vsyncadd [#allocation6], %s53
      %s55 = sshll.u32 [#allocation7], 4
      %s56 = int_to_ptr.vmem [resolvable:$true] %s55
      %61 = dma.hbm_to_vmem [thread:$0]  %s3, 256, %s56, [#allocation6], 128, 128, 8
    $region17: #{lstm_forward.1} parent=1 // pred_fallthru
      _
    // Predicated region
    $region18: #{lstm_forward.1} parent=1 // pred_check
      _
    $region19: #{lstm_forward.1} parent=1 // pred_check_branch
      %63 = sbr.rel (0) target = $region21
    $region20: #{lstm_forward.1} parent=1 // pred_region
      _
    $region21: #{lstm_forward.1} parent=1 // pred_fallthru
      _
    // Predicated region
    $region22: #{lstm_forward.1} parent=1 // pred_check
      _
    $region23: #{lstm_forward.1} parent=1 // pred_check_branch
      %65 = sbr.rel (0) target = $region25
    $region24: #{lstm_forward.1} parent=1 // pred_region
      _
    $region25: #{lstm_forward.1} parent=1 // pred_fallthru
      _
    // Predicated region
    $region26: #{lstm_forward.1} parent=1 // pred_check
      _
    $region27: #{lstm_forward.1} parent=1 // pred_check_branch
      %67 = sbr.rel (0) target = $region29
    $region28: #{lstm_forward.1} parent=1 // pred_region
      _
    $region29: #{lstm_forward.1} parent=1 // pred_fallthru
      _
    // Predicated region
    $region30: #{lstm_forward.1} parent=1 // pred_check
      _
    $region31: #{lstm_forward.1} parent=1 // pred_check_branch
      %69 = sbr.rel (0) target = $region33
    $region32: #{lstm_forward.1} parent=1 // pred_region
      %s71 = ssub.s32 512, 512
      %72 = vsyncadd [#allocation9], %s71
      %s73 = sshll.u32 [#allocation8], 4
      %s74 = int_to_ptr.vmem [resolvable:$true] %s73
      %79 = dma.hbm_to_vmem [thread:$0]  %s7, 512, %s74, [#allocation9], 128, 128, 8
    $region33: #{lstm_forward.1} parent=1 // pred_fallthru
      _
    // Predicated region
    $region34: #{lstm_forward.1} parent=1 // pred_check
      _
    $region35: #{lstm_forward.1} parent=1 // pred_check_branch
      %81 = sbr.rel (0) target = $region37
    $region36: #{lstm_forward.1} parent=1 // pred_region
      _
    $region37: #{lstm_forward.1} parent=1 // pred_fallthru
      _
    // Predicated region
    $region38: #{lstm_forward.1} parent=1 // pred_check
      _
    $region39: #{lstm_forward.1} parent=1 // pred_check_branch
      %83 = sbr.rel (0) target = $region41
    $region40: #{lstm_forward.1} parent=1 // pred_region
      %s85 = ssub.s32 512, 512
      %86 = vsyncadd [#allocation9], %s85
      %s87 = sshll.u32 [#allocation10], 4
      %s88 = int_to_ptr.vmem [resolvable:$true] %s87
      %93 = dma.hbm_to_vmem [thread:$0]  %s9, 512, %s88, [#allocation9], 128, 128, 8
    $region41: #{lstm_forward.1} parent=1 // pred_fallthru
      _
    // Predicated region
    $region42: #{lstm_forward.1} parent=1 // pred_check
      _
    $region43: #{lstm_forward.1} parent=1 // pred_check_branch
      %95 = sbr.rel (0) target = $region45
    $region44: #{lstm_forward.1} parent=1 // pred_region
      %s97 = ssub.s32 512, 512
      %98 = vsyncadd [#allocation12], %s97
      %s99 = sshll.u32 [#allocation11], 4
      %s100 = int_to_ptr.vmem [resolvable:$true] %s99
      %105 = dma.hbm_to_vmem [thread:$0]  %s10, 512, %s100, [#allocation12], 128, 128, 8
    $region45: #{lstm_forward.1} parent=1 // pred_fallthru
      _
    // Predicated region
    $region46: #{lstm_forward.1} parent=1 // pred_check
      _
    $region47: #{lstm_forward.1} parent=1 // pred_check_branch
      %107 = sbr.rel (0) target = $region49
    $region48: #{lstm_forward.1} parent=1 // pred_region
      _
    $region49: #{lstm_forward.1} parent=1 // pred_fallthru
      _
    // Predicated region
    $region50: #{lstm_forward.1} parent=1 // pred_check
      _
    $region51: #{lstm_forward.1} parent=1 // pred_check_branch
      %109 = sbr.rel (0) target = $region53
    $region52: #{lstm_forward.1} parent=1 // pred_region
      _
    $region53: #{lstm_forward.1} parent=1 // pred_fallthru
      _
    // Predicated region
    $region54: #{lstm_forward.1} parent=1 // pred_check
      _
    $region55: #{lstm_forward.1} parent=1 // pred_check_branch
      %111 = sbr.rel (0) target = $region57
    $region56: #{lstm_forward.1} parent=1 // pred_region
      _
    $region57: #{lstm_forward.1} parent=1 // pred_fallthru
      _
    // Predicated region
    $region58: #{lstm_forward.1} parent=1 // pred_check
      _
    $region59: #{lstm_forward.1} parent=1 // pred_check_branch
      %113 = sbr.rel (0) target = $region61
    $region60: #{lstm_forward.1} parent=1 // pred_region
      %114 = dma.done [#allocation3], 64
    $region61: #{lstm_forward.1} parent=1 // pred_fallthru
      _
    // Predicated region
    $region62: #{lstm_forward.1} parent=1 // pred_check
      _
    $region63: #{lstm_forward.1} parent=1 // pred_check_branch
      %116 = sbr.rel (0) target = $region65
    $region64: #{lstm_forward.1} parent=1 // pred_region
      %117 = dma.done [#allocation6], 64
    $region65: #{lstm_forward.1} parent=1 // pred_fallthru
      _
    // Predicated region
    $region66: #{lstm_forward.1} parent=1 // pred_check
      _
    $region67: #{lstm_forward.1} parent=1 // pred_check_branch
      %119 = sbr.rel (0) target = $region69
    $region68: #{lstm_forward.1} parent=1 // pred_region
      %120 = dma.done [#allocation6], 256
    $region69: #{lstm_forward.1} parent=1 // pred_fallthru
      _
    // Predicated region
    $region70: #{lstm_forward.1} parent=1 // pred_check
      _
    $region71: #{lstm_forward.1} parent=1 // pred_check_branch
      %122 = sbr.rel (0) target = $region73
    $region72: #{lstm_forward.1} parent=1 // pred_region
      %123 = dma.done [#allocation9], 512
    $region73: #{lstm_forward.1} parent=1 // pred_fallthru
      _
    // Predicated region
    $region74: #{lstm_forward.1} parent=1 // pred_check
      _
    $region75: #{lstm_forward.1} parent=1 // pred_check_branch
      %125 = sbr.rel (0) target = $region77
    $region76: #{lstm_forward.1} parent=1 // pred_region
      %126 = dma.done [#allocation9], 512
    $region77: #{lstm_forward.1} parent=1 // pred_fallthru
      _
    // Predicated region
    $region78: #{lstm_forward.1} parent=1 // pred_check
      _
    $region79: #{lstm_forward.1} parent=1 // pred_check_branch
      %128 = sbr.rel (0) target = $region81
    $region80: #{lstm_forward.1} parent=1 // pred_region
      %129 = dma.done [#allocation12], 512
    $region81: #{lstm_forward.1} parent=1 // pred_fallthru
      _
    %v130 = vld [vmem:[#allocation2] sm:$0x7]
    %v131 = vld [vmem:[#allocation5] sm:$0x7]
    %v132 = vld [vmem:[#allocation7] sm:$0xff]
    %v133 = vld [vmem:[#allocation7 + $0x8] sm:$0xff]
    %v134 = vld [vmem:[%s6] sm:$0xff]
    %v135 = vld [vmem:[%s6 + $0x8] sm:$0xff]
    %v136 = vld [vmem:[%s6 + $0x10] sm:$0xff]
    %v137 = vld [vmem:[%s6 + $0x18] sm:$0xff]
    %v138 = vld [vmem:[#allocation10] sm:$0xff]
    %v139 = vld [vmem:[#allocation10 + $0x8] sm:$0xff]
    %v140 = vld [vmem:[#allocation10 + $0x10] sm:$0xff]
    %v141 = vld [vmem:[#allocation10 + $0x18] sm:$0xff]
    %v142 = vld [vmem:[%s4] sm:$0xff]
    %v143 = vld [vmem:[%s4 + $0x8] sm:$0xff]
    %v144 = vld [vmem:[%s4 + $0x10] sm:$0xff]
    %v145 = vld [vmem:[%s4 + $0x18] sm:$0xff]
    %v146 = vld [vmem:[#allocation8] sm:$0xff]
    %v147 = vld [vmem:[#allocation8 + $0x8] sm:$0xff]
    %v148 = vld [vmem:[#allocation8 + $0x10] sm:$0xff]
    %v149 = vld [vmem:[#allocation8 + $0x18] sm:$0xff]
    %v150 = vld [vmem:[#allocation11] sm:$0xff]
    %v151 = vld [vmem:[#allocation11 + $0x8] sm:$0xff]
    %v152 = vld [vmem:[#allocation11 + $0x10] sm:$0xff]
    %v153 = vld [vmem:[#allocation11 + $0x18] sm:$0xff]
    %v154 = vld [vmem:[%s5] sm:$0x1]
    %v155 = vld [vmem:[%s8] sm:$0x1]
    %v156 = vld [vmem:[%s11] sm:$0x1]
    %v157 = vld [vmem:[%s0] sm:$0xff]
    %v159 = vlaneseq
    %v160 = vshrl.u32 %v159, 7
    %v161 = vsub.s32 0, %v160
    %v162 = vrot.slane %v154, %v161
    %vm164 = vcmask 130048
    %v166 = vsel %vm164, %v157, 0
    %168 = vmatprep.subr.mxu0 0.0
    %169 = vmatpush1.msra.mxu0 0.0
    %170 = vmatprep.subr.mxu0 0.0
    %171 = vmatpush1.msra.mxu0 0.0
    %172 = vmatprep.subr.mxu0 0.0
    %173 = vmatpush1.msra.mxu0 0.0
    %174 = vmatprep.subr.mxu0 0.0
    %175 = vmatpush1.msra.mxu0 0.0
    %176 = vmatprep.subr.mxu0 0.0
    %177 = vmatpush1.msra.mxu0 0.0
    %178 = vmatprep.subr.mxu0 0.0
    %179 = vmatpush1.msra.mxu0 0.0
    %180 = vmatprep.subr.mxu0 0.0
    %181 = vmatpush1.msra.mxu0 0.0
    %182 = vmatprep.subr.mxu0 0.0
    %183 = vmatpush1.msra.mxu0 0.0
    %184 = vmatprep.subr.mxu0 0.0
    %185 = vmatpush1.msra.mxu0 0.0
    %186 = vmatprep.subr.mxu0 0.0
    %187 = vmatpush1.msra.mxu0 0.0
    %188 = vmatprep.subr.mxu0 0.0
    %189 = vmatpush1.msra.mxu0 0.0
    %190 = vmatprep.subr.mxu0 0.0
    %191 = vmatpush1.msra.mxu0 0.0
    %192 = vmatprep.subr.mxu0 0.0
    %193 = vmatpush1.msra.mxu0 0.0
    %194 = vmatprep.subr.mxu0 0.0
    %195 = vmatpush1.msra.mxu0 0.0
    %196 = vmatprep.subr.mxu0 0.0
    %197 = vmatpush1.msra.mxu0 %v133
    %198 = vmatprep.subr.mxu0 0.0
    %199 = vmatpush1.msra.mxu0 %v132
    %200 = vmatprep.subr.mxu0 0.0
    %201 = vmatpush2.msra.mxu0 0.0
    %202 = vmatprep.subr.mxu0 0.0
    %203 = vmatpush2.msra.mxu0 0.0
    %204 = vmatprep.subr.mxu0 0.0
    %205 = vmatpush2.msra.mxu0 0.0
    %206 = vmatprep.subr.mxu0 0.0
    %207 = vmatpush2.msra.mxu0 0.0
    %208 = vmatprep.subr.mxu0 0.0
    %209 = vmatpush2.msra.mxu0 0.0
    %210 = vmatprep.subr.mxu0 0.0
    %211 = vmatpush2.msra.mxu0 0.0
    %212 = vmatprep.subr.mxu0 0.0
    %213 = vmatpush2.msra.mxu0 0.0
    %214 = vmatprep.subr.mxu0 0.0
    %215 = vmatpush2.msra.mxu0 0.0
    %216 = vmatprep.subr.mxu0 0.0
    %217 = vmatpush2.msra.mxu0 0.0
    %218 = vmatprep.subr.mxu0 0.0
    %219 = vmatpush2.msra.mxu0 0.0
    %220 = vmatprep.subr.mxu0 0.0
    %221 = vmatpush2.msra.mxu0 0.0
    %222 = vmatprep.subr.mxu0 0.0
    %223 = vmatpush2.msra.mxu0 0.0
    %224 = vmatprep.subr.mxu0 0.0
    %225 = vmatpush2.msra.mxu0 0.0
    %226 = vmatprep.subr.mxu0 0.0
    %227 = vmatpush2.msra.mxu0 0.0
    %228 = vmatprep.subr.mxu0 0.0
    %229 = vmatpush2.msra.mxu0 0.0
    %230 = vmatprep.subr.mxu0 0.0
    %231 = vmatpush2.msra.mxu0 0.0
    %232 = vmatprep.mubr.f32.mxu0 0.0
    %233 = vmatmul.mubr.f32.gmra.mxu0 %v166
    %v234 = vpop.f32.mrf.mxu0
    %v235 = vadd.f32 %v162, %v234
    %v236 = vpop.f32.mrf.mxu0
    %237 = vdwg.mxu0
    %vm238 = vcmask 261120
    %v240 = vsel %vm238, %v130, 0
    %242 = vmatprep.subr.mxu0 0.0
    %243 = vmatpush1.msra.mxu0 0.0
    %244 = vmatprep.subr.mxu0 0.0
    %245 = vmatpush1.msra.mxu0 0.0
    %246 = vmatprep.subr.mxu0 0.0
    %247 = vmatpush1.msra.mxu0 0.0
    %248 = vmatprep.subr.mxu0 0.0
    %249 = vmatpush1.msra.mxu0 0.0
    %250 = vmatprep.subr.mxu0 0.0
    %251 = vmatpush1.msra.mxu0 0.0
    %252 = vmatprep.subr.mxu0 0.0
    %253 = vmatpush1.msra.mxu0 0.0
    %254 = vmatprep.subr.mxu0 0.0
    %255 = vmatpush1.msra.mxu0 0.0
    %256 = vmatprep.subr.mxu0 0.0
    %257 = vmatpush1.msra.mxu0 0.0
    %258 = vmatprep.subr.mxu0 0.0
    %259 = vmatpush1.msra.mxu0 0.0
    %260 = vmatprep.subr.mxu0 0.0
    %261 = vmatpush1.msra.mxu0 0.0
    %262 = vmatprep.subr.mxu0 0.0
    %263 = vmatpush1.msra.mxu0 0.0
    %264 = vmatprep.subr.mxu0 0.0
    %265 = vmatpush1.msra.mxu0 0.0
    %266 = vmatprep.subr.mxu0 0.0
    %267 = vmatpush1.msra.mxu0 %v145
    %268 = vmatprep.subr.mxu0 0.0
    %269 = vmatpush1.msra.mxu0 %v144
    %270 = vmatprep.subr.mxu0 0.0
    %271 = vmatpush1.msra.mxu0 %v143
    %272 = vmatprep.subr.mxu0 0.0
    %273 = vmatpush1.msra.mxu0 %v142
    %274 = vmatprep.subr.mxu0 0.0
    %275 = vmatpush2.msra.mxu0 0.0
    %276 = vmatprep.subr.mxu0 0.0
    %277 = vmatpush2.msra.mxu0 0.0
    %278 = vmatprep.subr.mxu0 0.0
    %279 = vmatpush2.msra.mxu0 0.0
    %280 = vmatprep.subr.mxu0 0.0
    %281 = vmatpush2.msra.mxu0 0.0
    %282 = vmatprep.subr.mxu0 0.0
    %283 = vmatpush2.msra.mxu0 0.0
    %284 = vmatprep.subr.mxu0 0.0
    %285 = vmatpush2.msra.mxu0 0.0
    %286 = vmatprep.subr.mxu0 0.0
    %287 = vmatpush2.msra.mxu0 0.0
    %288 = vmatprep.subr.mxu0 0.0
    %289 = vmatpush2.msra.mxu0 0.0
    %290 = vmatprep.subr.mxu0 0.0
    %291 = vmatpush2.msra.mxu0 0.0
    %292 = vmatprep.subr.mxu0 0.0
    %293 = vmatpush2.msra.mxu0 0.0
    %294 = vmatprep.subr.mxu0 0.0
    %295 = vmatpush2.msra.mxu0 0.0
    %296 = vmatprep.subr.mxu0 0.0
    %297 = vmatpush2.msra.mxu0 0.0
    %298 = vmatprep.subr.mxu0 0.0
    %299 = vmatpush2.msra.mxu0 0.0
    %300 = vmatprep.subr.mxu0 0.0
    %301 = vmatpush2.msra.mxu0 0.0
    %302 = vmatprep.subr.mxu0 0.0
    %303 = vmatpush2.msra.mxu0 0.0
    %304 = vmatprep.subr.mxu0 0.0
    %305 = vmatpush2.msra.mxu0 0.0
    %306 = vmatprep.mubr.f32.mxu0 0.0
    %307 = vmatmul.mubr.f32.gmra.mxu0 %v240
    %v308 = vpop.f32.mrf.mxu0
    %v309 = vadd.f32 0.0, %v308
    %v310 = vpop.f32.mrf.mxu0
    %311 = vdwg.mxu0
    %v312 = vadd.f32 %v235, %v309
    %v313 = vxor.u32 %v312, 2147483648
    %v314 = vmul.f32 %v313, 1.442695
    %v315 = vpow.pop %v314
    %v316 = vadd.f32 %v315, 1.0
    %v317 = vrcp.pop %v316
    %v318 = vmul.f32 1.0, %v317
    %v319 = vtanh.pop %v312
    %321 = vrot.lane.b32.xlu0 %v131, 32
    %v322 = vpop.permute.xlu0 %321
    %v324 = vmul.f32 %v318, %v322
    %326 = vrot.lane.b32.xlu0 %v319, 64
    %v327 = vpop.permute.xlu0 %326
    %v329 = vmul.f32 %v318, %v327
    %331 = vrot.lane.b32.xlu0 %v329, 32
    %v332 = vpop.permute.xlu0 %331
    %v334 = vadd.f32 %v324, %v332
    %v335 = vtanh.pop %v334
    %337 = vrot.lane.b32.xlu0 %v335, 64
    %v338 = vpop.permute.xlu0 %337
    %v340 = vmul.f32 %v318, %v338
    %342 = vrot.lane.b32.xlu0 %v340, 32
    %v343 = vpop.permute.xlu0 %342
    %v344 = vsel %vm238, %v343, 0
    %346 = vmatprep.subr.mxu0 0.0
    %347 = vmatpush1.msra.mxu0 0.0
    %348 = vmatprep.subr.mxu0 0.0
    %349 = vmatpush1.msra.mxu0 0.0
    %350 = vmatprep.subr.mxu0 0.0
    %351 = vmatpush1.msra.mxu0 0.0
    %352 = vmatprep.subr.mxu0 0.0
    %353 = vmatpush1.msra.mxu0 0.0
    %354 = vmatprep.subr.mxu0 0.0
    %355 = vmatpush1.msra.mxu0 0.0
    %356 = vmatprep.subr.mxu0 0.0
    %357 = vmatpush1.msra.mxu0 0.0
    %358 = vmatprep.subr.mxu0 0.0
    %359 = vmatpush1.msra.mxu0 0.0
    %360 = vmatprep.subr.mxu0 0.0
    %361 = vmatpush1.msra.mxu0 0.0
    %362 = vmatprep.subr.mxu0 0.0
    %363 = vmatpush1.msra.mxu0 0.0
    %364 = vmatprep.subr.mxu0 0.0
    %365 = vmatpush1.msra.mxu0 0.0
    %366 = vmatprep.subr.mxu0 0.0
    %367 = vmatpush1.msra.mxu0 0.0
    %368 = vmatprep.subr.mxu0 0.0
    %369 = vmatpush1.msra.mxu0 0.0
    %370 = vmatprep.subr.mxu0 0.0
    %371 = vmatpush1.msra.mxu0 %v145
    %372 = vmatprep.subr.mxu0 0.0
    %373 = vmatpush1.msra.mxu0 %v144
    %374 = vmatprep.subr.mxu0 0.0
    %375 = vmatpush1.msra.mxu0 %v143
    %376 = vmatprep.subr.mxu0 0.0
    %377 = vmatpush1.msra.mxu0 %v142
    %378 = vmatprep.subr.mxu0 0.0
    %379 = vmatpush2.msra.mxu0 0.0
    %380 = vmatprep.subr.mxu0 0.0
    %381 = vmatpush2.msra.mxu0 0.0
    %382 = vmatprep.subr.mxu0 0.0
    %383 = vmatpush2.msra.mxu0 0.0
    %384 = vmatprep.subr.mxu0 0.0
    %385 = vmatpush2.msra.mxu0 0.0
    %386 = vmatprep.subr.mxu0 0.0
    %387 = vmatpush2.msra.mxu0 0.0
    %388 = vmatprep.subr.mxu0 0.0
    %389 = vmatpush2.msra.mxu0 0.0
    %390 = vmatprep.subr.mxu0 0.0
    %391 = vmatpush2.msra.mxu0 0.0
    %392 = vmatprep.subr.mxu0 0.0
    %393 = vmatpush2.msra.mxu0 0.0
    %394 = vmatprep.subr.mxu0 0.0
    %395 = vmatpush2.msra.mxu0 0.0
    %396 = vmatprep.subr.mxu0 0.0
    %397 = vmatpush2.msra.mxu0 0.0
    %398 = vmatprep.subr.mxu0 0.0
    %399 = vmatpush2.msra.mxu0 0.0
    %400 = vmatprep.subr.mxu0 0.0
    %401 = vmatpush2.msra.mxu0 0.0
    %402 = vmatprep.subr.mxu0 0.0
    %403 = vmatpush2.msra.mxu0 0.0
    %404 = vmatprep.subr.mxu0 0.0
    %405 = vmatpush2.msra.mxu0 0.0
    %406 = vmatprep.subr.mxu0 0.0
    %407 = vmatpush2.msra.mxu0 0.0
    %408 = vmatprep.subr.mxu0 0.0
    %409 = vmatpush2.msra.mxu0 0.0
    %410 = vmatprep.mubr.f32.mxu0 0.0
    %411 = vmatmul.mubr.f32.gmra.mxu0 %v344
    %v412 = vpop.f32.mrf.mxu0
    %v413 = vadd.f32 0.0, %v412
    %v414 = vpop.f32.mrf.mxu0
    %415 = vdwg.mxu0
    %v417 = vrot.slane %v413, 7
    %v419 = vadd.f32 %v235, %v417
    %v420 = vxor.u32 %v419, 2147483648
    %v421 = vmul.f32 %v420, 1.442695
    %v422 = vpow.pop %v421
    %v423 = vadd.f32 %v422, 1.0
    %v424 = vrcp.pop %v423
    %v425 = vmul.f32 1.0, %v424
    %v426 = vtanh.pop %v419
    %v428 = vrot.slane %v334, 7
    %v430 = vmul.f32 %v425, %v428
    %432 = vrot.lane.b32.xlu0 %v426, 64
    %v433 = vpop.permute.xlu0 %432
    %v435 = vmul.f32 %v425, %v433
    %437 = vrot.lane.b32.xlu0 %v435, 32
    %v438 = vpop.permute.xlu0 %437
    %v440 = vadd.f32 %v430, %v438
    %v441 = vtanh.pop %v440
    %443 = vrot.lane.b32.xlu0 %v441, 64
    %v444 = vpop.permute.xlu0 %443
    %v446 = vmul.f32 %v425, %v444
    %v447 = vrot.slane %v130, 1
    %v448 = vsel %vm238, %v447, 0
    %450 = vmatprep.subr.mxu0 0.0
    %451 = vmatpush1.msra.mxu0 0.0
    %452 = vmatprep.subr.mxu0 0.0
    %453 = vmatpush1.msra.mxu0 0.0
    %454 = vmatprep.subr.mxu0 0.0
    %455 = vmatpush1.msra.mxu0 0.0
    %456 = vmatprep.subr.mxu0 0.0
    %457 = vmatpush1.msra.mxu0 0.0
    %458 = vmatprep.subr.mxu0 0.0
    %459 = vmatpush1.msra.mxu0 0.0
    %460 = vmatprep.subr.mxu0 0.0
    %461 = vmatpush1.msra.mxu0 0.0
    %462 = vmatprep.subr.mxu0 0.0
    %463 = vmatpush1.msra.mxu0 0.0
    %464 = vmatprep.subr.mxu0 0.0
    %465 = vmatpush1.msra.mxu0 0.0
    %466 = vmatprep.subr.mxu0 0.0
    %467 = vmatpush1.msra.mxu0 0.0
    %468 = vmatprep.subr.mxu0 0.0
    %469 = vmatpush1.msra.mxu0 0.0
    %470 = vmatprep.subr.mxu0 0.0
    %471 = vmatpush1.msra.mxu0 0.0
    %472 = vmatprep.subr.mxu0 0.0
    %473 = vmatpush1.msra.mxu0 0.0
    %474 = vmatprep.subr.mxu0 0.0
    %475 = vmatpush1.msra.mxu0 %v149
    %476 = vmatprep.subr.mxu0 0.0
    %477 = vmatpush1.msra.mxu0 %v148
    %478 = vmatprep.subr.mxu0 0.0
    %479 = vmatpush1.msra.mxu0 %v147
    %480 = vmatprep.subr.mxu0 0.0
    %481 = vmatpush1.msra.mxu0 %v146
    %482 = vmatprep.subr.mxu0 0.0
    %483 = vmatpush2.msra.mxu0 0.0
    %484 = vmatprep.subr.mxu0 0.0
    %485 = vmatpush2.msra.mxu0 0.0
    %486 = vmatprep.subr.mxu0 0.0
    %487 = vmatpush2.msra.mxu0 0.0
    %488 = vmatprep.subr.mxu0 0.0
    %489 = vmatpush2.msra.mxu0 0.0
    %490 = vmatprep.subr.mxu0 0.0
    %491 = vmatpush2.msra.mxu0 0.0
    %492 = vmatprep.subr.mxu0 0.0
    %493 = vmatpush2.msra.mxu0 0.0
    %494 = vmatprep.subr.mxu0 0.0
    %495 = vmatpush2.msra.mxu0 0.0
    %496 = vmatprep.subr.mxu0 0.0
    %497 = vmatpush2.msra.mxu0 0.0
    %498 = vmatprep.subr.mxu0 0.0
    %499 = vmatpush2.msra.mxu0 0.0
    %500 = vmatprep.subr.mxu0 0.0
    %501 = vmatpush2.msra.mxu0 0.0
    %502 = vmatprep.subr.mxu0 0.0
    %503 = vmatpush2.msra.mxu0 0.0
    %504 = vmatprep.subr.mxu0 0.0
    %505 = vmatpush2.msra.mxu0 0.0
    %506 = vmatprep.subr.mxu0 0.0
    %507 = vmatpush2.msra.mxu0 0.0
    %508 = vmatprep.subr.mxu0 0.0
    %509 = vmatpush2.msra.mxu0 0.0
    %510 = vmatprep.subr.mxu0 0.0
    %511 = vmatpush2.msra.mxu0 0.0
    %512 = vmatprep.subr.mxu0 0.0
    %513 = vmatpush2.msra.mxu0 0.0
    %514 = vmatprep.mubr.f32.mxu0 0.0
    %515 = vmatmul.mubr.f32.gmra.mxu0 %v448
    %v516 = vpop.f32.mrf.mxu0
    %v517 = vadd.f32 0.0, %v516
    %v518 = vpop.f32.mrf.mxu0
    %519 = vdwg.mxu0
    %520 = vmatprep.subr.mxu0 0.0
    %521 = vmatpush1.msra.mxu0 0.0
    %522 = vmatprep.subr.mxu0 0.0
    %523 = vmatpush1.msra.mxu0 0.0
    %524 = vmatprep.subr.mxu0 0.0
    %525 = vmatpush1.msra.mxu0 0.0
    %526 = vmatprep.subr.mxu0 0.0
    %527 = vmatpush1.msra.mxu0 0.0
    %528 = vmatprep.subr.mxu0 0.0
    %529 = vmatpush1.msra.mxu0 0.0
    %530 = vmatprep.subr.mxu0 0.0
    %531 = vmatpush1.msra.mxu0 0.0
    %532 = vmatprep.subr.mxu0 0.0
    %533 = vmatpush1.msra.mxu0 0.0
    %534 = vmatprep.subr.mxu0 0.0
    %535 = vmatpush1.msra.mxu0 0.0
    %536 = vmatprep.subr.mxu0 0.0
    %537 = vmatpush1.msra.mxu0 0.0
    %538 = vmatprep.subr.mxu0 0.0
    %539 = vmatpush1.msra.mxu0 0.0
    %540 = vmatprep.subr.mxu0 0.0
    %541 = vmatpush1.msra.mxu0 0.0
    %542 = vmatprep.subr.mxu0 0.0
    %543 = vmatpush1.msra.mxu0 0.0
    %544 = vmatprep.subr.mxu0 0.0
    %545 = vmatpush1.msra.mxu0 %v137
    %546 = vmatprep.subr.mxu0 0.0
    %547 = vmatpush1.msra.mxu0 %v136
    %548 = vmatprep.subr.mxu0 0.0
    %549 = vmatpush1.msra.mxu0 %v135
    %550 = vmatprep.subr.mxu0 0.0
    %551 = vmatpush1.msra.mxu0 %v134
    %552 = vmatprep.subr.mxu0 0.0
    %553 = vmatpush2.msra.mxu0 0.0
    %554 = vmatprep.subr.mxu0 0.0
    %555 = vmatpush2.msra.mxu0 0.0
    %556 = vmatprep.subr.mxu0 0.0
    %557 = vmatpush2.msra.mxu0 0.0
    %558 = vmatprep.subr.mxu0 0.0
    %559 = vmatpush2.msra.mxu0 0.0
    %560 = vmatprep.subr.mxu0 0.0
    %561 = vmatpush2.msra.mxu0 0.0
    %562 = vmatprep.subr.mxu0 0.0
    %563 = vmatpush2.msra.mxu0 0.0
    %564 = vmatprep.subr.mxu0 0.0
    %565 = vmatpush2.msra.mxu0 0.0
    %566 = vmatprep.subr.mxu0 0.0
    %567 = vmatpush2.msra.mxu0 0.0
    %568 = vmatprep.subr.mxu0 0.0
    %569 = vmatpush2.msra.mxu0 0.0
    %570 = vmatprep.subr.mxu0 0.0
    %571 = vmatpush2.msra.mxu0 0.0
    %572 = vmatprep.subr.mxu0 0.0
    %573 = vmatpush2.msra.mxu0 0.0
    %574 = vmatprep.subr.mxu0 0.0
    %575 = vmatpush2.msra.mxu0 0.0
    %576 = vmatprep.subr.mxu0 0.0
    %577 = vmatpush2.msra.mxu0 0.0
    %578 = vmatprep.subr.mxu0 0.0
    %579 = vmatpush2.msra.mxu0 0.0
    %580 = vmatprep.subr.mxu0 0.0
    %581 = vmatpush2.msra.mxu0 0.0
    %582 = vmatprep.subr.mxu0 0.0
    %583 = vmatpush2.msra.mxu0 0.0
    %584 = vmatprep.mubr.f32.mxu0 0.0
    %585 = vmatmul.mubr.f32.gmra.mxu0 %v344
    %v586 = vpop.f32.mrf.mxu0
    %v587 = vadd.f32 %v517, %v586
    %v588 = vpop.f32.mrf.mxu0
    %589 = vdwg.mxu0
    %v590 = vadd.f32 %v587, %v155
    %v591 = vxor.u32 %v590, 2147483648
    %v592 = vmul.f32 %v591, 1.442695
    %v593 = vpow.pop %v592
    %v594 = vadd.f32 %v593, 1.0
    %v595 = vrcp.pop %v594
    %v596 = vmul.f32 1.0, %v595
    %v597 = vtanh.pop %v590
    %v598 = vrot.slane %v131, 1
    %599 = vrot.lane.b32.xlu0 %v598, 32
    %v600 = vpop.permute.xlu0 %599
    %v602 = vmul.f32 %v596, %v600
    %604 = vrot.lane.b32.xlu0 %v597, 64
    %v605 = vpop.permute.xlu0 %604
    %v607 = vmul.f32 %v596, %v605
    %609 = vrot.lane.b32.xlu0 %v607, 32
    %v610 = vpop.permute.xlu0 %609
    %v612 = vadd.f32 %v602, %v610
    %v613 = vtanh.pop %v612
    %615 = vrot.lane.b32.xlu0 %v613, 64
    %v616 = vpop.permute.xlu0 %615
    %v618 = vmul.f32 %v596, %v616
    %v620 = vrot.slane %v446, 1
    %621 = vrot.lane.b32.xlu0 %v620, 32
    %v622 = vpop.permute.xlu0 %621
    %v623 = vsel %vm238, %v622, 0
    %625 = vmatprep.subr.mxu0 0.0
    %626 = vmatpush1.msra.mxu0 0.0
    %627 = vmatprep.subr.mxu0 0.0
    %628 = vmatpush1.msra.mxu0 0.0
    %629 = vmatprep.subr.mxu0 0.0
    %630 = vmatpush1.msra.mxu0 0.0
    %631 = vmatprep.subr.mxu0 0.0
    %632 = vmatpush1.msra.mxu0 0.0
    %633 = vmatprep.subr.mxu0 0.0
    %634 = vmatpush1.msra.mxu0 0.0
    %635 = vmatprep.subr.mxu0 0.0
    %636 = vmatpush1.msra.mxu0 0.0
    %637 = vmatprep.subr.mxu0 0.0
    %638 = vmatpush1.msra.mxu0 0.0
    %639 = vmatprep.subr.mxu0 0.0
    %640 = vmatpush1.msra.mxu0 0.0
    %641 = vmatprep.subr.mxu0 0.0
    %642 = vmatpush1.msra.mxu0 0.0
    %643 = vmatprep.subr.mxu0 0.0
    %644 = vmatpush1.msra.mxu0 0.0
    %645 = vmatprep.subr.mxu0 0.0
    %646 = vmatpush1.msra.mxu0 0.0
    %647 = vmatprep.subr.mxu0 0.0
    %648 = vmatpush1.msra.mxu0 0.0
    %649 = vmatprep.subr.mxu0 0.0
    %650 = vmatpush1.msra.mxu0 %v145
    %651 = vmatprep.subr.mxu0 0.0
    %652 = vmatpush1.msra.mxu0 %v144
    %653 = vmatprep.subr.mxu0 0.0
    %654 = vmatpush1.msra.mxu0 %v143
    %655 = vmatprep.subr.mxu0 0.0
    %656 = vmatpush1.msra.mxu0 %v142
    %657 = vmatprep.subr.mxu0 0.0
    %658 = vmatpush2.msra.mxu0 0.0
    %659 = vmatprep.subr.mxu0 0.0
    %660 = vmatpush2.msra.mxu0 0.0
    %661 = vmatprep.subr.mxu0 0.0
    %662 = vmatpush2.msra.mxu0 0.0
    %663 = vmatprep.subr.mxu0 0.0
    %664 = vmatpush2.msra.mxu0 0.0
    %665 = vmatprep.subr.mxu0 0.0
    %666 = vmatpush2.msra.mxu0 0.0
    %667 = vmatprep.subr.mxu0 0.0
    %668 = vmatpush2.msra.mxu0 0.0
    %669 = vmatprep.subr.mxu0 0.0
    %670 = vmatpush2.msra.mxu0 0.0
    %671 = vmatprep.subr.mxu0 0.0
    %672 = vmatpush2.msra.mxu0 0.0
    %673 = vmatprep.subr.mxu0 0.0
    %674 = vmatpush2.msra.mxu0 0.0
    %675 = vmatprep.subr.mxu0 0.0
    %676 = vmatpush2.msra.mxu0 0.0
    %677 = vmatprep.subr.mxu0 0.0
    %678 = vmatpush2.msra.mxu0 0.0
    %679 = vmatprep.subr.mxu0 0.0
    %680 = vmatpush2.msra.mxu0 0.0
    %681 = vmatprep.subr.mxu0 0.0
    %682 = vmatpush2.msra.mxu0 0.0
    %683 = vmatprep.subr.mxu0 0.0
    %684 = vmatpush2.msra.mxu0 0.0
    %685 = vmatprep.subr.mxu0 0.0
    %686 = vmatpush2.msra.mxu0 0.0
    %687 = vmatprep.subr.mxu0 0.0
    %688 = vmatpush2.msra.mxu0 0.0
    %689 = vmatprep.mubr.f32.mxu0 0.0
    %690 = vmatmul.mubr.f32.gmra.mxu0 %v623
    %v691 = vpop.f32.mrf.mxu0
    %v692 = vadd.f32 0.0, %v691
    %v693 = vpop.f32.mrf.mxu0
    %694 = vdwg.mxu0
    %v696 = vrot.slane %v692, 6
    %v698 = vadd.f32 %v235, %v696
    %v699 = vxor.u32 %v698, 2147483648
    %v700 = vmul.f32 %v699, 1.442695
    %v701 = vpow.pop %v700
    %v702 = vadd.f32 %v701, 1.0
    %v703 = vrcp.pop %v702
    %v704 = vmul.f32 1.0, %v703
    %v705 = vtanh.pop %v698
    %v707 = vrot.slane %v440, 7
    %v709 = vmul.f32 %v704, %v707
    %711 = vrot.lane.b32.xlu0 %v705, 64
    %v712 = vpop.permute.xlu0 %711
    %v714 = vmul.f32 %v704, %v712
    %716 = vrot.lane.b32.xlu0 %v714, 32
    %v717 = vpop.permute.xlu0 %716
    %v719 = vadd.f32 %v709, %v717
    %v720 = vtanh.pop %v719
    %722 = vrot.lane.b32.xlu0 %v720, 64
    %v723 = vpop.permute.xlu0 %722
    %v725 = vmul.f32 %v704, %v723
    %727 = vrot.lane.b32.xlu0 %v618, 32
    %v728 = vpop.permute.xlu0 %727
    %v729 = vsel %vm238, %v728, 0
    %731 = vmatprep.subr.mxu0 0.0
    %732 = vmatpush1.msra.mxu0 0.0
    %733 = vmatprep.subr.mxu0 0.0
    %734 = vmatpush1.msra.mxu0 0.0
    %735 = vmatprep.subr.mxu0 0.0
    %736 = vmatpush1.msra.mxu0 0.0
    %737 = vmatprep.subr.mxu0 0.0
    %738 = vmatpush1.msra.mxu0 0.0
    %739 = vmatprep.subr.mxu0 0.0
    %740 = vmatpush1.msra.mxu0 0.0
    %741 = vmatprep.subr.mxu0 0.0
    %742 = vmatpush1.msra.mxu0 0.0
    %743 = vmatprep.subr.mxu0 0.0
    %744 = vmatpush1.msra.mxu0 0.0
    %745 = vmatprep.subr.mxu0 0.0
    %746 = vmatpush1.msra.mxu0 0.0
    %747 = vmatprep.subr.mxu0 0.0
    %748 = vmatpush1.msra.mxu0 0.0
    %749 = vmatprep.subr.mxu0 0.0
    %750 = vmatpush1.msra.mxu0 0.0
    %751 = vmatprep.subr.mxu0 0.0
    %752 = vmatpush1.msra.mxu0 0.0
    %753 = vmatprep.subr.mxu0 0.0
    %754 = vmatpush1.msra.mxu0 0.0
    %755 = vmatprep.subr.mxu0 0.0
    %756 = vmatpush1.msra.mxu0 %v149
    %757 = vmatprep.subr.mxu0 0.0
    %758 = vmatpush1.msra.mxu0 %v148
    %759 = vmatprep.subr.mxu0 0.0
    %760 = vmatpush1.msra.mxu0 %v147
    %761 = vmatprep.subr.mxu0 0.0
    %762 = vmatpush1.msra.mxu0 %v146
    %763 = vmatprep.subr.mxu0 0.0
    %764 = vmatpush2.msra.mxu0 0.0
    %765 = vmatprep.subr.mxu0 0.0
    %766 = vmatpush2.msra.mxu0 0.0
    %767 = vmatprep.subr.mxu0 0.0
    %768 = vmatpush2.msra.mxu0 0.0
    %769 = vmatprep.subr.mxu0 0.0
    %770 = vmatpush2.msra.mxu0 0.0
    %771 = vmatprep.subr.mxu0 0.0
    %772 = vmatpush2.msra.mxu0 0.0
    %773 = vmatprep.subr.mxu0 0.0
    %774 = vmatpush2.msra.mxu0 0.0
    %775 = vmatprep.subr.mxu0 0.0
    %776 = vmatpush2.msra.mxu0 0.0
    %777 = vmatprep.subr.mxu0 0.0
    %778 = vmatpush2.msra.mxu0 0.0
    %779 = vmatprep.subr.mxu0 0.0
    %780 = vmatpush2.msra.mxu0 0.0
    %781 = vmatprep.subr.mxu0 0.0
    %782 = vmatpush2.msra.mxu0 0.0
    %783 = vmatprep.subr.mxu0 0.0
    %784 = vmatpush2.msra.mxu0 0.0
    %785 = vmatprep.subr.mxu0 0.0
    %786 = vmatpush2.msra.mxu0 0.0
    %787 = vmatprep.subr.mxu0 0.0
    %788 = vmatpush2.msra.mxu0 0.0
    %789 = vmatprep.subr.mxu0 0.0
    %790 = vmatpush2.msra.mxu0 0.0
    %791 = vmatprep.subr.mxu0 0.0
    %792 = vmatpush2.msra.mxu0 0.0
    %793 = vmatprep.subr.mxu0 0.0
    %794 = vmatpush2.msra.mxu0 0.0
    %795 = vmatprep.mubr.f32.mxu0 0.0
    %796 = vmatmul.mubr.f32.gmra.mxu0 %v729
    %v797 = vpop.f32.mrf.mxu0
    %v798 = vadd.f32 0.0, %v797
    %v799 = vpop.f32.mrf.mxu0
    %800 = vdwg.mxu0
    %801 = vmatprep.subr.mxu0 0.0
    %802 = vmatpush1.msra.mxu0 0.0
    %803 = vmatprep.subr.mxu0 0.0
    %804 = vmatpush1.msra.mxu0 0.0
    %805 = vmatprep.subr.mxu0 0.0
    %806 = vmatpush1.msra.mxu0 0.0
    %807 = vmatprep.subr.mxu0 0.0
    %808 = vmatpush1.msra.mxu0 0.0
    %809 = vmatprep.subr.mxu0 0.0
    %810 = vmatpush1.msra.mxu0 0.0
    %811 = vmatprep.subr.mxu0 0.0
    %812 = vmatpush1.msra.mxu0 0.0
    %813 = vmatprep.subr.mxu0 0.0
    %814 = vmatpush1.msra.mxu0 0.0
    %815 = vmatprep.subr.mxu0 0.0
    %816 = vmatpush1.msra.mxu0 0.0
    %817 = vmatprep.subr.mxu0 0.0
    %818 = vmatpush1.msra.mxu0 0.0
    %819 = vmatprep.subr.mxu0 0.0
    %820 = vmatpush1.msra.mxu0 0.0
    %821 = vmatprep.subr.mxu0 0.0
    %822 = vmatpush1.msra.mxu0 0.0
    %823 = vmatprep.subr.mxu0 0.0
    %824 = vmatpush1.msra.mxu0 0.0
    %825 = vmatprep.subr.mxu0 0.0
    %826 = vmatpush1.msra.mxu0 %v137
    %827 = vmatprep.subr.mxu0 0.0
    %828 = vmatpush1.msra.mxu0 %v136
    %829 = vmatprep.subr.mxu0 0.0
    %830 = vmatpush1.msra.mxu0 %v135
    %831 = vmatprep.subr.mxu0 0.0
    %832 = vmatpush1.msra.mxu0 %v134
    %833 = vmatprep.subr.mxu0 0.0
    %834 = vmatpush2.msra.mxu0 0.0
    %835 = vmatprep.subr.mxu0 0.0
    %836 = vmatpush2.msra.mxu0 0.0
    %837 = vmatprep.subr.mxu0 0.0
    %838 = vmatpush2.msra.mxu0 0.0
    %839 = vmatprep.subr.mxu0 0.0
    %840 = vmatpush2.msra.mxu0 0.0
    %841 = vmatprep.subr.mxu0 0.0
    %842 = vmatpush2.msra.mxu0 0.0
    %843 = vmatprep.subr.mxu0 0.0
    %844 = vmatpush2.msra.mxu0 0.0
    %845 = vmatprep.subr.mxu0 0.0
    %846 = vmatpush2.msra.mxu0 0.0
    %847 = vmatprep.subr.mxu0 0.0
    %848 = vmatpush2.msra.mxu0 0.0
    %849 = vmatprep.subr.mxu0 0.0
    %850 = vmatpush2.msra.mxu0 0.0
    %851 = vmatprep.subr.mxu0 0.0
    %852 = vmatpush2.msra.mxu0 0.0
    %853 = vmatprep.subr.mxu0 0.0
    %854 = vmatpush2.msra.mxu0 0.0
    %855 = vmatprep.subr.mxu0 0.0
    %856 = vmatpush2.msra.mxu0 0.0
    %857 = vmatprep.subr.mxu0 0.0
    %858 = vmatpush2.msra.mxu0 0.0
    %859 = vmatprep.subr.mxu0 0.0
    %860 = vmatpush2.msra.mxu0 0.0
    %861 = vmatprep.subr.mxu0 0.0
    %862 = vmatpush2.msra.mxu0 0.0
    %863 = vmatprep.subr.mxu0 0.0
    %864 = vmatpush2.msra.mxu0 0.0
    %865 = vmatprep.mubr.f32.mxu0 0.0
    %866 = vmatmul.mubr.f32.gmra.mxu0 %v623
    %v867 = vpop.f32.mrf.mxu0
    %v868 = vadd.f32 %v798, %v867
    %v869 = vpop.f32.mrf.mxu0
    %870 = vdwg.mxu0
    %v871 = vadd.f32 %v868, %v155
    %v872 = vxor.u32 %v871, 2147483648
    %v873 = vmul.f32 %v872, 1.442695
    %v874 = vpow.pop %v873
    %v875 = vadd.f32 %v874, 1.0
    %v876 = vrcp.pop %v875
    %v877 = vmul.f32 1.0, %v876
    %v878 = vtanh.pop %v871
    %v879 = vmul.f32 %v877, %v612
    %881 = vrot.lane.b32.xlu0 %v878, 64
    %v882 = vpop.permute.xlu0 %881
    %v884 = vmul.f32 %v877, %v882
    %886 = vrot.lane.b32.xlu0 %v884, 32
    %v887 = vpop.permute.xlu0 %886
    %v889 = vadd.f32 %v879, %v887
    %v890 = vtanh.pop %v889
    %892 = vrot.lane.b32.xlu0 %v890, 64
    %v893 = vpop.permute.xlu0 %892
    %v895 = vmul.f32 %v877, %v893
    %v896 = vrot.slane %v130, 2
    %v897 = vsel %vm238, %v896, 0
    %899 = vmatprep.subr.mxu0 0.0
    %900 = vmatpush1.msra.mxu0 0.0
    %901 = vmatprep.subr.mxu0 0.0
    %902 = vmatpush1.msra.mxu0 0.0
    %903 = vmatprep.subr.mxu0 0.0
    %904 = vmatpush1.msra.mxu0 0.0
    %905 = vmatprep.subr.mxu0 0.0
    %906 = vmatpush1.msra.mxu0 0.0
    %907 = vmatprep.subr.mxu0 0.0
    %908 = vmatpush1.msra.mxu0 0.0
    %909 = vmatprep.subr.mxu0 0.0
    %910 = vmatpush1.msra.mxu0 0.0
    %911 = vmatprep.subr.mxu0 0.0
    %912 = vmatpush1.msra.mxu0 0.0
    %913 = vmatprep.subr.mxu0 0.0
    %914 = vmatpush1.msra.mxu0 0.0
    %915 = vmatprep.subr.mxu0 0.0
    %916 = vmatpush1.msra.mxu0 0.0
    %917 = vmatprep.subr.mxu0 0.0
    %918 = vmatpush1.msra.mxu0 0.0
    %919 = vmatprep.subr.mxu0 0.0
    %920 = vmatpush1.msra.mxu0 0.0
    %921 = vmatprep.subr.mxu0 0.0
    %922 = vmatpush1.msra.mxu0 0.0
    %923 = vmatprep.subr.mxu0 0.0
    %924 = vmatpush1.msra.mxu0 %v153
    %925 = vmatprep.subr.mxu0 0.0
    %926 = vmatpush1.msra.mxu0 %v152
    %927 = vmatprep.subr.mxu0 0.0
    %928 = vmatpush1.msra.mxu0 %v151
    %929 = vmatprep.subr.mxu0 0.0
    %930 = vmatpush1.msra.mxu0 %v150
    %931 = vmatprep.subr.mxu0 0.0
    %932 = vmatpush2.msra.mxu0 0.0
    %933 = vmatprep.subr.mxu0 0.0
    %934 = vmatpush2.msra.mxu0 0.0
    %935 = vmatprep.subr.mxu0 0.0
    %936 = vmatpush2.msra.mxu0 0.0
    %937 = vmatprep.subr.mxu0 0.0
    %938 = vmatpush2.msra.mxu0 0.0
    %939 = vmatprep.subr.mxu0 0.0
    %940 = vmatpush2.msra.mxu0 0.0
    %941 = vmatprep.subr.mxu0 0.0
    %942 = vmatpush2.msra.mxu0 0.0
    %943 = vmatprep.subr.mxu0 0.0
    %944 = vmatpush2.msra.mxu0 0.0
    %945 = vmatprep.subr.mxu0 0.0
    %946 = vmatpush2.msra.mxu0 0.0
    %947 = vmatprep.subr.mxu0 0.0
    %948 = vmatpush2.msra.mxu0 0.0
    %949 = vmatprep.subr.mxu0 0.0
    %950 = vmatpush2.msra.mxu0 0.0
    %951 = vmatprep.subr.mxu0 0.0
    %952 = vmatpush2.msra.mxu0 0.0
    %953 = vmatprep.subr.mxu0 0.0
    %954 = vmatpush2.msra.mxu0 0.0
    %955 = vmatprep.subr.mxu0 0.0
    %956 = vmatpush2.msra.mxu0 0.0
    %957 = vmatprep.subr.mxu0 0.0
    %958 = vmatpush2.msra.mxu0 0.0
    %959 = vmatprep.subr.mxu0 0.0
    %960 = vmatpush2.msra.mxu0 0.0
    %961 = vmatprep.subr.mxu0 0.0
    %962 = vmatpush2.msra.mxu0 0.0
    %963 = vmatprep.mubr.f32.mxu0 0.0
    %964 = vmatmul.mubr.f32.gmra.mxu0 %v897
    %v965 = vpop.f32.mrf.mxu0
    %v966 = vadd.f32 0.0, %v965
    %v967 = vpop.f32.mrf.mxu0
    %968 = vdwg.mxu0
    %969 = vmatprep.subr.mxu0 0.0
    %970 = vmatpush1.msra.mxu0 0.0
    %971 = vmatprep.subr.mxu0 0.0
    %972 = vmatpush1.msra.mxu0 0.0
    %973 = vmatprep.subr.mxu0 0.0
    %974 = vmatpush1.msra.mxu0 0.0
    %975 = vmatprep.subr.mxu0 0.0
    %976 = vmatpush1.msra.mxu0 0.0
    %977 = vmatprep.subr.mxu0 0.0
    %978 = vmatpush1.msra.mxu0 0.0
    %979 = vmatprep.subr.mxu0 0.0
    %980 = vmatpush1.msra.mxu0 0.0
    %981 = vmatprep.subr.mxu0 0.0
    %982 = vmatpush1.msra.mxu0 0.0
    %983 = vmatprep.subr.mxu0 0.0
    %984 = vmatpush1.msra.mxu0 0.0
    %985 = vmatprep.subr.mxu0 0.0
    %986 = vmatpush1.msra.mxu0 0.0
    %987 = vmatprep.subr.mxu0 0.0
    %988 = vmatpush1.msra.mxu0 0.0
    %989 = vmatprep.subr.mxu0 0.0
    %990 = vmatpush1.msra.mxu0 0.0
    %991 = vmatprep.subr.mxu0 0.0
    %992 = vmatpush1.msra.mxu0 0.0
    %993 = vmatprep.subr.mxu0 0.0
    %994 = vmatpush1.msra.mxu0 %v141
    %995 = vmatprep.subr.mxu0 0.0
    %996 = vmatpush1.msra.mxu0 %v140
    %997 = vmatprep.subr.mxu0 0.0
    %998 = vmatpush1.msra.mxu0 %v139
    %999 = vmatprep.subr.mxu0 0.0
    %1000 = vmatpush1.msra.mxu0 %v138
    %1001 = vmatprep.subr.mxu0 0.0
    %1002 = vmatpush2.msra.mxu0 0.0
    %1003 = vmatprep.subr.mxu0 0.0
    %1004 = vmatpush2.msra.mxu0 0.0
    %1005 = vmatprep.subr.mxu0 0.0
    %1006 = vmatpush2.msra.mxu0 0.0
    %1007 = vmatprep.subr.mxu0 0.0
    %1008 = vmatpush2.msra.mxu0 0.0
    %1009 = vmatprep.subr.mxu0 0.0
    %1010 = vmatpush2.msra.mxu0 0.0
    %1011 = vmatprep.subr.mxu0 0.0
    %1012 = vmatpush2.msra.mxu0 0.0
    %1013 = vmatprep.subr.mxu0 0.0
    %1014 = vmatpush2.msra.mxu0 0.0
    %1015 = vmatprep.subr.mxu0 0.0
    %1016 = vmatpush2.msra.mxu0 0.0
    %1017 = vmatprep.subr.mxu0 0.0
    %1018 = vmatpush2.msra.mxu0 0.0
    %1019 = vmatprep.subr.mxu0 0.0
    %1020 = vmatpush2.msra.mxu0 0.0
    %1021 = vmatprep.subr.mxu0 0.0
    %1022 = vmatpush2.msra.mxu0 0.0
    %1023 = vmatprep.subr.mxu0 0.0
    %1024 = vmatpush2.msra.mxu0 0.0
    %1025 = vmatprep.subr.mxu0 0.0
    %1026 = vmatpush2.msra.mxu0 0.0
    %1027 = vmatprep.subr.mxu0 0.0
    %1028 = vmatpush2.msra.mxu0 0.0
    %1029 = vmatprep.subr.mxu0 0.0
    %1030 = vmatpush2.msra.mxu0 0.0
    %1031 = vmatprep.subr.mxu0 0.0
    %1032 = vmatpush2.msra.mxu0 0.0
    %1033 = vmatprep.mubr.f32.mxu0 0.0
    %1034 = vmatmul.mubr.f32.gmra.mxu0 %v729
    %v1035 = vpop.f32.mrf.mxu0
    %v1036 = vadd.f32 %v966, %v1035
    %v1037 = vpop.f32.mrf.mxu0
    %1038 = vdwg.mxu0
    %v1039 = vadd.f32 %v1036, %v156
    %v1040 = vxor.u32 %v1039, 2147483648
    %v1041 = vmul.f32 %v1040, 1.442695
    %v1042 = vpow.pop %v1041
    %v1043 = vadd.f32 %v1042, 1.0
    %v1044 = vrcp.pop %v1043
    %v1045 = vmul.f32 1.0, %v1044
    %v1046 = vtanh.pop %v1039
    %v1047 = vrot.slane %v131, 2
    %1048 = vrot.lane.b32.xlu0 %v1047, 32
    %v1049 = vpop.permute.xlu0 %1048
    %v1051 = vmul.f32 %v1045, %v1049
    %1053 = vrot.lane.b32.xlu0 %v1046, 64
    %v1054 = vpop.permute.xlu0 %1053
    %v1056 = vmul.f32 %v1045, %v1054
    %1058 = vrot.lane.b32.xlu0 %v1056, 32
    %v1059 = vpop.permute.xlu0 %1058
    %v1061 = vadd.f32 %v1051, %v1059
    %v1062 = vtanh.pop %v1061
    %1064 = vrot.lane.b32.xlu0 %v1062, 64
    %v1065 = vpop.permute.xlu0 %1064
    %v1067 = vmul.f32 %v1045, %v1065
    %v1069 = vrot.slane %v725, 2
    %1070 = vrot.lane.b32.xlu0 %v1069, 32
    %v1071 = vpop.permute.xlu0 %1070
    %v1072 = vsel %vm238, %v1071, 0
    %1074 = vmatprep.subr.mxu0 0.0
    %1075 = vmatpush1.msra.mxu0 0.0
    %1076 = vmatprep.subr.mxu0 0.0
    %1077 = vmatpush1.msra.mxu0 0.0
    %1078 = vmatprep.subr.mxu0 0.0
    %1079 = vmatpush1.msra.mxu0 0.0
    %1080 = vmatprep.subr.mxu0 0.0
    %1081 = vmatpush1.msra.mxu0 0.0
    %1082 = vmatprep.subr.mxu0 0.0
    %1083 = vmatpush1.msra.mxu0 0.0
    %1084 = vmatprep.subr.mxu0 0.0
    %1085 = vmatpush1.msra.mxu0 0.0
    %1086 = vmatprep.subr.mxu0 0.0
    %1087 = vmatpush1.msra.mxu0 0.0
    %1088 = vmatprep.subr.mxu0 0.0
    %1089 = vmatpush1.msra.mxu0 0.0
    %1090 = vmatprep.subr.mxu0 0.0
    %1091 = vmatpush1.msra.mxu0 0.0
    %1092 = vmatprep.subr.mxu0 0.0
    %1093 = vmatpush1.msra.mxu0 0.0
    %1094 = vmatprep.subr.mxu0 0.0
    %1095 = vmatpush1.msra.mxu0 0.0
    %1096 = vmatprep.subr.mxu0 0.0
    %1097 = vmatpush1.msra.mxu0 0.0
    %1098 = vmatprep.subr.mxu0 0.0
    %1099 = vmatpush1.msra.mxu0 %v145
    %1100 = vmatprep.subr.mxu0 0.0
    %1101 = vmatpush1.msra.mxu0 %v144
    %1102 = vmatprep.subr.mxu0 0.0
    %1103 = vmatpush1.msra.mxu0 %v143
    %1104 = vmatprep.subr.mxu0 0.0
    %1105 = vmatpush1.msra.mxu0 %v142
    %1106 = vmatprep.subr.mxu0 0.0
    %1107 = vmatpush2.msra.mxu0 0.0
    %1108 = vmatprep.subr.mxu0 0.0
    %1109 = vmatpush2.msra.mxu0 0.0
    %1110 = vmatprep.subr.mxu0 0.0
    %1111 = vmatpush2.msra.mxu0 0.0
    %1112 = vmatprep.subr.mxu0 0.0
    %1113 = vmatpush2.msra.mxu0 0.0
    %1114 = vmatprep.subr.mxu0 0.0
    %1115 = vmatpush2.msra.mxu0 0.0
    %1116 = vmatprep.subr.mxu0 0.0
    %1117 = vmatpush2.msra.mxu0 0.0
    %1118 = vmatprep.subr.mxu0 0.0
    %1119 = vmatpush2.msra.mxu0 0.0
    %1120 = vmatprep.subr.mxu0 0.0
    %1121 = vmatpush2.msra.mxu0 0.0
    %1122 = vmatprep.subr.mxu0 0.0
    %1123 = vmatpush2.msra.mxu0 0.0
    %1124 = vmatprep.subr.mxu0 0.0
    %1125 = vmatpush2.msra.mxu0 0.0
    %1126 = vmatprep.subr.mxu0 0.0
    %1127 = vmatpush2.msra.mxu0 0.0
    %1128 = vmatprep.subr.mxu0 0.0
    %1129 = vmatpush2.msra.mxu0 0.0
    %1130 = vmatprep.subr.mxu0 0.0
    %1131 = vmatpush2.msra.mxu0 0.0
    %1132 = vmatprep.subr.mxu0 0.0
    %1133 = vmatpush2.msra.mxu0 0.0
    %1134 = vmatprep.subr.mxu0 0.0
    %1135 = vmatpush2.msra.mxu0 0.0
    %1136 = vmatprep.subr.mxu0 0.0
    %1137 = vmatpush2.msra.mxu0 0.0
    %1138 = vmatprep.mubr.f32.mxu0 0.0
    %1139 = vmatmul.mubr.f32.gmra.mxu0 %v1072
    %v1140 = vpop.f32.mrf.mxu0
    %v1141 = vadd.f32 0.0, %v1140
    %v1142 = vpop.f32.mrf.mxu0
    %1143 = vdwg.mxu0
    %v1145 = vrot.slane %v1141, 5
    %v1147 = vadd.f32 %v235, %v1145
    %v1148 = vxor.u32 %v1147, 2147483648
    %v1149 = vmul.f32 %v1148, 1.442695
    %v1150 = vpow.pop %v1149
    %v1151 = vadd.f32 %v1150, 1.0
    %v1152 = vrcp.pop %v1151
    %v1153 = vmul.f32 1.0, %v1152
    %v1154 = vtanh.pop %v1147
    %v1156 = vrot.slane %v719, 7
    %v1158 = vmul.f32 %v1153, %v1156
    %1160 = vrot.lane.b32.xlu0 %v1154, 64
    %v1161 = vpop.permute.xlu0 %1160
    %v1163 = vmul.f32 %v1153, %v1161
    %1165 = vrot.lane.b32.xlu0 %v1163, 32
    %v1166 = vpop.permute.xlu0 %1165
    %v1168 = vadd.f32 %v1158, %v1166
    %v1169 = vtanh.pop %v1168
    %1171 = vrot.lane.b32.xlu0 %v1169, 64
    %v1172 = vpop.permute.xlu0 %1171
    %v1174 = vmul.f32 %v1153, %v1172
    %1176 = vrot.lane.b32.xlu0 %v895, 32
    %v1177 = vpop.permute.xlu0 %1176
    %v1178 = vsel %vm238, %v1177, 0
    %1180 = vmatprep.subr.mxu0 0.0
    %1181 = vmatpush1.msra.mxu0 0.0
    %1182 = vmatprep.subr.mxu0 0.0
    %1183 = vmatpush1.msra.mxu0 0.0
    %1184 = vmatprep.subr.mxu0 0.0
    %1185 = vmatpush1.msra.mxu0 0.0
    %1186 = vmatprep.subr.mxu0 0.0
    %1187 = vmatpush1.msra.mxu0 0.0
    %1188 = vmatprep.subr.mxu0 0.0
    %1189 = vmatpush1.msra.mxu0 0.0
    %1190 = vmatprep.subr.mxu0 0.0
    %1191 = vmatpush1.msra.mxu0 0.0
    %1192 = vmatprep.subr.mxu0 0.0
    %1193 = vmatpush1.msra.mxu0 0.0
    %1194 = vmatprep.subr.mxu0 0.0
    %1195 = vmatpush1.msra.mxu0 0.0
    %1196 = vmatprep.subr.mxu0 0.0
    %1197 = vmatpush1.msra.mxu0 0.0
    %1198 = vmatprep.subr.mxu0 0.0
    %1199 = vmatpush1.msra.mxu0 0.0
    %1200 = vmatprep.subr.mxu0 0.0
    %1201 = vmatpush1.msra.mxu0 0.0
    %1202 = vmatprep.subr.mxu0 0.0
    %1203 = vmatpush1.msra.mxu0 0.0
    %1204 = vmatprep.subr.mxu0 0.0
    %1205 = vmatpush1.msra.mxu0 %v149
    %1206 = vmatprep.subr.mxu0 0.0
    %1207 = vmatpush1.msra.mxu0 %v148
    %1208 = vmatprep.subr.mxu0 0.0
    %1209 = vmatpush1.msra.mxu0 %v147
    %1210 = vmatprep.subr.mxu0 0.0
    %1211 = vmatpush1.msra.mxu0 %v146
    %1212 = vmatprep.subr.mxu0 0.0
    %1213 = vmatpush2.msra.mxu0 0.0
    %1214 = vmatprep.subr.mxu0 0.0
    %1215 = vmatpush2.msra.mxu0 0.0
    %1216 = vmatprep.subr.mxu0 0.0
    %1217 = vmatpush2.msra.mxu0 0.0
    %1218 = vmatprep.subr.mxu0 0.0
    %1219 = vmatpush2.msra.mxu0 0.0
    %1220 = vmatprep.subr.mxu0 0.0
    %1221 = vmatpush2.msra.mxu0 0.0
    %1222 = vmatprep.subr.mxu0 0.0
    %1223 = vmatpush2.msra.mxu0 0.0
    %1224 = vmatprep.subr.mxu0 0.0
    %1225 = vmatpush2.msra.mxu0 0.0
    %1226 = vmatprep.subr.mxu0 0.0
    %1227 = vmatpush2.msra.mxu0 0.0
    %1228 = vmatprep.subr.mxu0 0.0
    %1229 = vmatpush2.msra.mxu0 0.0
    %1230 = vmatprep.subr.mxu0 0.0
    %1231 = vmatpush2.msra.mxu0 0.0
    %1232 = vmatprep.subr.mxu0 0.0
    %1233 = vmatpush2.msra.mxu0 0.0
    %1234 = vmatprep.subr.mxu0 0.0
    %1235 = vmatpush2.msra.mxu0 0.0
    %1236 = vmatprep.subr.mxu0 0.0
    %1237 = vmatpush2.msra.mxu0 0.0
    %1238 = vmatprep.subr.mxu0 0.0
    %1239 = vmatpush2.msra.mxu0 0.0
    %1240 = vmatprep.subr.mxu0 0.0
    %1241 = vmatpush2.msra.mxu0 0.0
    %1242 = vmatprep.subr.mxu0 0.0
    %1243 = vmatpush2.msra.mxu0 0.0
    %1244 = vmatprep.mubr.f32.mxu0 0.0
    %1245 = vmatmul.mubr.f32.gmra.mxu0 %v1178
    %v1246 = vpop.f32.mrf.mxu0
    %v1247 = vadd.f32 0.0, %v1246
    %v1248 = vpop.f32.mrf.mxu0
    %1249 = vdwg.mxu0
    %1250 = vmatprep.subr.mxu0 0.0
    %1251 = vmatpush1.msra.mxu0 0.0
    %1252 = vmatprep.subr.mxu0 0.0
    %1253 = vmatpush1.msra.mxu0 0.0
    %1254 = vmatprep.subr.mxu0 0.0
    %1255 = vmatpush1.msra.mxu0 0.0
    %1256 = vmatprep.subr.mxu0 0.0
    %1257 = vmatpush1.msra.mxu0 0.0
    %1258 = vmatprep.subr.mxu0 0.0
    %1259 = vmatpush1.msra.mxu0 0.0
    %1260 = vmatprep.subr.mxu0 0.0
    %1261 = vmatpush1.msra.mxu0 0.0
    %1262 = vmatprep.subr.mxu0 0.0
    %1263 = vmatpush1.msra.mxu0 0.0
    %1264 = vmatprep.subr.mxu0 0.0
    %1265 = vmatpush1.msra.mxu0 0.0
    %1266 = vmatprep.subr.mxu0 0.0
    %1267 = vmatpush1.msra.mxu0 0.0
    %1268 = vmatprep.subr.mxu0 0.0
    %1269 = vmatpush1.msra.mxu0 0.0
    %1270 = vmatprep.subr.mxu0 0.0
    %1271 = vmatpush1.msra.mxu0 0.0
    %1272 = vmatprep.subr.mxu0 0.0
    %1273 = vmatpush1.msra.mxu0 0.0
    %1274 = vmatprep.subr.mxu0 0.0
    %1275 = vmatpush1.msra.mxu0 %v137
    %1276 = vmatprep.subr.mxu0 0.0
    %1277 = vmatpush1.msra.mxu0 %v136
    %1278 = vmatprep.subr.mxu0 0.0
    %1279 = vmatpush1.msra.mxu0 %v135
    %1280 = vmatprep.subr.mxu0 0.0
    %1281 = vmatpush1.msra.mxu0 %v134
    %1282 = vmatprep.subr.mxu0 0.0
    %1283 = vmatpush2.msra.mxu0 0.0
    %1284 = vmatprep.subr.mxu0 0.0
    %1285 = vmatpush2.msra.mxu0 0.0
    %1286 = vmatprep.subr.mxu0 0.0
    %1287 = vmatpush2.msra.mxu0 0.0
    %1288 = vmatprep.subr.mxu0 0.0
    %1289 = vmatpush2.msra.mxu0 0.0
    %1290 = vmatprep.subr.mxu0 0.0
    %1291 = vmatpush2.msra.mxu0 0.0
    %1292 = vmatprep.subr.mxu0 0.0
    %1293 = vmatpush2.msra.mxu0 0.0
    %1294 = vmatprep.subr.mxu0 0.0
    %1295 = vmatpush2.msra.mxu0 0.0
    %1296 = vmatprep.subr.mxu0 0.0
    %1297 = vmatpush2.msra.mxu0 0.0
    %1298 = vmatprep.subr.mxu0 0.0
    %1299 = vmatpush2.msra.mxu0 0.0
    %1300 = vmatprep.subr.mxu0 0.0
    %1301 = vmatpush2.msra.mxu0 0.0
    %1302 = vmatprep.subr.mxu0 0.0
    %1303 = vmatpush2.msra.mxu0 0.0
    %1304 = vmatprep.subr.mxu0 0.0
    %1305 = vmatpush2.msra.mxu0 0.0
    %1306 = vmatprep.subr.mxu0 0.0
    %1307 = vmatpush2.msra.mxu0 0.0
    %1308 = vmatprep.subr.mxu0 0.0
    %1309 = vmatpush2.msra.mxu0 0.0
    %1310 = vmatprep.subr.mxu0 0.0
    %1311 = vmatpush2.msra.mxu0 0.0
    %1312 = vmatprep.subr.mxu0 0.0
    %1313 = vmatpush2.msra.mxu0 0.0
    %1314 = vmatprep.mubr.f32.mxu0 0.0
    %1315 = vmatmul.mubr.f32.gmra.mxu0 %v1072
    %v1316 = vpop.f32.mrf.mxu0
    %v1317 = vadd.f32 %v1247, %v1316
    %v1318 = vpop.f32.mrf.mxu0
    %1319 = vdwg.mxu0
    %v1320 = vadd.f32 %v1317, %v155
    %v1321 = vxor.u32 %v1320, 2147483648
    %v1322 = vmul.f32 %v1321, 1.442695
    %v1323 = vpow.pop %v1322
    %v1324 = vadd.f32 %v1323, 1.0
    %v1325 = vrcp.pop %v1324
    %v1326 = vmul.f32 1.0, %v1325
    %v1327 = vtanh.pop %v1320
    %v1328 = vmul.f32 %v1326, %v889
    %1330 = vrot.lane.b32.xlu0 %v1327, 64
    %v1331 = vpop.permute.xlu0 %1330
    %v1333 = vmul.f32 %v1326, %v1331
    %1335 = vrot.lane.b32.xlu0 %v1333, 32
    %v1336 = vpop.permute.xlu0 %1335
    %v1338 = vadd.f32 %v1328, %v1336
    %v1339 = vtanh.pop %v1338
    %1341 = vrot.lane.b32.xlu0 %v1339, 64
    %v1342 = vpop.permute.xlu0 %1341
    %v1344 = vmul.f32 %v1326, %v1342
    %1346 = vrot.lane.b32.xlu0 %v1067, 32
    %v1347 = vpop.permute.xlu0 %1346
    %v1348 = vsel %vm238, %v1347, 0
    %1350 = vmatprep.subr.mxu0 0.0
    %1351 = vmatpush1.msra.mxu0 0.0
    %1352 = vmatprep.subr.mxu0 0.0
    %1353 = vmatpush1.msra.mxu0 0.0
    %1354 = vmatprep.subr.mxu0 0.0
    %1355 = vmatpush1.msra.mxu0 0.0
    %1356 = vmatprep.subr.mxu0 0.0
    %1357 = vmatpush1.msra.mxu0 0.0
    %1358 = vmatprep.subr.mxu0 0.0
    %1359 = vmatpush1.msra.mxu0 0.0
    %1360 = vmatprep.subr.mxu0 0.0
    %1361 = vmatpush1.msra.mxu0 0.0
    %1362 = vmatprep.subr.mxu0 0.0
    %1363 = vmatpush1.msra.mxu0 0.0
    %1364 = vmatprep.subr.mxu0 0.0
    %1365 = vmatpush1.msra.mxu0 0.0
    %1366 = vmatprep.subr.mxu0 0.0
    %1367 = vmatpush1.msra.mxu0 0.0
    %1368 = vmatprep.subr.mxu0 0.0
    %1369 = vmatpush1.msra.mxu0 0.0
    %1370 = vmatprep.subr.mxu0 0.0
    %1371 = vmatpush1.msra.mxu0 0.0
    %1372 = vmatprep.subr.mxu0 0.0
    %1373 = vmatpush1.msra.mxu0 0.0
    %1374 = vmatprep.subr.mxu0 0.0
    %1375 = vmatpush1.msra.mxu0 %v153
    %1376 = vmatprep.subr.mxu0 0.0
    %1377 = vmatpush1.msra.mxu0 %v152
    %1378 = vmatprep.subr.mxu0 0.0
    %1379 = vmatpush1.msra.mxu0 %v151
    %1380 = vmatprep.subr.mxu0 0.0
    %1381 = vmatpush1.msra.mxu0 %v150
    %1382 = vmatprep.subr.mxu0 0.0
    %1383 = vmatpush2.msra.mxu0 0.0
    %1384 = vmatprep.subr.mxu0 0.0
    %1385 = vmatpush2.msra.mxu0 0.0
    %1386 = vmatprep.subr.mxu0 0.0
    %1387 = vmatpush2.msra.mxu0 0.0
    %1388 = vmatprep.subr.mxu0 0.0
    %1389 = vmatpush2.msra.mxu0 0.0
    %1390 = vmatprep.subr.mxu0 0.0
    %1391 = vmatpush2.msra.mxu0 0.0
    %1392 = vmatprep.subr.mxu0 0.0
    %1393 = vmatpush2.msra.mxu0 0.0
    %1394 = vmatprep.subr.mxu0 0.0
    %1395 = vmatpush2.msra.mxu0 0.0
    %1396 = vmatprep.subr.mxu0 0.0
    %1397 = vmatpush2.msra.mxu0 0.0
    %1398 = vmatprep.subr.mxu0 0.0
    %1399 = vmatpush2.msra.mxu0 0.0
    %1400 = vmatprep.subr.mxu0 0.0
    %1401 = vmatpush2.msra.mxu0 0.0
    %1402 = vmatprep.subr.mxu0 0.0
    %1403 = vmatpush2.msra.mxu0 0.0
    %1404 = vmatprep.subr.mxu0 0.0
    %1405 = vmatpush2.msra.mxu0 0.0
    %1406 = vmatprep.subr.mxu0 0.0
    %1407 = vmatpush2.msra.mxu0 0.0
    %1408 = vmatprep.subr.mxu0 0.0
    %1409 = vmatpush2.msra.mxu0 0.0
    %1410 = vmatprep.subr.mxu0 0.0
    %1411 = vmatpush2.msra.mxu0 0.0
    %1412 = vmatprep.subr.mxu0 0.0
    %1413 = vmatpush2.msra.mxu0 0.0
    %1414 = vmatprep.mubr.f32.mxu0 0.0
    %1415 = vmatmul.mubr.f32.gmra.mxu0 %v1348
    %v1416 = vpop.f32.mrf.mxu0
    %v1417 = vadd.f32 0.0, %v1416
    %v1418 = vpop.f32.mrf.mxu0
    %1419 = vdwg.mxu0
    %1420 = vmatprep.subr.mxu0 0.0
    %1421 = vmatpush1.msra.mxu0 0.0
    %1422 = vmatprep.subr.mxu0 0.0
    %1423 = vmatpush1.msra.mxu0 0.0
    %1424 = vmatprep.subr.mxu0 0.0
    %1425 = vmatpush1.msra.mxu0 0.0
    %1426 = vmatprep.subr.mxu0 0.0
    %1427 = vmatpush1.msra.mxu0 0.0
    %1428 = vmatprep.subr.mxu0 0.0
    %1429 = vmatpush1.msra.mxu0 0.0
    %1430 = vmatprep.subr.mxu0 0.0
    %1431 = vmatpush1.msra.mxu0 0.0
    %1432 = vmatprep.subr.mxu0 0.0
    %1433 = vmatpush1.msra.mxu0 0.0
    %1434 = vmatprep.subr.mxu0 0.0
    %1435 = vmatpush1.msra.mxu0 0.0
    %1436 = vmatprep.subr.mxu0 0.0
    %1437 = vmatpush1.msra.mxu0 0.0
    %1438 = vmatprep.subr.mxu0 0.0
    %1439 = vmatpush1.msra.mxu0 0.0
    %1440 = vmatprep.subr.mxu0 0.0
    %1441 = vmatpush1.msra.mxu0 0.0
    %1442 = vmatprep.subr.mxu0 0.0
    %1443 = vmatpush1.msra.mxu0 0.0
    %1444 = vmatprep.subr.mxu0 0.0
    %1445 = vmatpush1.msra.mxu0 %v141
    %1446 = vmatprep.subr.mxu0 0.0
    %1447 = vmatpush1.msra.mxu0 %v140
    %1448 = vmatprep.subr.mxu0 0.0
    %1449 = vmatpush1.msra.mxu0 %v139
    %1450 = vmatprep.subr.mxu0 0.0
    %1451 = vmatpush1.msra.mxu0 %v138
    %1452 = vmatprep.subr.mxu0 0.0
    %1453 = vmatpush2.msra.mxu0 0.0
    %1454 = vmatprep.subr.mxu0 0.0
    %1455 = vmatpush2.msra.mxu0 0.0
    %1456 = vmatprep.subr.mxu0 0.0
    %1457 = vmatpush2.msra.mxu0 0.0
    %1458 = vmatprep.subr.mxu0 0.0
    %1459 = vmatpush2.msra.mxu0 0.0
    %1460 = vmatprep.subr.mxu0 0.0
    %1461 = vmatpush2.msra.mxu0 0.0
    %1462 = vmatprep.subr.mxu0 0.0
    %1463 = vmatpush2.msra.mxu0 0.0
    %1464 = vmatprep.subr.mxu0 0.0
    %1465 = vmatpush2.msra.mxu0 0.0
    %1466 = vmatprep.subr.mxu0 0.0
    %1467 = vmatpush2.msra.mxu0 0.0
    %1468 = vmatprep.subr.mxu0 0.0
    %1469 = vmatpush2.msra.mxu0 0.0
    %1470 = vmatprep.subr.mxu0 0.0
    %1471 = vmatpush2.msra.mxu0 0.0
    %1472 = vmatprep.subr.mxu0 0.0
    %1473 = vmatpush2.msra.mxu0 0.0
    %1474 = vmatprep.subr.mxu0 0.0
    %1475 = vmatpush2.msra.mxu0 0.0
    %1476 = vmatprep.subr.mxu0 0.0
    %1477 = vmatpush2.msra.mxu0 0.0
    %1478 = vmatprep.subr.mxu0 0.0
    %1479 = vmatpush2.msra.mxu0 0.0
    %1480 = vmatprep.subr.mxu0 0.0
    %1481 = vmatpush2.msra.mxu0 0.0
    %1482 = vmatprep.subr.mxu0 0.0
    %1483 = vmatpush2.msra.mxu0 0.0
    %1484 = vmatprep.mubr.f32.mxu0 0.0
    %1485 = vmatmul.mubr.f32.gmra.mxu0 %v1178
    %v1486 = vpop.f32.mrf.mxu0
    %v1487 = vadd.f32 %v1417, %v1486
    %v1488 = vpop.f32.mrf.mxu0
    %1489 = vdwg.mxu0
    %v1490 = vadd.f32 %v1487, %v156
    %v1491 = vxor.u32 %v1490, 2147483648
    %v1492 = vmul.f32 %v1491, 1.442695
    %v1493 = vpow.pop %v1492
    %v1494 = vadd.f32 %v1493, 1.0
    %v1495 = vrcp.pop %v1494
    %v1496 = vmul.f32 1.0, %v1495
    %v1497 = vtanh.pop %v1490
    %v1498 = vmul.f32 %v1496, %v1061
    %1500 = vrot.lane.b32.xlu0 %v1497, 64
    %v1501 = vpop.permute.xlu0 %1500
    %v1503 = vmul.f32 %v1496, %v1501
    %1505 = vrot.lane.b32.xlu0 %v1503, 32
    %v1506 = vpop.permute.xlu0 %1505
    %v1508 = vadd.f32 %v1498, %v1506
    %v1509 = vtanh.pop %v1508
    %1511 = vrot.lane.b32.xlu0 %v1509, 64
    %v1512 = vpop.permute.xlu0 %1511
    %v1514 = vmul.f32 %v1496, %v1512
    %v1516 = vrot.slane %v1174, 3
    %1517 = vrot.lane.b32.xlu0 %v1516, 32
    %v1518 = vpop.permute.xlu0 %1517
    %v1519 = vsel %vm238, %v1518, 0
    %1521 = vmatprep.subr.mxu0 0.0
    %1522 = vmatpush1.msra.mxu0 0.0
    %1523 = vmatprep.subr.mxu0 0.0
    %1524 = vmatpush1.msra.mxu0 0.0
    %1525 = vmatprep.subr.mxu0 0.0
    %1526 = vmatpush1.msra.mxu0 0.0
    %1527 = vmatprep.subr.mxu0 0.0
    %1528 = vmatpush1.msra.mxu0 0.0
    %1529 = vmatprep.subr.mxu0 0.0
    %1530 = vmatpush1.msra.mxu0 0.0
    %1531 = vmatprep.subr.mxu0 0.0
    %1532 = vmatpush1.msra.mxu0 0.0
    %1533 = vmatprep.subr.mxu0 0.0
    %1534 = vmatpush1.msra.mxu0 0.0
    %1535 = vmatprep.subr.mxu0 0.0
    %1536 = vmatpush1.msra.mxu0 0.0
    %1537 = vmatprep.subr.mxu0 0.0
    %1538 = vmatpush1.msra.mxu0 0.0
    %1539 = vmatprep.subr.mxu0 0.0
    %1540 = vmatpush1.msra.mxu0 0.0
    %1541 = vmatprep.subr.mxu0 0.0
    %1542 = vmatpush1.msra.mxu0 0.0
    %1543 = vmatprep.subr.mxu0 0.0
    %1544 = vmatpush1.msra.mxu0 0.0
    %1545 = vmatprep.subr.mxu0 0.0
    %1546 = vmatpush1.msra.mxu0 %v145
    %1547 = vmatprep.subr.mxu0 0.0
    %1548 = vmatpush1.msra.mxu0 %v144
    %1549 = vmatprep.subr.mxu0 0.0
    %1550 = vmatpush1.msra.mxu0 %v143
    %1551 = vmatprep.subr.mxu0 0.0
    %1552 = vmatpush1.msra.mxu0 %v142
    %1553 = vmatprep.subr.mxu0 0.0
    %1554 = vmatpush2.msra.mxu0 0.0
    %1555 = vmatprep.subr.mxu0 0.0
    %1556 = vmatpush2.msra.mxu0 0.0
    %1557 = vmatprep.subr.mxu0 0.0
    %1558 = vmatpush2.msra.mxu0 0.0
    %1559 = vmatprep.subr.mxu0 0.0
    %1560 = vmatpush2.msra.mxu0 0.0
    %1561 = vmatprep.subr.mxu0 0.0
    %1562 = vmatpush2.msra.mxu0 0.0
    %1563 = vmatprep.subr.mxu0 0.0
    %1564 = vmatpush2.msra.mxu0 0.0
    %1565 = vmatprep.subr.mxu0 0.0
    %1566 = vmatpush2.msra.mxu0 0.0
    %1567 = vmatprep.subr.mxu0 0.0
    %1568 = vmatpush2.msra.mxu0 0.0
    %1569 = vmatprep.subr.mxu0 0.0
    %1570 = vmatpush2.msra.mxu0 0.0
    %1571 = vmatprep.subr.mxu0 0.0
    %1572 = vmatpush2.msra.mxu0 0.0
    %1573 = vmatprep.subr.mxu0 0.0
    %1574 = vmatpush2.msra.mxu0 0.0
    %1575 = vmatprep.subr.mxu0 0.0
    %1576 = vmatpush2.msra.mxu0 0.0
    %1577 = vmatprep.subr.mxu0 0.0
    %1578 = vmatpush2.msra.mxu0 0.0
    %1579 = vmatprep.subr.mxu0 0.0
    %1580 = vmatpush2.msra.mxu0 0.0
    %1581 = vmatprep.subr.mxu0 0.0
    %1582 = vmatpush2.msra.mxu0 0.0
    %1583 = vmatprep.subr.mxu0 0.0
    %1584 = vmatpush2.msra.mxu0 0.0
    %1585 = vmatprep.mubr.f32.mxu0 0.0
    %1586 = vmatmul.mubr.f32.gmra.mxu0 %v1519
    %v1587 = vpop.f32.mrf.mxu0
    %v1588 = vadd.f32 0.0, %v1587
    %v1589 = vpop.f32.mrf.mxu0
    %1590 = vdwg.mxu0
    %v1592 = vrot.slane %v1588, 4
    %v1594 = vadd.f32 %v235, %v1592
    %v1595 = vxor.u32 %v1594, 2147483648
    %v1596 = vmul.f32 %v1595, 1.442695
    %v1597 = vpow.pop %v1596
    %v1598 = vadd.f32 %v1597, 1.0
    %v1599 = vrcp.pop %v1598
    %v1600 = vmul.f32 1.0, %v1599
    %v1601 = vtanh.pop %v1594
    %v1603 = vrot.slane %v1168, 7
    %v1605 = vmul.f32 %v1600, %v1603
    %1607 = vrot.lane.b32.xlu0 %v1601, 64
    %v1608 = vpop.permute.xlu0 %1607
    %v1610 = vmul.f32 %v1600, %v1608
    %1612 = vrot.lane.b32.xlu0 %v1610, 32
    %v1613 = vpop.permute.xlu0 %1612
    %v1615 = vadd.f32 %v1605, %v1613
    %v1616 = vtanh.pop %v1615
    %1618 = vrot.lane.b32.xlu0 %v1616, 64
    %v1619 = vpop.permute.xlu0 %1618
    %v1621 = vmul.f32 %v1600, %v1619
    %1623 = vrot.lane.b32.xlu0 %v1344, 32
    %v1624 = vpop.permute.xlu0 %1623
    %v1625 = vsel %vm238, %v1624, 0
    %1627 = vmatprep.subr.mxu0 0.0
    %1628 = vmatpush1.msra.mxu0 0.0
    %1629 = vmatprep.subr.mxu0 0.0
    %1630 = vmatpush1.msra.mxu0 0.0
    %1631 = vmatprep.subr.mxu0 0.0
    %1632 = vmatpush1.msra.mxu0 0.0
    %1633 = vmatprep.subr.mxu0 0.0
    %1634 = vmatpush1.msra.mxu0 0.0
    %1635 = vmatprep.subr.mxu0 0.0
    %1636 = vmatpush1.msra.mxu0 0.0
    %1637 = vmatprep.subr.mxu0 0.0
    %1638 = vmatpush1.msra.mxu0 0.0
    %1639 = vmatprep.subr.mxu0 0.0
    %1640 = vmatpush1.msra.mxu0 0.0
    %1641 = vmatprep.subr.mxu0 0.0
    %1642 = vmatpush1.msra.mxu0 0.0
    %1643 = vmatprep.subr.mxu0 0.0
    %1644 = vmatpush1.msra.mxu0 0.0
    %1645 = vmatprep.subr.mxu0 0.0
    %1646 = vmatpush1.msra.mxu0 0.0
    %1647 = vmatprep.subr.mxu0 0.0
    %1648 = vmatpush1.msra.mxu0 0.0
    %1649 = vmatprep.subr.mxu0 0.0
    %1650 = vmatpush1.msra.mxu0 0.0
    %1651 = vmatprep.subr.mxu0 0.0
    %1652 = vmatpush1.msra.mxu0 %v149
    %1653 = vmatprep.subr.mxu0 0.0
    %1654 = vmatpush1.msra.mxu0 %v148
    %1655 = vmatprep.subr.mxu0 0.0
    %1656 = vmatpush1.msra.mxu0 %v147
    %1657 = vmatprep.subr.mxu0 0.0
    %1658 = vmatpush1.msra.mxu0 %v146
    %1659 = vmatprep.subr.mxu0 0.0
    %1660 = vmatpush2.msra.mxu0 0.0
    %1661 = vmatprep.subr.mxu0 0.0
    %1662 = vmatpush2.msra.mxu0 0.0
    %1663 = vmatprep.subr.mxu0 0.0
    %1664 = vmatpush2.msra.mxu0 0.0
    %1665 = vmatprep.subr.mxu0 0.0
    %1666 = vmatpush2.msra.mxu0 0.0
    %1667 = vmatprep.subr.mxu0 0.0
    %1668 = vmatpush2.msra.mxu0 0.0
    %1669 = vmatprep.subr.mxu0 0.0
    %1670 = vmatpush2.msra.mxu0 0.0
    %1671 = vmatprep.subr.mxu0 0.0
    %1672 = vmatpush2.msra.mxu0 0.0
    %1673 = vmatprep.subr.mxu0 0.0
    %1674 = vmatpush2.msra.mxu0 0.0
    %1675 = vmatprep.subr.mxu0 0.0
    %1676 = vmatpush2.msra.mxu0 0.0
    %1677 = vmatprep.subr.mxu0 0.0
    %1678 = vmatpush2.msra.mxu0 0.0
    %1679 = vmatprep.subr.mxu0 0.0
    %1680 = vmatpush2.msra.mxu0 0.0
    %1681 = vmatprep.subr.mxu0 0.0
    %1682 = vmatpush2.msra.mxu0 0.0
    %1683 = vmatprep.subr.mxu0 0.0
    %1684 = vmatpush2.msra.mxu0 0.0
    %1685 = vmatprep.subr.mxu0 0.0
    %1686 = vmatpush2.msra.mxu0 0.0
    %1687 = vmatprep.subr.mxu0 0.0
    %1688 = vmatpush2.msra.mxu0 0.0
    %1689 = vmatprep.subr.mxu0 0.0
    %1690 = vmatpush2.msra.mxu0 0.0
    %1691 = vmatprep.mubr.f32.mxu0 0.0
    %1692 = vmatmul.mubr.f32.gmra.mxu0 %v1625
    %v1693 = vpop.f32.mrf.mxu0
    %v1694 = vadd.f32 0.0, %v1693
    %v1695 = vpop.f32.mrf.mxu0
    %1696 = vdwg.mxu0
    %1697 = vmatprep.subr.mxu0 0.0
    %1698 = vmatpush1.msra.mxu0 0.0
    %1699 = vmatprep.subr.mxu0 0.0
    %1700 = vmatpush1.msra.mxu0 0.0
    %1701 = vmatprep.subr.mxu0 0.0
    %1702 = vmatpush1.msra.mxu0 0.0
    %1703 = vmatprep.subr.mxu0 0.0
    %1704 = vmatpush1.msra.mxu0 0.0
    %1705 = vmatprep.subr.mxu0 0.0
    %1706 = vmatpush1.msra.mxu0 0.0
    %1707 = vmatprep.subr.mxu0 0.0
    %1708 = vmatpush1.msra.mxu0 0.0
    %1709 = vmatprep.subr.mxu0 0.0
    %1710 = vmatpush1.msra.mxu0 0.0
    %1711 = vmatprep.subr.mxu0 0.0
    %1712 = vmatpush1.msra.mxu0 0.0
    %1713 = vmatprep.subr.mxu0 0.0
    %1714 = vmatpush1.msra.mxu0 0.0
    %1715 = vmatprep.subr.mxu0 0.0
    %1716 = vmatpush1.msra.mxu0 0.0
    %1717 = vmatprep.subr.mxu0 0.0
    %1718 = vmatpush1.msra.mxu0 0.0
    %1719 = vmatprep.subr.mxu0 0.0
    %1720 = vmatpush1.msra.mxu0 0.0
    %1721 = vmatprep.subr.mxu0 0.0
    %1722 = vmatpush1.msra.mxu0 %v137
    %1723 = vmatprep.subr.mxu0 0.0
    %1724 = vmatpush1.msra.mxu0 %v136
    %1725 = vmatprep.subr.mxu0 0.0
    %1726 = vmatpush1.msra.mxu0 %v135
    %1727 = vmatprep.subr.mxu0 0.0
    %1728 = vmatpush1.msra.mxu0 %v134
    %1729 = vmatprep.subr.mxu0 0.0
    %1730 = vmatpush2.msra.mxu0 0.0
    %1731 = vmatprep.subr.mxu0 0.0
    %1732 = vmatpush2.msra.mxu0 0.0
    %1733 = vmatprep.subr.mxu0 0.0
    %1734 = vmatpush2.msra.mxu0 0.0
    %1735 = vmatprep.subr.mxu0 0.0
    %1736 = vmatpush2.msra.mxu0 0.0
    %1737 = vmatprep.subr.mxu0 0.0
    %1738 = vmatpush2.msra.mxu0 0.0
    %1739 = vmatprep.subr.mxu0 0.0
    %1740 = vmatpush2.msra.mxu0 0.0
    %1741 = vmatprep.subr.mxu0 0.0
    %1742 = vmatpush2.msra.mxu0 0.0
    %1743 = vmatprep.subr.mxu0 0.0
    %1744 = vmatpush2.msra.mxu0 0.0
    %1745 = vmatprep.subr.mxu0 0.0
    %1746 = vmatpush2.msra.mxu0 0.0
    %1747 = vmatprep.subr.mxu0 0.0
    %1748 = vmatpush2.msra.mxu0 0.0
    %1749 = vmatprep.subr.mxu0 0.0
    %1750 = vmatpush2.msra.mxu0 0.0
    %1751 = vmatprep.subr.mxu0 0.0
    %1752 = vmatpush2.msra.mxu0 0.0
    %1753 = vmatprep.subr.mxu0 0.0
    %1754 = vmatpush2.msra.mxu0 0.0
    %1755 = vmatprep.subr.mxu0 0.0
    %1756 = vmatpush2.msra.mxu0 0.0
    %1757 = vmatprep.subr.mxu0 0.0
    %1758 = vmatpush2.msra.mxu0 0.0
    %1759 = vmatprep.subr.mxu0 0.0
    %1760 = vmatpush2.msra.mxu0 0.0
    %1761 = vmatprep.mubr.f32.mxu0 0.0
    %1762 = vmatmul.mubr.f32.gmra.mxu0 %v1519
    %v1763 = vpop.f32.mrf.mxu0
    %v1764 = vadd.f32 %v1694, %v1763
    %v1765 = vpop.f32.mrf.mxu0
    %1766 = vdwg.mxu0
    %v1767 = vadd.f32 %v1764, %v155
    %v1768 = vxor.u32 %v1767, 2147483648
    %v1769 = vmul.f32 %v1768, 1.442695
    %v1770 = vpow.pop %v1769
    %v1771 = vadd.f32 %v1770, 1.0
    %v1772 = vrcp.pop %v1771
    %v1773 = vmul.f32 1.0, %v1772
    %v1774 = vtanh.pop %v1767
    %v1775 = vmul.f32 %v1773, %v1338
    %1777 = vrot.lane.b32.xlu0 %v1774, 64
    %v1778 = vpop.permute.xlu0 %1777
    %v1780 = vmul.f32 %v1773, %v1778
    %1782 = vrot.lane.b32.xlu0 %v1780, 32
    %v1783 = vpop.permute.xlu0 %1782
    %v1785 = vadd.f32 %v1775, %v1783
    %v1786 = vtanh.pop %v1785
    %1788 = vrot.lane.b32.xlu0 %v1786, 64
    %v1789 = vpop.permute.xlu0 %1788
    %v1791 = vmul.f32 %v1773, %v1789
    %1793 = vrot.lane.b32.xlu0 %v1514, 32
    %v1794 = vpop.permute.xlu0 %1793
    %v1795 = vsel %vm238, %v1794, 0
    %1797 = vmatprep.subr.mxu0 0.0
    %1798 = vmatpush1.msra.mxu0 0.0
    %1799 = vmatprep.subr.mxu0 0.0
    %1800 = vmatpush1.msra.mxu0 0.0
    %1801 = vmatprep.subr.mxu0 0.0
    %1802 = vmatpush1.msra.mxu0 0.0
    %1803 = vmatprep.subr.mxu0 0.0
    %1804 = vmatpush1.msra.mxu0 0.0
    %1805 = vmatprep.subr.mxu0 0.0
    %1806 = vmatpush1.msra.mxu0 0.0
    %1807 = vmatprep.subr.mxu0 0.0
    %1808 = vmatpush1.msra.mxu0 0.0
    %1809 = vmatprep.subr.mxu0 0.0
    %1810 = vmatpush1.msra.mxu0 0.0
    %1811 = vmatprep.subr.mxu0 0.0
    %1812 = vmatpush1.msra.mxu0 0.0
    %1813 = vmatprep.subr.mxu0 0.0
    %1814 = vmatpush1.msra.mxu0 0.0
    %1815 = vmatprep.subr.mxu0 0.0
    %1816 = vmatpush1.msra.mxu0 0.0
    %1817 = vmatprep.subr.mxu0 0.0
    %1818 = vmatpush1.msra.mxu0 0.0
    %1819 = vmatprep.subr.mxu0 0.0
    %1820 = vmatpush1.msra.mxu0 0.0
    %1821 = vmatprep.subr.mxu0 0.0
    %1822 = vmatpush1.msra.mxu0 %v153
    %1823 = vmatprep.subr.mxu0 0.0
    %1824 = vmatpush1.msra.mxu0 %v152
    %1825 = vmatprep.subr.mxu0 0.0
    %1826 = vmatpush1.msra.mxu0 %v151
    %1827 = vmatprep.subr.mxu0 0.0
    %1828 = vmatpush1.msra.mxu0 %v150
    %1829 = vmatprep.subr.mxu0 0.0
    %1830 = vmatpush2.msra.mxu0 0.0
    %1831 = vmatprep.subr.mxu0 0.0
    %1832 = vmatpush2.msra.mxu0 0.0
    %1833 = vmatprep.subr.mxu0 0.0
    %1834 = vmatpush2.msra.mxu0 0.0
    %1835 = vmatprep.subr.mxu0 0.0
    %1836 = vmatpush2.msra.mxu0 0.0
    %1837 = vmatprep.subr.mxu0 0.0
    %1838 = vmatpush2.msra.mxu0 0.0
    %1839 = vmatprep.subr.mxu0 0.0
    %1840 = vmatpush2.msra.mxu0 0.0
    %1841 = vmatprep.subr.mxu0 0.0
    %1842 = vmatpush2.msra.mxu0 0.0
    %1843 = vmatprep.subr.mxu0 0.0
    %1844 = vmatpush2.msra.mxu0 0.0
    %1845 = vmatprep.subr.mxu0 0.0
    %1846 = vmatpush2.msra.mxu0 0.0
    %1847 = vmatprep.subr.mxu0 0.0
    %1848 = vmatpush2.msra.mxu0 0.0
    %1849 = vmatprep.subr.mxu0 0.0
    %1850 = vmatpush2.msra.mxu0 0.0
    %1851 = vmatprep.subr.mxu0 0.0
    %1852 = vmatpush2.msra.mxu0 0.0
    %1853 = vmatprep.subr.mxu0 0.0
    %1854 = vmatpush2.msra.mxu0 0.0
    %1855 = vmatprep.subr.mxu0 0.0
    %1856 = vmatpush2.msra.mxu0 0.0
    %1857 = vmatprep.subr.mxu0 0.0
    %1858 = vmatpush2.msra.mxu0 0.0
    %1859 = vmatprep.subr.mxu0 0.0
    %1860 = vmatpush2.msra.mxu0 0.0
    %1861 = vmatprep.mubr.f32.mxu0 0.0
    %1862 = vmatmul.mubr.f32.gmra.mxu0 %v1795
    %v1863 = vpop.f32.mrf.mxu0
    %v1864 = vadd.f32 0.0, %v1863
    %v1865 = vpop.f32.mrf.mxu0
    %1866 = vdwg.mxu0
    %1867 = vmatprep.subr.mxu0 0.0
    %1868 = vmatpush1.msra.mxu0 0.0
    %1869 = vmatprep.subr.mxu0 0.0
    %1870 = vmatpush1.msra.mxu0 0.0
    %1871 = vmatprep.subr.mxu0 0.0
    %1872 = vmatpush1.msra.mxu0 0.0
    %1873 = vmatprep.subr.mxu0 0.0
    %1874 = vmatpush1.msra.mxu0 0.0
    %1875 = vmatprep.subr.mxu0 0.0
    %1876 = vmatpush1.msra.mxu0 0.0
    %1877 = vmatprep.subr.mxu0 0.0
    %1878 = vmatpush1.msra.mxu0 0.0
    %1879 = vmatprep.subr.mxu0 0.0
    %1880 = vmatpush1.msra.mxu0 0.0
    %1881 = vmatprep.subr.mxu0 0.0
    %1882 = vmatpush1.msra.mxu0 0.0
    %1883 = vmatprep.subr.mxu0 0.0
    %1884 = vmatpush1.msra.mxu0 0.0
    %1885 = vmatprep.subr.mxu0 0.0
    %1886 = vmatpush1.msra.mxu0 0.0
    %1887 = vmatprep.subr.mxu0 0.0
    %1888 = vmatpush1.msra.mxu0 0.0
    %1889 = vmatprep.subr.mxu0 0.0
    %1890 = vmatpush1.msra.mxu0 0.0
    %1891 = vmatprep.subr.mxu0 0.0
    %1892 = vmatpush1.msra.mxu0 %v141
    %1893 = vmatprep.subr.mxu0 0.0
    %1894 = vmatpush1.msra.mxu0 %v140
    %1895 = vmatprep.subr.mxu0 0.0
    %1896 = vmatpush1.msra.mxu0 %v139
    %1897 = vmatprep.subr.mxu0 0.0
    %1898 = vmatpush1.msra.mxu0 %v138
    %1899 = vmatprep.subr.mxu0 0.0
    %1900 = vmatpush2.msra.mxu0 0.0
    %1901 = vmatprep.subr.mxu0 0.0
    %1902 = vmatpush2.msra.mxu0 0.0
    %1903 = vmatprep.subr.mxu0 0.0
    %1904 = vmatpush2.msra.mxu0 0.0
    %1905 = vmatprep.subr.mxu0 0.0
    %1906 = vmatpush2.msra.mxu0 0.0
    %1907 = vmatprep.subr.mxu0 0.0
    %1908 = vmatpush2.msra.mxu0 0.0
    %1909 = vmatprep.subr.mxu0 0.0
    %1910 = vmatpush2.msra.mxu0 0.0
    %1911 = vmatprep.subr.mxu0 0.0
    %1912 = vmatpush2.msra.mxu0 0.0
    %1913 = vmatprep.subr.mxu0 0.0
    %1914 = vmatpush2.msra.mxu0 0.0
    %1915 = vmatprep.subr.mxu0 0.0
    %1916 = vmatpush2.msra.mxu0 0.0
    %1917 = vmatprep.subr.mxu0 0.0
    %1918 = vmatpush2.msra.mxu0 0.0
    %1919 = vmatprep.subr.mxu0 0.0
    %1920 = vmatpush2.msra.mxu0 0.0
    %1921 = vmatprep.subr.mxu0 0.0
    %1922 = vmatpush2.msra.mxu0 0.0
    %1923 = vmatprep.subr.mxu0 0.0
    %1924 = vmatpush2.msra.mxu0 0.0
    %1925 = vmatprep.subr.mxu0 0.0
    %1926 = vmatpush2.msra.mxu0 0.0
    %1927 = vmatprep.subr.mxu0 0.0
    %1928 = vmatpush2.msra.mxu0 0.0
    %1929 = vmatprep.subr.mxu0 0.0
    %1930 = vmatpush2.msra.mxu0 0.0
    %1931 = vmatprep.mubr.f32.mxu0 0.0
    %1932 = vmatmul.mubr.f32.gmra.mxu0 %v1625
    %v1933 = vpop.f32.mrf.mxu0
    %v1934 = vadd.f32 %v1864, %v1933
    %v1935 = vpop.f32.mrf.mxu0
    %1936 = vdwg.mxu0
    %v1937 = vadd.f32 %v1934, %v156
    %v1938 = vxor.u32 %v1937, 2147483648
    %v1939 = vmul.f32 %v1938, 1.442695
    %v1940 = vpow.pop %v1939
    %v1941 = vadd.f32 %v1940, 1.0
    %v1942 = vrcp.pop %v1941
    %v1943 = vmul.f32 1.0, %v1942
    %v1944 = vtanh.pop %v1937
    %v1945 = vmul.f32 %v1943, %v1508
    %1947 = vrot.lane.b32.xlu0 %v1944, 64
    %v1948 = vpop.permute.xlu0 %1947
    %v1950 = vmul.f32 %v1943, %v1948
    %1952 = vrot.lane.b32.xlu0 %v1950, 32
    %v1953 = vpop.permute.xlu0 %1952
    %v1955 = vadd.f32 %v1945, %v1953
    %v1956 = vtanh.pop %v1955
    %1958 = vrot.lane.b32.xlu0 %v1956, 64
    %v1959 = vpop.permute.xlu0 %1958
    %v1961 = vmul.f32 %v1943, %v1959
    %v1963 = vrot.slane %v1621, 4
    %1964 = vrot.lane.b32.xlu0 %v1963, 32
    %v1965 = vpop.permute.xlu0 %1964
    %v1966 = vsel %vm238, %v1965, 0
    %1968 = vmatprep.subr.mxu0 0.0
    %1969 = vmatpush1.msra.mxu0 0.0
    %1970 = vmatprep.subr.mxu0 0.0
    %1971 = vmatpush1.msra.mxu0 0.0
    %1972 = vmatprep.subr.mxu0 0.0
    %1973 = vmatpush1.msra.mxu0 0.0
    %1974 = vmatprep.subr.mxu0 0.0
    %1975 = vmatpush1.msra.mxu0 0.0
    %1976 = vmatprep.subr.mxu0 0.0
    %1977 = vmatpush1.msra.mxu0 0.0
    %1978 = vmatprep.subr.mxu0 0.0
    %1979 = vmatpush1.msra.mxu0 0.0
    %1980 = vmatprep.subr.mxu0 0.0
    %1981 = vmatpush1.msra.mxu0 0.0
    %1982 = vmatprep.subr.mxu0 0.0
    %1983 = vmatpush1.msra.mxu0 0.0
    %1984 = vmatprep.subr.mxu0 0.0
    %1985 = vmatpush1.msra.mxu0 0.0
    %1986 = vmatprep.subr.mxu0 0.0
    %1987 = vmatpush1.msra.mxu0 0.0
    %1988 = vmatprep.subr.mxu0 0.0
    %1989 = vmatpush1.msra.mxu0 0.0
    %1990 = vmatprep.subr.mxu0 0.0
    %1991 = vmatpush1.msra.mxu0 0.0
    %1992 = vmatprep.subr.mxu0 0.0
    %1993 = vmatpush1.msra.mxu0 %v145
    %1994 = vmatprep.subr.mxu0 0.0
    %1995 = vmatpush1.msra.mxu0 %v144
    %1996 = vmatprep.subr.mxu0 0.0
    %1997 = vmatpush1.msra.mxu0 %v143
    %1998 = vmatprep.subr.mxu0 0.0
    %1999 = vmatpush1.msra.mxu0 %v142
    %2000 = vmatprep.subr.mxu0 0.0
    %2001 = vmatpush2.msra.mxu0 0.0
    %2002 = vmatprep.subr.mxu0 0.0
    %2003 = vmatpush2.msra.mxu0 0.0
    %2004 = vmatprep.subr.mxu0 0.0
    %2005 = vmatpush2.msra.mxu0 0.0
    %2006 = vmatprep.subr.mxu0 0.0
    %2007 = vmatpush2.msra.mxu0 0.0
    %2008 = vmatprep.subr.mxu0 0.0
    %2009 = vmatpush2.msra.mxu0 0.0
    %2010 = vmatprep.subr.mxu0 0.0
    %2011 = vmatpush2.msra.mxu0 0.0
    %2012 = vmatprep.subr.mxu0 0.0
    %2013 = vmatpush2.msra.mxu0 0.0
    %2014 = vmatprep.subr.mxu0 0.0
    %2015 = vmatpush2.msra.mxu0 0.0
    %2016 = vmatprep.subr.mxu0 0.0
    %2017 = vmatpush2.msra.mxu0 0.0
    %2018 = vmatprep.subr.mxu0 0.0
    %2019 = vmatpush2.msra.mxu0 0.0
    %2020 = vmatprep.subr.mxu0 0.0
    %2021 = vmatpush2.msra.mxu0 0.0
    %2022 = vmatprep.subr.mxu0 0.0
    %2023 = vmatpush2.msra.mxu0 0.0
    %2024 = vmatprep.subr.mxu0 0.0
    %2025 = vmatpush2.msra.mxu0 0.0
    %2026 = vmatprep.subr.mxu0 0.0
    %2027 = vmatpush2.msra.mxu0 0.0
    %2028 = vmatprep.subr.mxu0 0.0
    %2029 = vmatpush2.msra.mxu0 0.0
    %2030 = vmatprep.subr.mxu0 0.0
    %2031 = vmatpush2.msra.mxu0 0.0
    %2032 = vmatprep.mubr.f32.mxu0 0.0
    %2033 = vmatmul.mubr.f32.gmra.mxu0 %v1966
    %v2034 = vpop.f32.mrf.mxu0
    %v2035 = vadd.f32 0.0, %v2034
    %v2036 = vpop.f32.mrf.mxu0
    %2037 = vdwg.mxu0
    %v2039 = vrot.slane %v2035, 3
    %v2041 = vadd.f32 %v235, %v2039
    %v2042 = vxor.u32 %v2041, 2147483648
    %v2043 = vmul.f32 %v2042, 1.442695
    %v2044 = vpow.pop %v2043
    %v2045 = vadd.f32 %v2044, 1.0
    %v2046 = vrcp.pop %v2045
    %v2047 = vmul.f32 1.0, %v2046
    %v2048 = vtanh.pop %v2041
    %v2050 = vrot.slane %v1615, 7
    %v2052 = vmul.f32 %v2047, %v2050
    %2054 = vrot.lane.b32.xlu0 %v2048, 64
    %v2055 = vpop.permute.xlu0 %2054
    %v2057 = vmul.f32 %v2047, %v2055
    %2059 = vrot.lane.b32.xlu0 %v2057, 32
    %v2060 = vpop.permute.xlu0 %2059
    %v2062 = vadd.f32 %v2052, %v2060
    %v2063 = vtanh.pop %v2062
    %2065 = vrot.lane.b32.xlu0 %v2063, 64
    %v2066 = vpop.permute.xlu0 %2065
    %v2068 = vmul.f32 %v2047, %v2066
    %2070 = vrot.lane.b32.xlu0 %v1791, 32
    %v2071 = vpop.permute.xlu0 %2070
    %v2072 = vsel %vm238, %v2071, 0
    %2074 = vmatprep.subr.mxu0 0.0
    %2075 = vmatpush1.msra.mxu0 0.0
    %2076 = vmatprep.subr.mxu0 0.0
    %2077 = vmatpush1.msra.mxu0 0.0
    %2078 = vmatprep.subr.mxu0 0.0
    %2079 = vmatpush1.msra.mxu0 0.0
    %2080 = vmatprep.subr.mxu0 0.0
    %2081 = vmatpush1.msra.mxu0 0.0
    %2082 = vmatprep.subr.mxu0 0.0
    %2083 = vmatpush1.msra.mxu0 0.0
    %2084 = vmatprep.subr.mxu0 0.0
    %2085 = vmatpush1.msra.mxu0 0.0
    %2086 = vmatprep.subr.mxu0 0.0
    %2087 = vmatpush1.msra.mxu0 0.0
    %2088 = vmatprep.subr.mxu0 0.0
    %2089 = vmatpush1.msra.mxu0 0.0
    %2090 = vmatprep.subr.mxu0 0.0
    %2091 = vmatpush1.msra.mxu0 0.0
    %2092 = vmatprep.subr.mxu0 0.0
    %2093 = vmatpush1.msra.mxu0 0.0
    %2094 = vmatprep.subr.mxu0 0.0
    %2095 = vmatpush1.msra.mxu0 0.0
    %2096 = vmatprep.subr.mxu0 0.0
    %2097 = vmatpush1.msra.mxu0 0.0
    %2098 = vmatprep.subr.mxu0 0.0
    %2099 = vmatpush1.msra.mxu0 %v149
    %2100 = vmatprep.subr.mxu0 0.0
    %2101 = vmatpush1.msra.mxu0 %v148
    %2102 = vmatprep.subr.mxu0 0.0
    %2103 = vmatpush1.msra.mxu0 %v147
    %2104 = vmatprep.subr.mxu0 0.0
    %2105 = vmatpush1.msra.mxu0 %v146
    %2106 = vmatprep.subr.mxu0 0.0
    %2107 = vmatpush2.msra.mxu0 0.0
    %2108 = vmatprep.subr.mxu0 0.0
    %2109 = vmatpush2.msra.mxu0 0.0
    %2110 = vmatprep.subr.mxu0 0.0
    %2111 = vmatpush2.msra.mxu0 0.0
    %2112 = vmatprep.subr.mxu0 0.0
    %2113 = vmatpush2.msra.mxu0 0.0
    %2114 = vmatprep.subr.mxu0 0.0
    %2115 = vmatpush2.msra.mxu0 0.0
    %2116 = vmatprep.subr.mxu0 0.0
    %2117 = vmatpush2.msra.mxu0 0.0
    %2118 = vmatprep.subr.mxu0 0.0
    %2119 = vmatpush2.msra.mxu0 0.0
    %2120 = vmatprep.subr.mxu0 0.0
    %2121 = vmatpush2.msra.mxu0 0.0
    %2122 = vmatprep.subr.mxu0 0.0
    %2123 = vmatpush2.msra.mxu0 0.0
    %2124 = vmatprep.subr.mxu0 0.0
    %2125 = vmatpush2.msra.mxu0 0.0
    %2126 = vmatprep.subr.mxu0 0.0
    %2127 = vmatpush2.msra.mxu0 0.0
    %2128 = vmatprep.subr.mxu0 0.0
    %2129 = vmatpush2.msra.mxu0 0.0
    %2130 = vmatprep.subr.mxu0 0.0
    %2131 = vmatpush2.msra.mxu0 0.0
    %2132 = vmatprep.subr.mxu0 0.0
    %2133 = vmatpush2.msra.mxu0 0.0
    %2134 = vmatprep.subr.mxu0 0.0
    %2135 = vmatpush2.msra.mxu0 0.0
    %2136 = vmatprep.subr.mxu0 0.0
    %2137 = vmatpush2.msra.mxu0 0.0
    %2138 = vmatprep.mubr.f32.mxu0 0.0
    %2139 = vmatmul.mubr.f32.gmra.mxu0 %v2072
    %v2140 = vpop.f32.mrf.mxu0
    %v2141 = vadd.f32 0.0, %v2140
    %v2142 = vpop.f32.mrf.mxu0
    %2143 = vdwg.mxu0
    %2144 = vmatprep.subr.mxu0 0.0
    %2145 = vmatpush1.msra.mxu0 0.0
    %2146 = vmatprep.subr.mxu0 0.0
    %2147 = vmatpush1.msra.mxu0 0.0
    %2148 = vmatprep.subr.mxu0 0.0
    %2149 = vmatpush1.msra.mxu0 0.0
    %2150 = vmatprep.subr.mxu0 0.0
    %2151 = vmatpush1.msra.mxu0 0.0
    %2152 = vmatprep.subr.mxu0 0.0
    %2153 = vmatpush1.msra.mxu0 0.0
    %2154 = vmatprep.subr.mxu0 0.0
    %2155 = vmatpush1.msra.mxu0 0.0
    %2156 = vmatprep.subr.mxu0 0.0
    %2157 = vmatpush1.msra.mxu0 0.0
    %2158 = vmatprep.subr.mxu0 0.0
    %2159 = vmatpush1.msra.mxu0 0.0
    %2160 = vmatprep.subr.mxu0 0.0
    %2161 = vmatpush1.msra.mxu0 0.0
    %2162 = vmatprep.subr.mxu0 0.0
    %2163 = vmatpush1.msra.mxu0 0.0
    %2164 = vmatprep.subr.mxu0 0.0
    %2165 = vmatpush1.msra.mxu0 0.0
    %2166 = vmatprep.subr.mxu0 0.0
    %2167 = vmatpush1.msra.mxu0 0.0
    %2168 = vmatprep.subr.mxu0 0.0
    %2169 = vmatpush1.msra.mxu0 %v137
    %2170 = vmatprep.subr.mxu0 0.0
    %2171 = vmatpush1.msra.mxu0 %v136
    %2172 = vmatprep.subr.mxu0 0.0
    %2173 = vmatpush1.msra.mxu0 %v135
    %2174 = vmatprep.subr.mxu0 0.0
    %2175 = vmatpush1.msra.mxu0 %v134
    %2176 = vmatprep.subr.mxu0 0.0
    %2177 = vmatpush2.msra.mxu0 0.0
    %2178 = vmatprep.subr.mxu0 0.0
    %2179 = vmatpush2.msra.mxu0 0.0
    %2180 = vmatprep.subr.mxu0 0.0
    %2181 = vmatpush2.msra.mxu0 0.0
    %2182 = vmatprep.subr.mxu0 0.0
    %2183 = vmatpush2.msra.mxu0 0.0
    %2184 = vmatprep.subr.mxu0 0.0
    %2185 = vmatpush2.msra.mxu0 0.0
    %2186 = vmatprep.subr.mxu0 0.0
    %2187 = vmatpush2.msra.mxu0 0.0
    %2188 = vmatprep.subr.mxu0 0.0
    %2189 = vmatpush2.msra.mxu0 0.0
    %2190 = vmatprep.subr.mxu0 0.0
    %2191 = vmatpush2.msra.mxu0 0.0
    %2192 = vmatprep.subr.mxu0 0.0
    %2193 = vmatpush2.msra.mxu0 0.0
    %2194 = vmatprep.subr.mxu0 0.0
    %2195 = vmatpush2.msra.mxu0 0.0
    %2196 = vmatprep.subr.mxu0 0.0
    %2197 = vmatpush2.msra.mxu0 0.0
    %2198 = vmatprep.subr.mxu0 0.0
    %2199 = vmatpush2.msra.mxu0 0.0
    %2200 = vmatprep.subr.mxu0 0.0
    %2201 = vmatpush2.msra.mxu0 0.0
    %2202 = vmatprep.subr.mxu0 0.0
    %2203 = vmatpush2.msra.mxu0 0.0
    %2204 = vmatprep.subr.mxu0 0.0
    %2205 = vmatpush2.msra.mxu0 0.0
    %2206 = vmatprep.subr.mxu0 0.0
    %2207 = vmatpush2.msra.mxu0 0.0
    %2208 = vmatprep.mubr.f32.mxu0 0.0
    %2209 = vmatmul.mubr.f32.gmra.mxu0 %v1966
    %v2210 = vpop.f32.mrf.mxu0
    %v2211 = vadd.f32 %v2141, %v2210
    %v2212 = vpop.f32.mrf.mxu0
    %2213 = vdwg.mxu0
    %v2214 = vadd.f32 %v2211, %v155
    %v2215 = vxor.u32 %v2214, 2147483648
    %v2216 = vmul.f32 %v2215, 1.442695
    %v2217 = vpow.pop %v2216
    %v2218 = vadd.f32 %v2217, 1.0
    %v2219 = vrcp.pop %v2218
    %v2220 = vmul.f32 1.0, %v2219
    %v2221 = vtanh.pop %v2214
    %v2222 = vmul.f32 %v2220, %v1785
    %2224 = vrot.lane.b32.xlu0 %v2221, 64
    %v2225 = vpop.permute.xlu0 %2224
    %v2227 = vmul.f32 %v2220, %v2225
    %2229 = vrot.lane.b32.xlu0 %v2227, 32
    %v2230 = vpop.permute.xlu0 %2229
    %v2232 = vadd.f32 %v2222, %v2230
    %v2233 = vtanh.pop %v2232
    %2235 = vrot.lane.b32.xlu0 %v2233, 64
    %v2236 = vpop.permute.xlu0 %2235
    %v2238 = vmul.f32 %v2220, %v2236
    %2240 = vrot.lane.b32.xlu0 %v1961, 32
    %v2241 = vpop.permute.xlu0 %2240
    %v2242 = vsel %vm238, %v2241, 0
    %2244 = vmatprep.subr.mxu0 0.0
    %2245 = vmatpush1.msra.mxu0 0.0
    %2246 = vmatprep.subr.mxu0 0.0
    %2247 = vmatpush1.msra.mxu0 0.0
    %2248 = vmatprep.subr.mxu0 0.0
    %2249 = vmatpush1.msra.mxu0 0.0
    %2250 = vmatprep.subr.mxu0 0.0
    %2251 = vmatpush1.msra.mxu0 0.0
    %2252 = vmatprep.subr.mxu0 0.0
    %2253 = vmatpush1.msra.mxu0 0.0
    %2254 = vmatprep.subr.mxu0 0.0
    %2255 = vmatpush1.msra.mxu0 0.0
    %2256 = vmatprep.subr.mxu0 0.0
    %2257 = vmatpush1.msra.mxu0 0.0
    %2258 = vmatprep.subr.mxu0 0.0
    %2259 = vmatpush1.msra.mxu0 0.0
    %2260 = vmatprep.subr.mxu0 0.0
    %2261 = vmatpush1.msra.mxu0 0.0
    %2262 = vmatprep.subr.mxu0 0.0
    %2263 = vmatpush1.msra.mxu0 0.0
    %2264 = vmatprep.subr.mxu0 0.0
    %2265 = vmatpush1.msra.mxu0 0.0
    %2266 = vmatprep.subr.mxu0 0.0
    %2267 = vmatpush1.msra.mxu0 0.0
    %2268 = vmatprep.subr.mxu0 0.0
    %2269 = vmatpush1.msra.mxu0 %v153
    %2270 = vmatprep.subr.mxu0 0.0
    %2271 = vmatpush1.msra.mxu0 %v152
    %2272 = vmatprep.subr.mxu0 0.0
    %2273 = vmatpush1.msra.mxu0 %v151
    %2274 = vmatprep.subr.mxu0 0.0
    %2275 = vmatpush1.msra.mxu0 %v150
    %2276 = vmatprep.subr.mxu0 0.0
    %2277 = vmatpush2.msra.mxu0 0.0
    %2278 = vmatprep.subr.mxu0 0.0
    %2279 = vmatpush2.msra.mxu0 0.0
    %2280 = vmatprep.subr.mxu0 0.0
    %2281 = vmatpush2.msra.mxu0 0.0
    %2282 = vmatprep.subr.mxu0 0.0
    %2283 = vmatpush2.msra.mxu0 0.0
    %2284 = vmatprep.subr.mxu0 0.0
    %2285 = vmatpush2.msra.mxu0 0.0
    %2286 = vmatprep.subr.mxu0 0.0
    %2287 = vmatpush2.msra.mxu0 0.0
    %2288 = vmatprep.subr.mxu0 0.0
    %2289 = vmatpush2.msra.mxu0 0.0
    %2290 = vmatprep.subr.mxu0 0.0
    %2291 = vmatpush2.msra.mxu0 0.0
    %2292 = vmatprep.subr.mxu0 0.0
    %2293 = vmatpush2.msra.mxu0 0.0
    %2294 = vmatprep.subr.mxu0 0.0
    %2295 = vmatpush2.msra.mxu0 0.0
    %2296 = vmatprep.subr.mxu0 0.0
    %2297 = vmatpush2.msra.mxu0 0.0
    %2298 = vmatprep.subr.mxu0 0.0
    %2299 = vmatpush2.msra.mxu0 0.0
    %2300 = vmatprep.subr.mxu0 0.0
    %2301 = vmatpush2.msra.mxu0 0.0
    %2302 = vmatprep.subr.mxu0 0.0
    %2303 = vmatpush2.msra.mxu0 0.0
    %2304 = vmatprep.subr.mxu0 0.0
    %2305 = vmatpush2.msra.mxu0 0.0
    %2306 = vmatprep.subr.mxu0 0.0
    %2307 = vmatpush2.msra.mxu0 0.0
    %2308 = vmatprep.mubr.f32.mxu0 0.0
    %2309 = vmatmul.mubr.f32.gmra.mxu0 %v2242
    %v2310 = vpop.f32.mrf.mxu0
    %v2311 = vadd.f32 0.0, %v2310
    %v2312 = vpop.f32.mrf.mxu0
    %2313 = vdwg.mxu0
    %2314 = vmatprep.subr.mxu0 0.0
    %2315 = vmatpush1.msra.mxu0 0.0
    %2316 = vmatprep.subr.mxu0 0.0
    %2317 = vmatpush1.msra.mxu0 0.0
    %2318 = vmatprep.subr.mxu0 0.0
    %2319 = vmatpush1.msra.mxu0 0.0
    %2320 = vmatprep.subr.mxu0 0.0
    %2321 = vmatpush1.msra.mxu0 0.0
    %2322 = vmatprep.subr.mxu0 0.0
    %2323 = vmatpush1.msra.mxu0 0.0
    %2324 = vmatprep.subr.mxu0 0.0
    %2325 = vmatpush1.msra.mxu0 0.0
    %2326 = vmatprep.subr.mxu0 0.0
    %2327 = vmatpush1.msra.mxu0 0.0
    %2328 = vmatprep.subr.mxu0 0.0
    %2329 = vmatpush1.msra.mxu0 0.0
    %2330 = vmatprep.subr.mxu0 0.0
    %2331 = vmatpush1.msra.mxu0 0.0
    %2332 = vmatprep.subr.mxu0 0.0
    %2333 = vmatpush1.msra.mxu0 0.0
    %2334 = vmatprep.subr.mxu0 0.0
    %2335 = vmatpush1.msra.mxu0 0.0
    %2336 = vmatprep.subr.mxu0 0.0
    %2337 = vmatpush1.msra.mxu0 0.0
    %2338 = vmatprep.subr.mxu0 0.0
    %2339 = vmatpush1.msra.mxu0 %v141
    %2340 = vmatprep.subr.mxu0 0.0
    %2341 = vmatpush1.msra.mxu0 %v140
    %2342 = vmatprep.subr.mxu0 0.0
    %2343 = vmatpush1.msra.mxu0 %v139
    %2344 = vmatprep.subr.mxu0 0.0
    %2345 = vmatpush1.msra.mxu0 %v138
    %2346 = vmatprep.subr.mxu0 0.0
    %2347 = vmatpush2.msra.mxu0 0.0
    %2348 = vmatprep.subr.mxu0 0.0
    %2349 = vmatpush2.msra.mxu0 0.0
    %2350 = vmatprep.subr.mxu0 0.0
    %2351 = vmatpush2.msra.mxu0 0.0
    %2352 = vmatprep.subr.mxu0 0.0
    %2353 = vmatpush2.msra.mxu0 0.0
    %2354 = vmatprep.subr.mxu0 0.0
    %2355 = vmatpush2.msra.mxu0 0.0
    %2356 = vmatprep.subr.mxu0 0.0
    %2357 = vmatpush2.msra.mxu0 0.0
    %2358 = vmatprep.subr.mxu0 0.0
    %2359 = vmatpush2.msra.mxu0 0.0
    %2360 = vmatprep.subr.mxu0 0.0
    %2361 = vmatpush2.msra.mxu0 0.0
    %2362 = vmatprep.subr.mxu0 0.0
    %2363 = vmatpush2.msra.mxu0 0.0
    %2364 = vmatprep.subr.mxu0 0.0
    %2365 = vmatpush2.msra.mxu0 0.0
    %2366 = vmatprep.subr.mxu0 0.0
    %2367 = vmatpush2.msra.mxu0 0.0
    %2368 = vmatprep.subr.mxu0 0.0
    %2369 = vmatpush2.msra.mxu0 0.0
    %2370 = vmatprep.subr.mxu0 0.0
    %2371 = vmatpush2.msra.mxu0 0.0
    %2372 = vmatprep.subr.mxu0 0.0
    %2373 = vmatpush2.msra.mxu0 0.0
    %2374 = vmatprep.subr.mxu0 0.0
    %2375 = vmatpush2.msra.mxu0 0.0
    %2376 = vmatprep.subr.mxu0 0.0
    %2377 = vmatpush2.msra.mxu0 0.0
    %2378 = vmatprep.mubr.f32.mxu0 0.0
    %2379 = vmatmul.mubr.f32.gmra.mxu0 %v2072
    %v2380 = vpop.f32.mrf.mxu0
    %v2381 = vadd.f32 %v2311, %v2380
    %v2382 = vpop.f32.mrf.mxu0
    %2383 = vdwg.mxu0
    %v2384 = vadd.f32 %v2381, %v156
    %v2385 = vxor.u32 %v2384, 2147483648
    %v2386 = vmul.f32 %v2385, 1.442695
    %v2387 = vpow.pop %v2386
    %v2388 = vadd.f32 %v2387, 1.0
    %v2389 = vrcp.pop %v2388
    %v2390 = vmul.f32 1.0, %v2389
    %v2391 = vtanh.pop %v2384
    %v2392 = vmul.f32 %v2390, %v1955
    %2394 = vrot.lane.b32.xlu0 %v2391, 64
    %v2395 = vpop.permute.xlu0 %2394
    %v2397 = vmul.f32 %v2390, %v2395
    %2399 = vrot.lane.b32.xlu0 %v2397, 32
    %v2400 = vpop.permute.xlu0 %2399
    %v2402 = vadd.f32 %v2392, %v2400
    %v2403 = vtanh.pop %v2402
    %2405 = vrot.lane.b32.xlu0 %v2403, 64
    %v2406 = vpop.permute.xlu0 %2405
    %v2408 = vmul.f32 %v2390, %v2406
    %v2410 = vrot.slane %v2068, 5
    %2411 = vrot.lane.b32.xlu0 %v2410, 32
    %v2412 = vpop.permute.xlu0 %2411
    %v2413 = vsel %vm238, %v2412, 0
    %2415 = vmatprep.subr.mxu0 0.0
    %2416 = vmatpush1.msra.mxu0 0.0
    %2417 = vmatprep.subr.mxu0 0.0
    %2418 = vmatpush1.msra.mxu0 0.0
    %2419 = vmatprep.subr.mxu0 0.0
    %2420 = vmatpush1.msra.mxu0 0.0
    %2421 = vmatprep.subr.mxu0 0.0
    %2422 = vmatpush1.msra.mxu0 0.0
    %2423 = vmatprep.subr.mxu0 0.0
    %2424 = vmatpush1.msra.mxu0 0.0
    %2425 = vmatprep.subr.mxu0 0.0
    %2426 = vmatpush1.msra.mxu0 0.0
    %2427 = vmatprep.subr.mxu0 0.0
    %2428 = vmatpush1.msra.mxu0 0.0
    %2429 = vmatprep.subr.mxu0 0.0
    %2430 = vmatpush1.msra.mxu0 0.0
    %2431 = vmatprep.subr.mxu0 0.0
    %2432 = vmatpush1.msra.mxu0 0.0
    %2433 = vmatprep.subr.mxu0 0.0
    %2434 = vmatpush1.msra.mxu0 0.0
    %2435 = vmatprep.subr.mxu0 0.0
    %2436 = vmatpush1.msra.mxu0 0.0
    %2437 = vmatprep.subr.mxu0 0.0
    %2438 = vmatpush1.msra.mxu0 0.0
    %2439 = vmatprep.subr.mxu0 0.0
    %2440 = vmatpush1.msra.mxu0 %v145
    %2441 = vmatprep.subr.mxu0 0.0
    %2442 = vmatpush1.msra.mxu0 %v144
    %2443 = vmatprep.subr.mxu0 0.0
    %2444 = vmatpush1.msra.mxu0 %v143
    %2445 = vmatprep.subr.mxu0 0.0
    %2446 = vmatpush1.msra.mxu0 %v142
    %2447 = vmatprep.subr.mxu0 0.0
    %2448 = vmatpush2.msra.mxu0 0.0
    %2449 = vmatprep.subr.mxu0 0.0
    %2450 = vmatpush2.msra.mxu0 0.0
    %2451 = vmatprep.subr.mxu0 0.0
    %2452 = vmatpush2.msra.mxu0 0.0
    %2453 = vmatprep.subr.mxu0 0.0
    %2454 = vmatpush2.msra.mxu0 0.0
    %2455 = vmatprep.subr.mxu0 0.0
    %2456 = vmatpush2.msra.mxu0 0.0
    %2457 = vmatprep.subr.mxu0 0.0
    %2458 = vmatpush2.msra.mxu0 0.0
    %2459 = vmatprep.subr.mxu0 0.0
    %2460 = vmatpush2.msra.mxu0 0.0
    %2461 = vmatprep.subr.mxu0 0.0
    %2462 = vmatpush2.msra.mxu0 0.0
    %2463 = vmatprep.subr.mxu0 0.0
    %2464 = vmatpush2.msra.mxu0 0.0
    %2465 = vmatprep.subr.mxu0 0.0
    %2466 = vmatpush2.msra.mxu0 0.0
    %2467 = vmatprep.subr.mxu0 0.0
    %2468 = vmatpush2.msra.mxu0 0.0
    %2469 = vmatprep.subr.mxu0 0.0
    %2470 = vmatpush2.msra.mxu0 0.0
    %2471 = vmatprep.subr.mxu0 0.0
    %2472 = vmatpush2.msra.mxu0 0.0
    %2473 = vmatprep.subr.mxu0 0.0
    %2474 = vmatpush2.msra.mxu0 0.0
    %2475 = vmatprep.subr.mxu0 0.0
    %2476 = vmatpush2.msra.mxu0 0.0
    %2477 = vmatprep.subr.mxu0 0.0
    %2478 = vmatpush2.msra.mxu0 0.0
    %2479 = vmatprep.mubr.f32.mxu0 0.0
    %2480 = vmatmul.mubr.f32.gmra.mxu0 %v2413
    %v2481 = vpop.f32.mrf.mxu0
    %v2482 = vadd.f32 0.0, %v2481
    %v2483 = vpop.f32.mrf.mxu0
    %2484 = vdwg.mxu0
    %v2486 = vrot.slane %v2482, 2
    %v2488 = vadd.f32 %v235, %v2486
    %v2489 = vxor.u32 %v2488, 2147483648
    %v2490 = vmul.f32 %v2489, 1.442695
    %v2491 = vpow.pop %v2490
    %v2492 = vadd.f32 %v2491, 1.0
    %v2493 = vrcp.pop %v2492
    %v2494 = vmul.f32 1.0, %v2493
    %v2495 = vtanh.pop %v2488
    %v2497 = vrot.slane %v2062, 7
    %v2499 = vmul.f32 %v2494, %v2497
    %2501 = vrot.lane.b32.xlu0 %v2495, 64
    %v2502 = vpop.permute.xlu0 %2501
    %v2504 = vmul.f32 %v2494, %v2502
    %2506 = vrot.lane.b32.xlu0 %v2504, 32
    %v2507 = vpop.permute.xlu0 %2506
    %v2509 = vadd.f32 %v2499, %v2507
    %v2510 = vtanh.pop %v2509
    %2512 = vrot.lane.b32.xlu0 %v2510, 64
    %v2513 = vpop.permute.xlu0 %2512
    %v2515 = vmul.f32 %v2494, %v2513
    %2517 = vrot.lane.b32.xlu0 %v2238, 32
    %v2518 = vpop.permute.xlu0 %2517
    %v2519 = vsel %vm238, %v2518, 0
    %2521 = vmatprep.subr.mxu0 0.0
    %2522 = vmatpush1.msra.mxu0 0.0
    %2523 = vmatprep.subr.mxu0 0.0
    %2524 = vmatpush1.msra.mxu0 0.0
    %2525 = vmatprep.subr.mxu0 0.0
    %2526 = vmatpush1.msra.mxu0 0.0
    %2527 = vmatprep.subr.mxu0 0.0
    %2528 = vmatpush1.msra.mxu0 0.0
    %2529 = vmatprep.subr.mxu0 0.0
    %2530 = vmatpush1.msra.mxu0 0.0
    %2531 = vmatprep.subr.mxu0 0.0
    %2532 = vmatpush1.msra.mxu0 0.0
    %2533 = vmatprep.subr.mxu0 0.0
    %2534 = vmatpush1.msra.mxu0 0.0
    %2535 = vmatprep.subr.mxu0 0.0
    %2536 = vmatpush1.msra.mxu0 0.0
    %2537 = vmatprep.subr.mxu0 0.0
    %2538 = vmatpush1.msra.mxu0 0.0
    %2539 = vmatprep.subr.mxu0 0.0
    %2540 = vmatpush1.msra.mxu0 0.0
    %2541 = vmatprep.subr.mxu0 0.0
    %2542 = vmatpush1.msra.mxu0 0.0
    %2543 = vmatprep.subr.mxu0 0.0
    %2544 = vmatpush1.msra.mxu0 0.0
    %2545 = vmatprep.subr.mxu0 0.0
    %2546 = vmatpush1.msra.mxu0 %v149
    %2547 = vmatprep.subr.mxu0 0.0
    %2548 = vmatpush1.msra.mxu0 %v148
    %2549 = vmatprep.subr.mxu0 0.0
    %2550 = vmatpush1.msra.mxu0 %v147
    %2551 = vmatprep.subr.mxu0 0.0
    %2552 = vmatpush1.msra.mxu0 %v146
    %2553 = vmatprep.subr.mxu0 0.0
    %2554 = vmatpush2.msra.mxu0 0.0
    %2555 = vmatprep.subr.mxu0 0.0
    %2556 = vmatpush2.msra.mxu0 0.0
    %2557 = vmatprep.subr.mxu0 0.0
    %2558 = vmatpush2.msra.mxu0 0.0
    %2559 = vmatprep.subr.mxu0 0.0
    %2560 = vmatpush2.msra.mxu0 0.0
    %2561 = vmatprep.subr.mxu0 0.0
    %2562 = vmatpush2.msra.mxu0 0.0
    %2563 = vmatprep.subr.mxu0 0.0
    %2564 = vmatpush2.msra.mxu0 0.0
    %2565 = vmatprep.subr.mxu0 0.0
    %2566 = vmatpush2.msra.mxu0 0.0
    %2567 = vmatprep.subr.mxu0 0.0
    %2568 = vmatpush2.msra.mxu0 0.0
    %2569 = vmatprep.subr.mxu0 0.0
    %2570 = vmatpush2.msra.mxu0 0.0
    %2571 = vmatprep.subr.mxu0 0.0
    %2572 = vmatpush2.msra.mxu0 0.0
    %2573 = vmatprep.subr.mxu0 0.0
    %2574 = vmatpush2.msra.mxu0 0.0
    %2575 = vmatprep.subr.mxu0 0.0
    %2576 = vmatpush2.msra.mxu0 0.0
    %2577 = vmatprep.subr.mxu0 0.0
    %2578 = vmatpush2.msra.mxu0 0.0
    %2579 = vmatprep.subr.mxu0 0.0
    %2580 = vmatpush2.msra.mxu0 0.0
    %2581 = vmatprep.subr.mxu0 0.0
    %2582 = vmatpush2.msra.mxu0 0.0
    %2583 = vmatprep.subr.mxu0 0.0
    %2584 = vmatpush2.msra.mxu0 0.0
    %2585 = vmatprep.mubr.f32.mxu0 0.0
    %2586 = vmatmul.mubr.f32.gmra.mxu0 %v2519
    %v2587 = vpop.f32.mrf.mxu0
    %v2588 = vadd.f32 0.0, %v2587
    %v2589 = vpop.f32.mrf.mxu0
    %2590 = vdwg.mxu0
    %2591 = vmatprep.subr.mxu0 0.0
    %2592 = vmatpush1.msra.mxu0 0.0
    %2593 = vmatprep.subr.mxu0 0.0
    %2594 = vmatpush1.msra.mxu0 0.0
    %2595 = vmatprep.subr.mxu0 0.0
    %2596 = vmatpush1.msra.mxu0 0.0
    %2597 = vmatprep.subr.mxu0 0.0
    %2598 = vmatpush1.msra.mxu0 0.0
    %2599 = vmatprep.subr.mxu0 0.0
    %2600 = vmatpush1.msra.mxu0 0.0
    %2601 = vmatprep.subr.mxu0 0.0
    %2602 = vmatpush1.msra.mxu0 0.0
    %2603 = vmatprep.subr.mxu0 0.0
    %2604 = vmatpush1.msra.mxu0 0.0
    %2605 = vmatprep.subr.mxu0 0.0
    %2606 = vmatpush1.msra.mxu0 0.0
    %2607 = vmatprep.subr.mxu0 0.0
    %2608 = vmatpush1.msra.mxu0 0.0
    %2609 = vmatprep.subr.mxu0 0.0
    %2610 = vmatpush1.msra.mxu0 0.0
    %2611 = vmatprep.subr.mxu0 0.0
    %2612 = vmatpush1.msra.mxu0 0.0
    %2613 = vmatprep.subr.mxu0 0.0
    %2614 = vmatpush1.msra.mxu0 0.0
    %2615 = vmatprep.subr.mxu0 0.0
    %2616 = vmatpush1.msra.mxu0 %v137
    %2617 = vmatprep.subr.mxu0 0.0
    %2618 = vmatpush1.msra.mxu0 %v136
    %2619 = vmatprep.subr.mxu0 0.0
    %2620 = vmatpush1.msra.mxu0 %v135
    %2621 = vmatprep.subr.mxu0 0.0
    %2622 = vmatpush1.msra.mxu0 %v134
    %2623 = vmatprep.subr.mxu0 0.0
    %2624 = vmatpush2.msra.mxu0 0.0
    %2625 = vmatprep.subr.mxu0 0.0
    %2626 = vmatpush2.msra.mxu0 0.0
    %2627 = vmatprep.subr.mxu0 0.0
    %2628 = vmatpush2.msra.mxu0 0.0
    %2629 = vmatprep.subr.mxu0 0.0
    %2630 = vmatpush2.msra.mxu0 0.0
    %2631 = vmatprep.subr.mxu0 0.0
    %2632 = vmatpush2.msra.mxu0 0.0
    %2633 = vmatprep.subr.mxu0 0.0
    %2634 = vmatpush2.msra.mxu0 0.0
    %2635 = vmatprep.subr.mxu0 0.0
    %2636 = vmatpush2.msra.mxu0 0.0
    %2637 = vmatprep.subr.mxu0 0.0
    %2638 = vmatpush2.msra.mxu0 0.0
    %2639 = vmatprep.subr.mxu0 0.0
    %2640 = vmatpush2.msra.mxu0 0.0
    %2641 = vmatprep.subr.mxu0 0.0
    %2642 = vmatpush2.msra.mxu0 0.0
    %2643 = vmatprep.subr.mxu0 0.0
    %2644 = vmatpush2.msra.mxu0 0.0
    %2645 = vmatprep.subr.mxu0 0.0
    %2646 = vmatpush2.msra.mxu0 0.0
    %2647 = vmatprep.subr.mxu0 0.0
    %2648 = vmatpush2.msra.mxu0 0.0
    %2649 = vmatprep.subr.mxu0 0.0
    %2650 = vmatpush2.msra.mxu0 0.0
    %2651 = vmatprep.subr.mxu0 0.0
    %2652 = vmatpush2.msra.mxu0 0.0
    %2653 = vmatprep.subr.mxu0 0.0
    %2654 = vmatpush2.msra.mxu0 0.0
    %2655 = vmatprep.mubr.f32.mxu0 0.0
    %2656 = vmatmul.mubr.f32.gmra.mxu0 %v2413
    %v2657 = vpop.f32.mrf.mxu0
    %v2658 = vadd.f32 %v2588, %v2657
    %v2659 = vpop.f32.mrf.mxu0
    %2660 = vdwg.mxu0
    %v2661 = vadd.f32 %v2658, %v155
    %v2662 = vxor.u32 %v2661, 2147483648
    %v2663 = vmul.f32 %v2662, 1.442695
    %v2664 = vpow.pop %v2663
    %v2665 = vadd.f32 %v2664, 1.0
    %v2666 = vrcp.pop %v2665
    %v2667 = vmul.f32 1.0, %v2666
    %v2668 = vtanh.pop %v2661
    %v2669 = vmul.f32 %v2667, %v2232
    %2671 = vrot.lane.b32.xlu0 %v2668, 64
    %v2672 = vpop.permute.xlu0 %2671
    %v2674 = vmul.f32 %v2667, %v2672
    %2676 = vrot.lane.b32.xlu0 %v2674, 32
    %v2677 = vpop.permute.xlu0 %2676
    %v2679 = vadd.f32 %v2669, %v2677
    %v2680 = vtanh.pop %v2679
    %2682 = vrot.lane.b32.xlu0 %v2680, 64
    %v2683 = vpop.permute.xlu0 %2682
    %v2685 = vmul.f32 %v2667, %v2683
    %2687 = vrot.lane.b32.xlu0 %v2408, 32
    %v2688 = vpop.permute.xlu0 %2687
    %v2689 = vsel %vm238, %v2688, 0
    %2691 = vmatprep.subr.mxu0 0.0
    %2692 = vmatpush1.msra.mxu0 0.0
    %2693 = vmatprep.subr.mxu0 0.0
    %2694 = vmatpush1.msra.mxu0 0.0
    %2695 = vmatprep.subr.mxu0 0.0
    %2696 = vmatpush1.msra.mxu0 0.0
    %2697 = vmatprep.subr.mxu0 0.0
    %2698 = vmatpush1.msra.mxu0 0.0
    %2699 = vmatprep.subr.mxu0 0.0
    %2700 = vmatpush1.msra.mxu0 0.0
    %2701 = vmatprep.subr.mxu0 0.0
    %2702 = vmatpush1.msra.mxu0 0.0
    %2703 = vmatprep.subr.mxu0 0.0
    %2704 = vmatpush1.msra.mxu0 0.0
    %2705 = vmatprep.subr.mxu0 0.0
    %2706 = vmatpush1.msra.mxu0 0.0
    %2707 = vmatprep.subr.mxu0 0.0
    %2708 = vmatpush1.msra.mxu0 0.0
    %2709 = vmatprep.subr.mxu0 0.0
    %2710 = vmatpush1.msra.mxu0 0.0
    %2711 = vmatprep.subr.mxu0 0.0
    %2712 = vmatpush1.msra.mxu0 0.0
    %2713 = vmatprep.subr.mxu0 0.0
    %2714 = vmatpush1.msra.mxu0 0.0
    %2715 = vmatprep.subr.mxu0 0.0
    %2716 = vmatpush1.msra.mxu0 %v153
    %2717 = vmatprep.subr.mxu0 0.0
    %2718 = vmatpush1.msra.mxu0 %v152
    %2719 = vmatprep.subr.mxu0 0.0
    %2720 = vmatpush1.msra.mxu0 %v151
    %2721 = vmatprep.subr.mxu0 0.0
    %2722 = vmatpush1.msra.mxu0 %v150
    %2723 = vmatprep.subr.mxu0 0.0
    %2724 = vmatpush2.msra.mxu0 0.0
    %2725 = vmatprep.subr.mxu0 0.0
    %2726 = vmatpush2.msra.mxu0 0.0
    %2727 = vmatprep.subr.mxu0 0.0
    %2728 = vmatpush2.msra.mxu0 0.0
    %2729 = vmatprep.subr.mxu0 0.0
    %2730 = vmatpush2.msra.mxu0 0.0
    %2731 = vmatprep.subr.mxu0 0.0
    %2732 = vmatpush2.msra.mxu0 0.0
    %2733 = vmatprep.subr.mxu0 0.0
    %2734 = vmatpush2.msra.mxu0 0.0
    %2735 = vmatprep.subr.mxu0 0.0
    %2736 = vmatpush2.msra.mxu0 0.0
    %2737 = vmatprep.subr.mxu0 0.0
    %2738 = vmatpush2.msra.mxu0 0.0
    %2739 = vmatprep.subr.mxu0 0.0
    %2740 = vmatpush2.msra.mxu0 0.0
    %2741 = vmatprep.subr.mxu0 0.0
    %2742 = vmatpush2.msra.mxu0 0.0
    %2743 = vmatprep.subr.mxu0 0.0
    %2744 = vmatpush2.msra.mxu0 0.0
    %2745 = vmatprep.subr.mxu0 0.0
    %2746 = vmatpush2.msra.mxu0 0.0
    %2747 = vmatprep.subr.mxu0 0.0
    %2748 = vmatpush2.msra.mxu0 0.0
    %2749 = vmatprep.subr.mxu0 0.0
    %2750 = vmatpush2.msra.mxu0 0.0
    %2751 = vmatprep.subr.mxu0 0.0
    %2752 = vmatpush2.msra.mxu0 0.0
    %2753 = vmatprep.subr.mxu0 0.0
    %2754 = vmatpush2.msra.mxu0 0.0
    %2755 = vmatprep.mubr.f32.mxu0 0.0
    %2756 = vmatmul.mubr.f32.gmra.mxu0 %v2689
    %v2757 = vpop.f32.mrf.mxu0
    %v2758 = vadd.f32 0.0, %v2757
    %v2759 = vpop.f32.mrf.mxu0
    %2760 = vdwg.mxu0
    %2761 = vmatprep.subr.mxu0 0.0
    %2762 = vmatpush1.msra.mxu0 0.0
    %2763 = vmatprep.subr.mxu0 0.0
    %2764 = vmatpush1.msra.mxu0 0.0
    %2765 = vmatprep.subr.mxu0 0.0
    %2766 = vmatpush1.msra.mxu0 0.0
    %2767 = vmatprep.subr.mxu0 0.0
    %2768 = vmatpush1.msra.mxu0 0.0
    %2769 = vmatprep.subr.mxu0 0.0
    %2770 = vmatpush1.msra.mxu0 0.0
    %2771 = vmatprep.subr.mxu0 0.0
    %2772 = vmatpush1.msra.mxu0 0.0
    %2773 = vmatprep.subr.mxu0 0.0
    %2774 = vmatpush1.msra.mxu0 0.0
    %2775 = vmatprep.subr.mxu0 0.0
    %2776 = vmatpush1.msra.mxu0 0.0
    %2777 = vmatprep.subr.mxu0 0.0
    %2778 = vmatpush1.msra.mxu0 0.0
    %2779 = vmatprep.subr.mxu0 0.0
    %2780 = vmatpush1.msra.mxu0 0.0
    %2781 = vmatprep.subr.mxu0 0.0
    %2782 = vmatpush1.msra.mxu0 0.0
    %2783 = vmatprep.subr.mxu0 0.0
    %2784 = vmatpush1.msra.mxu0 0.0
    %2785 = vmatprep.subr.mxu0 0.0
    %2786 = vmatpush1.msra.mxu0 %v141
    %2787 = vmatprep.subr.mxu0 0.0
    %2788 = vmatpush1.msra.mxu0 %v140
    %2789 = vmatprep.subr.mxu0 0.0
    %2790 = vmatpush1.msra.mxu0 %v139
    %2791 = vmatprep.subr.mxu0 0.0
    %2792 = vmatpush1.msra.mxu0 %v138
    %2793 = vmatprep.subr.mxu0 0.0
    %2794 = vmatpush2.msra.mxu0 0.0
    %2795 = vmatprep.subr.mxu0 0.0
    %2796 = vmatpush2.msra.mxu0 0.0
    %2797 = vmatprep.subr.mxu0 0.0
    %2798 = vmatpush2.msra.mxu0 0.0
    %2799 = vmatprep.subr.mxu0 0.0
    %2800 = vmatpush2.msra.mxu0 0.0
    %2801 = vmatprep.subr.mxu0 0.0
    %2802 = vmatpush2.msra.mxu0 0.0
    %2803 = vmatprep.subr.mxu0 0.0
    %2804 = vmatpush2.msra.mxu0 0.0
    %2805 = vmatprep.subr.mxu0 0.0
    %2806 = vmatpush2.msra.mxu0 0.0
    %2807 = vmatprep.subr.mxu0 0.0
    %2808 = vmatpush2.msra.mxu0 0.0
    %2809 = vmatprep.subr.mxu0 0.0
    %2810 = vmatpush2.msra.mxu0 0.0
    %2811 = vmatprep.subr.mxu0 0.0
    %2812 = vmatpush2.msra.mxu0 0.0
    %2813 = vmatprep.subr.mxu0 0.0
    %2814 = vmatpush2.msra.mxu0 0.0
    %2815 = vmatprep.subr.mxu0 0.0
    %2816 = vmatpush2.msra.mxu0 0.0
    %2817 = vmatprep.subr.mxu0 0.0
    %2818 = vmatpush2.msra.mxu0 0.0
    %2819 = vmatprep.subr.mxu0 0.0
    %2820 = vmatpush2.msra.mxu0 0.0
    %2821 = vmatprep.subr.mxu0 0.0
    %2822 = vmatpush2.msra.mxu0 0.0
    %2823 = vmatprep.subr.mxu0 0.0
    %2824 = vmatpush2.msra.mxu0 0.0
    %2825 = vmatprep.mubr.f32.mxu0 0.0
    %2826 = vmatmul.mubr.f32.gmra.mxu0 %v2519
    %v2827 = vpop.f32.mrf.mxu0
    %v2828 = vadd.f32 %v2758, %v2827
    %v2829 = vpop.f32.mrf.mxu0
    %2830 = vdwg.mxu0
    %v2831 = vadd.f32 %v2828, %v156
    %v2832 = vxor.u32 %v2831, 2147483648
    %v2833 = vmul.f32 %v2832, 1.442695
    %v2834 = vpow.pop %v2833
    %v2835 = vadd.f32 %v2834, 1.0
    %v2836 = vrcp.pop %v2835
    %v2837 = vmul.f32 1.0, %v2836
    %v2838 = vtanh.pop %v2831
    %v2839 = vmul.f32 %v2837, %v2402
    %2841 = vrot.lane.b32.xlu0 %v2838, 64
    %v2842 = vpop.permute.xlu0 %2841
    %v2844 = vmul.f32 %v2837, %v2842
    %2846 = vrot.lane.b32.xlu0 %v2844, 32
    %v2847 = vpop.permute.xlu0 %2846
    %v2849 = vadd.f32 %v2839, %v2847
    %v2850 = vtanh.pop %v2849
    %2852 = vrot.lane.b32.xlu0 %v2850, 64
    %v2853 = vpop.permute.xlu0 %2852
    %v2855 = vmul.f32 %v2837, %v2853
    %v2857 = vrot.slane %v2515, 6
    %2858 = vrot.lane.b32.xlu0 %v2857, 32
    %v2859 = vpop.permute.xlu0 %2858
    %v2860 = vsel %vm238, %v2859, 0
    %2862 = vmatprep.subr.mxu0 0.0
    %2863 = vmatpush1.msra.mxu0 0.0
    %2864 = vmatprep.subr.mxu0 0.0
    %2865 = vmatpush1.msra.mxu0 0.0
    %2866 = vmatprep.subr.mxu0 0.0
    %2867 = vmatpush1.msra.mxu0 0.0
    %2868 = vmatprep.subr.mxu0 0.0
    %2869 = vmatpush1.msra.mxu0 0.0
    %2870 = vmatprep.subr.mxu0 0.0
    %2871 = vmatpush1.msra.mxu0 0.0
    %2872 = vmatprep.subr.mxu0 0.0
    %2873 = vmatpush1.msra.mxu0 0.0
    %2874 = vmatprep.subr.mxu0 0.0
    %2875 = vmatpush1.msra.mxu0 0.0
    %2876 = vmatprep.subr.mxu0 0.0
    %2877 = vmatpush1.msra.mxu0 0.0
    %2878 = vmatprep.subr.mxu0 0.0
    %2879 = vmatpush1.msra.mxu0 0.0
    %2880 = vmatprep.subr.mxu0 0.0
    %2881 = vmatpush1.msra.mxu0 0.0
    %2882 = vmatprep.subr.mxu0 0.0
    %2883 = vmatpush1.msra.mxu0 0.0
    %2884 = vmatprep.subr.mxu0 0.0
    %2885 = vmatpush1.msra.mxu0 0.0
    %2886 = vmatprep.subr.mxu0 0.0
    %2887 = vmatpush1.msra.mxu0 %v145
    %2888 = vmatprep.subr.mxu0 0.0
    %2889 = vmatpush1.msra.mxu0 %v144
    %2890 = vmatprep.subr.mxu0 0.0
    %2891 = vmatpush1.msra.mxu0 %v143
    %2892 = vmatprep.subr.mxu0 0.0
    %2893 = vmatpush1.msra.mxu0 %v142
    %2894 = vmatprep.subr.mxu0 0.0
    %2895 = vmatpush2.msra.mxu0 0.0
    %2896 = vmatprep.subr.mxu0 0.0
    %2897 = vmatpush2.msra.mxu0 0.0
    %2898 = vmatprep.subr.mxu0 0.0
    %2899 = vmatpush2.msra.mxu0 0.0
    %2900 = vmatprep.subr.mxu0 0.0
    %2901 = vmatpush2.msra.mxu0 0.0
    %2902 = vmatprep.subr.mxu0 0.0
    %2903 = vmatpush2.msra.mxu0 0.0
    %2904 = vmatprep.subr.mxu0 0.0
    %2905 = vmatpush2.msra.mxu0 0.0
    %2906 = vmatprep.subr.mxu0 0.0
    %2907 = vmatpush2.msra.mxu0 0.0
    %2908 = vmatprep.subr.mxu0 0.0
    %2909 = vmatpush2.msra.mxu0 0.0
    %2910 = vmatprep.subr.mxu0 0.0
    %2911 = vmatpush2.msra.mxu0 0.0
    %2912 = vmatprep.subr.mxu0 0.0
    %2913 = vmatpush2.msra.mxu0 0.0
    %2914 = vmatprep.subr.mxu0 0.0
    %2915 = vmatpush2.msra.mxu0 0.0
    %2916 = vmatprep.subr.mxu0 0.0
    %2917 = vmatpush2.msra.mxu0 0.0
    %2918 = vmatprep.subr.mxu0 0.0
    %2919 = vmatpush2.msra.mxu0 0.0
    %2920 = vmatprep.subr.mxu0 0.0
    %2921 = vmatpush2.msra.mxu0 0.0
    %2922 = vmatprep.subr.mxu0 0.0
    %2923 = vmatpush2.msra.mxu0 0.0
    %2924 = vmatprep.subr.mxu0 0.0
    %2925 = vmatpush2.msra.mxu0 0.0
    %2926 = vmatprep.mubr.f32.mxu0 0.0
    %2927 = vmatmul.mubr.f32.gmra.mxu0 %v2860
    %v2928 = vpop.f32.mrf.mxu0
    %v2929 = vadd.f32 0.0, %v2928
    %v2930 = vpop.f32.mrf.mxu0
    %2931 = vdwg.mxu0
    %v2933 = vrot.slane %v2929, 1
    %v2935 = vadd.f32 %v235, %v2933
    %v2936 = vxor.u32 %v2935, 2147483648
    %v2937 = vmul.f32 %v2936, 1.442695
    %v2938 = vpow.pop %v2937
    %v2939 = vadd.f32 %v2938, 1.0
    %v2940 = vrcp.pop %v2939
    %v2941 = vmul.f32 1.0, %v2940
    %v2942 = vtanh.pop %v2935
    %v2944 = vrot.slane %v2509, 7
    %v2946 = vmul.f32 %v2941, %v2944
    %2948 = vrot.lane.b32.xlu0 %v2942, 64
    %v2949 = vpop.permute.xlu0 %2948
    %v2951 = vmul.f32 %v2941, %v2949
    %2953 = vrot.lane.b32.xlu0 %v2951, 32
    %v2954 = vpop.permute.xlu0 %2953
    %v2956 = vadd.f32 %v2946, %v2954
    %v2957 = vtanh.pop %v2956
    %2959 = vrot.lane.b32.xlu0 %v2957, 64
    %v2960 = vpop.permute.xlu0 %2959
    %v2962 = vmul.f32 %v2941, %v2960
    %2964 = vrot.lane.b32.xlu0 %v2685, 32
    %v2965 = vpop.permute.xlu0 %2964
    %v2966 = vsel %vm238, %v2965, 0
    %2968 = vmatprep.subr.mxu0 0.0
    %2969 = vmatpush1.msra.mxu0 0.0
    %2970 = vmatprep.subr.mxu0 0.0
    %2971 = vmatpush1.msra.mxu0 0.0
    %2972 = vmatprep.subr.mxu0 0.0
    %2973 = vmatpush1.msra.mxu0 0.0
    %2974 = vmatprep.subr.mxu0 0.0
    %2975 = vmatpush1.msra.mxu0 0.0
    %2976 = vmatprep.subr.mxu0 0.0
    %2977 = vmatpush1.msra.mxu0 0.0
    %2978 = vmatprep.subr.mxu0 0.0
    %2979 = vmatpush1.msra.mxu0 0.0
    %2980 = vmatprep.subr.mxu0 0.0
    %2981 = vmatpush1.msra.mxu0 0.0
    %2982 = vmatprep.subr.mxu0 0.0
    %2983 = vmatpush1.msra.mxu0 0.0
    %2984 = vmatprep.subr.mxu0 0.0
    %2985 = vmatpush1.msra.mxu0 0.0
    %2986 = vmatprep.subr.mxu0 0.0
    %2987 = vmatpush1.msra.mxu0 0.0
    %2988 = vmatprep.subr.mxu0 0.0
    %2989 = vmatpush1.msra.mxu0 0.0
    %2990 = vmatprep.subr.mxu0 0.0
    %2991 = vmatpush1.msra.mxu0 0.0
    %2992 = vmatprep.subr.mxu0 0.0
    %2993 = vmatpush1.msra.mxu0 %v149
    %2994 = vmatprep.subr.mxu0 0.0
    %2995 = vmatpush1.msra.mxu0 %v148
    %2996 = vmatprep.subr.mxu0 0.0
    %2997 = vmatpush1.msra.mxu0 %v147
    %2998 = vmatprep.subr.mxu0 0.0
    %2999 = vmatpush1.msra.mxu0 %v146
    %3000 = vmatprep.subr.mxu0 0.0
    %3001 = vmatpush2.msra.mxu0 0.0
    %3002 = vmatprep.subr.mxu0 0.0
    %3003 = vmatpush2.msra.mxu0 0.0
    %3004 = vmatprep.subr.mxu0 0.0
    %3005 = vmatpush2.msra.mxu0 0.0
    %3006 = vmatprep.subr.mxu0 0.0
    %3007 = vmatpush2.msra.mxu0 0.0
    %3008 = vmatprep.subr.mxu0 0.0
    %3009 = vmatpush2.msra.mxu0 0.0
    %3010 = vmatprep.subr.mxu0 0.0
    %3011 = vmatpush2.msra.mxu0 0.0
    %3012 = vmatprep.subr.mxu0 0.0
    %3013 = vmatpush2.msra.mxu0 0.0
    %3014 = vmatprep.subr.mxu0 0.0
    %3015 = vmatpush2.msra.mxu0 0.0
    %3016 = vmatprep.subr.mxu0 0.0
    %3017 = vmatpush2.msra.mxu0 0.0
    %3018 = vmatprep.subr.mxu0 0.0
    %3019 = vmatpush2.msra.mxu0 0.0
    %3020 = vmatprep.subr.mxu0 0.0
    %3021 = vmatpush2.msra.mxu0 0.0
    %3022 = vmatprep.subr.mxu0 0.0
    %3023 = vmatpush2.msra.mxu0 0.0
    %3024 = vmatprep.subr.mxu0 0.0
    %3025 = vmatpush2.msra.mxu0 0.0
    %3026 = vmatprep.subr.mxu0 0.0
    %3027 = vmatpush2.msra.mxu0 0.0
    %3028 = vmatprep.subr.mxu0 0.0
    %3029 = vmatpush2.msra.mxu0 0.0
    %3030 = vmatprep.subr.mxu0 0.0
    %3031 = vmatpush2.msra.mxu0 0.0
    %3032 = vmatprep.mubr.f32.mxu0 0.0
    %3033 = vmatmul.mubr.f32.gmra.mxu0 %v2966
    %v3034 = vpop.f32.mrf.mxu0
    %v3035 = vadd.f32 0.0, %v3034
    %v3036 = vpop.f32.mrf.mxu0
    %3037 = vdwg.mxu0
    %3038 = vmatprep.subr.mxu0 0.0
    %3039 = vmatpush1.msra.mxu0 0.0
    %3040 = vmatprep.subr.mxu0 0.0
    %3041 = vmatpush1.msra.mxu0 0.0
    %3042 = vmatprep.subr.mxu0 0.0
    %3043 = vmatpush1.msra.mxu0 0.0
    %3044 = vmatprep.subr.mxu0 0.0
    %3045 = vmatpush1.msra.mxu0 0.0
    %3046 = vmatprep.subr.mxu0 0.0
    %3047 = vmatpush1.msra.mxu0 0.0
    %3048 = vmatprep.subr.mxu0 0.0
    %3049 = vmatpush1.msra.mxu0 0.0
    %3050 = vmatprep.subr.mxu0 0.0
    %3051 = vmatpush1.msra.mxu0 0.0
    %3052 = vmatprep.subr.mxu0 0.0
    %3053 = vmatpush1.msra.mxu0 0.0
    %3054 = vmatprep.subr.mxu0 0.0
    %3055 = vmatpush1.msra.mxu0 0.0
    %3056 = vmatprep.subr.mxu0 0.0
    %3057 = vmatpush1.msra.mxu0 0.0
    %3058 = vmatprep.subr.mxu0 0.0
    %3059 = vmatpush1.msra.mxu0 0.0
    %3060 = vmatprep.subr.mxu0 0.0
    %3061 = vmatpush1.msra.mxu0 0.0
    %3062 = vmatprep.subr.mxu0 0.0
    %3063 = vmatpush1.msra.mxu0 %v137
    %3064 = vmatprep.subr.mxu0 0.0
    %3065 = vmatpush1.msra.mxu0 %v136
    %3066 = vmatprep.subr.mxu0 0.0
    %3067 = vmatpush1.msra.mxu0 %v135
    %3068 = vmatprep.subr.mxu0 0.0
    %3069 = vmatpush1.msra.mxu0 %v134
    %3070 = vmatprep.subr.mxu0 0.0
    %3071 = vmatpush2.msra.mxu0 0.0
    %3072 = vmatprep.subr.mxu0 0.0
    %3073 = vmatpush2.msra.mxu0 0.0
    %3074 = vmatprep.subr.mxu0 0.0
    %3075 = vmatpush2.msra.mxu0 0.0
    %3076 = vmatprep.subr.mxu0 0.0
    %3077 = vmatpush2.msra.mxu0 0.0
    %3078 = vmatprep.subr.mxu0 0.0
    %3079 = vmatpush2.msra.mxu0 0.0
    %3080 = vmatprep.subr.mxu0 0.0
    %3081 = vmatpush2.msra.mxu0 0.0
    %3082 = vmatprep.subr.mxu0 0.0
    %3083 = vmatpush2.msra.mxu0 0.0
    %3084 = vmatprep.subr.mxu0 0.0
    %3085 = vmatpush2.msra.mxu0 0.0
    %3086 = vmatprep.subr.mxu0 0.0
    %3087 = vmatpush2.msra.mxu0 0.0
    %3088 = vmatprep.subr.mxu0 0.0
    %3089 = vmatpush2.msra.mxu0 0.0
    %3090 = vmatprep.subr.mxu0 0.0
    %3091 = vmatpush2.msra.mxu0 0.0
    %3092 = vmatprep.subr.mxu0 0.0
    %3093 = vmatpush2.msra.mxu0 0.0
    %3094 = vmatprep.subr.mxu0 0.0
    %3095 = vmatpush2.msra.mxu0 0.0
    %3096 = vmatprep.subr.mxu0 0.0
    %3097 = vmatpush2.msra.mxu0 0.0
    %3098 = vmatprep.subr.mxu0 0.0
    %3099 = vmatpush2.msra.mxu0 0.0
    %3100 = vmatprep.subr.mxu0 0.0
    %3101 = vmatpush2.msra.mxu0 0.0
    %3102 = vmatprep.mubr.f32.mxu0 0.0
    %3103 = vmatmul.mubr.f32.gmra.mxu0 %v2860
    %v3104 = vpop.f32.mrf.mxu0
    %v3105 = vadd.f32 %v3035, %v3104
    %v3106 = vpop.f32.mrf.mxu0
    %3107 = vdwg.mxu0
    %v3108 = vadd.f32 %v3105, %v155
    %v3109 = vxor.u32 %v3108, 2147483648
    %v3110 = vmul.f32 %v3109, 1.442695
    %v3111 = vpow.pop %v3110
    %v3112 = vadd.f32 %v3111, 1.0
    %v3113 = vrcp.pop %v3112
    %v3114 = vmul.f32 1.0, %v3113
    %v3115 = vtanh.pop %v3108
    %v3116 = vmul.f32 %v3114, %v2679
    %3118 = vrot.lane.b32.xlu0 %v3115, 64
    %v3119 = vpop.permute.xlu0 %3118
    %v3121 = vmul.f32 %v3114, %v3119
    %3123 = vrot.lane.b32.xlu0 %v3121, 32
    %v3124 = vpop.permute.xlu0 %3123
    %v3126 = vadd.f32 %v3116, %v3124
    %v3127 = vtanh.pop %v3126
    %3129 = vrot.lane.b32.xlu0 %v3127, 64
    %v3130 = vpop.permute.xlu0 %3129
    %v3132 = vmul.f32 %v3114, %v3130
    %3134 = vrot.lane.b32.xlu0 %v2855, 32
    %v3135 = vpop.permute.xlu0 %3134
    %v3136 = vsel %vm238, %v3135, 0
    %3138 = vmatprep.subr.mxu0 0.0
    %3139 = vmatpush1.msra.mxu0 0.0
    %3140 = vmatprep.subr.mxu0 0.0
    %3141 = vmatpush1.msra.mxu0 0.0
    %3142 = vmatprep.subr.mxu0 0.0
    %3143 = vmatpush1.msra.mxu0 0.0
    %3144 = vmatprep.subr.mxu0 0.0
    %3145 = vmatpush1.msra.mxu0 0.0
    %3146 = vmatprep.subr.mxu0 0.0
    %3147 = vmatpush1.msra.mxu0 0.0
    %3148 = vmatprep.subr.mxu0 0.0
    %3149 = vmatpush1.msra.mxu0 0.0
    %3150 = vmatprep.subr.mxu0 0.0
    %3151 = vmatpush1.msra.mxu0 0.0
    %3152 = vmatprep.subr.mxu0 0.0
    %3153 = vmatpush1.msra.mxu0 0.0
    %3154 = vmatprep.subr.mxu0 0.0
    %3155 = vmatpush1.msra.mxu0 0.0
    %3156 = vmatprep.subr.mxu0 0.0
    %3157 = vmatpush1.msra.mxu0 0.0
    %3158 = vmatprep.subr.mxu0 0.0
    %3159 = vmatpush1.msra.mxu0 0.0
    %3160 = vmatprep.subr.mxu0 0.0
    %3161 = vmatpush1.msra.mxu0 0.0
    %3162 = vmatprep.subr.mxu0 0.0
    %3163 = vmatpush1.msra.mxu0 %v153
    %3164 = vmatprep.subr.mxu0 0.0
    %3165 = vmatpush1.msra.mxu0 %v152
    %3166 = vmatprep.subr.mxu0 0.0
    %3167 = vmatpush1.msra.mxu0 %v151
    %3168 = vmatprep.subr.mxu0 0.0
    %3169 = vmatpush1.msra.mxu0 %v150
    %3170 = vmatprep.subr.mxu0 0.0
    %3171 = vmatpush2.msra.mxu0 0.0
    %3172 = vmatprep.subr.mxu0 0.0
    %3173 = vmatpush2.msra.mxu0 0.0
    %3174 = vmatprep.subr.mxu0 0.0
    %3175 = vmatpush2.msra.mxu0 0.0
    %3176 = vmatprep.subr.mxu0 0.0
    %3177 = vmatpush2.msra.mxu0 0.0
    %3178 = vmatprep.subr.mxu0 0.0
    %3179 = vmatpush2.msra.mxu0 0.0
    %3180 = vmatprep.subr.mxu0 0.0
    %3181 = vmatpush2.msra.mxu0 0.0
    %3182 = vmatprep.subr.mxu0 0.0
    %3183 = vmatpush2.msra.mxu0 0.0
    %3184 = vmatprep.subr.mxu0 0.0
    %3185 = vmatpush2.msra.mxu0 0.0
    %3186 = vmatprep.subr.mxu0 0.0
    %3187 = vmatpush2.msra.mxu0 0.0
    %3188 = vmatprep.subr.mxu0 0.0
    %3189 = vmatpush2.msra.mxu0 0.0
    %3190 = vmatprep.subr.mxu0 0.0
    %3191 = vmatpush2.msra.mxu0 0.0
    %3192 = vmatprep.subr.mxu0 0.0
    %3193 = vmatpush2.msra.mxu0 0.0
    %3194 = vmatprep.subr.mxu0 0.0
    %3195 = vmatpush2.msra.mxu0 0.0
    %3196 = vmatprep.subr.mxu0 0.0
    %3197 = vmatpush2.msra.mxu0 0.0
    %3198 = vmatprep.subr.mxu0 0.0
    %3199 = vmatpush2.msra.mxu0 0.0
    %3200 = vmatprep.subr.mxu0 0.0
    %3201 = vmatpush2.msra.mxu0 0.0
    %3202 = vmatprep.mubr.f32.mxu0 0.0
    %3203 = vmatmul.mubr.f32.gmra.mxu0 %v3136
    %v3204 = vpop.f32.mrf.mxu0
    %v3205 = vadd.f32 0.0, %v3204
    %v3206 = vpop.f32.mrf.mxu0
    %3207 = vdwg.mxu0
    %3208 = vmatprep.subr.mxu0 0.0
    %3209 = vmatpush1.msra.mxu0 0.0
    %3210 = vmatprep.subr.mxu0 0.0
    %3211 = vmatpush1.msra.mxu0 0.0
    %3212 = vmatprep.subr.mxu0 0.0
    %3213 = vmatpush1.msra.mxu0 0.0
    %3214 = vmatprep.subr.mxu0 0.0
    %3215 = vmatpush1.msra.mxu0 0.0
    %3216 = vmatprep.subr.mxu0 0.0
    %3217 = vmatpush1.msra.mxu0 0.0
    %3218 = vmatprep.subr.mxu0 0.0
    %3219 = vmatpush1.msra.mxu0 0.0
    %3220 = vmatprep.subr.mxu0 0.0
    %3221 = vmatpush1.msra.mxu0 0.0
    %3222 = vmatprep.subr.mxu0 0.0
    %3223 = vmatpush1.msra.mxu0 0.0
    %3224 = vmatprep.subr.mxu0 0.0
    %3225 = vmatpush1.msra.mxu0 0.0
    %3226 = vmatprep.subr.mxu0 0.0
    %3227 = vmatpush1.msra.mxu0 0.0
    %3228 = vmatprep.subr.mxu0 0.0
    %3229 = vmatpush1.msra.mxu0 0.0
    %3230 = vmatprep.subr.mxu0 0.0
    %3231 = vmatpush1.msra.mxu0 0.0
    %3232 = vmatprep.subr.mxu0 0.0
    %3233 = vmatpush1.msra.mxu0 %v141
    %3234 = vmatprep.subr.mxu0 0.0
    %3235 = vmatpush1.msra.mxu0 %v140
    %3236 = vmatprep.subr.mxu0 0.0
    %3237 = vmatpush1.msra.mxu0 %v139
    %3238 = vmatprep.subr.mxu0 0.0
    %3239 = vmatpush1.msra.mxu0 %v138
    %3240 = vmatprep.subr.mxu0 0.0
    %3241 = vmatpush2.msra.mxu0 0.0
    %3242 = vmatprep.subr.mxu0 0.0
    %3243 = vmatpush2.msra.mxu0 0.0
    %3244 = vmatprep.subr.mxu0 0.0
    %3245 = vmatpush2.msra.mxu0 0.0
    %3246 = vmatprep.subr.mxu0 0.0
    %3247 = vmatpush2.msra.mxu0 0.0
    %3248 = vmatprep.subr.mxu0 0.0
    %3249 = vmatpush2.msra.mxu0 0.0
    %3250 = vmatprep.subr.mxu0 0.0
    %3251 = vmatpush2.msra.mxu0 0.0
    %3252 = vmatprep.subr.mxu0 0.0
    %3253 = vmatpush2.msra.mxu0 0.0
    %3254 = vmatprep.subr.mxu0 0.0
    %3255 = vmatpush2.msra.mxu0 0.0
    %3256 = vmatprep.subr.mxu0 0.0
    %3257 = vmatpush2.msra.mxu0 0.0
    %3258 = vmatprep.subr.mxu0 0.0
    %3259 = vmatpush2.msra.mxu0 0.0
    %3260 = vmatprep.subr.mxu0 0.0
    %3261 = vmatpush2.msra.mxu0 0.0
    %3262 = vmatprep.subr.mxu0 0.0
    %3263 = vmatpush2.msra.mxu0 0.0
    %3264 = vmatprep.subr.mxu0 0.0
    %3265 = vmatpush2.msra.mxu0 0.0
    %3266 = vmatprep.subr.mxu0 0.0
    %3267 = vmatpush2.msra.mxu0 0.0
    %3268 = vmatprep.subr.mxu0 0.0
    %3269 = vmatpush2.msra.mxu0 0.0
    %3270 = vmatprep.subr.mxu0 0.0
    %3271 = vmatpush2.msra.mxu0 0.0
    %3272 = vmatprep.mubr.f32.mxu0 0.0
    %3273 = vmatmul.mubr.f32.gmra.mxu0 %v2966
    %v3274 = vpop.f32.mrf.mxu0
    %v3275 = vadd.f32 %v3205, %v3274
    %v3276 = vpop.f32.mrf.mxu0
    %3277 = vdwg.mxu0
    %v3278 = vadd.f32 %v3275, %v156
    %v3279 = vxor.u32 %v3278, 2147483648
    %v3280 = vmul.f32 %v3279, 1.442695
    %v3281 = vpow.pop %v3280
    %v3282 = vadd.f32 %v3281, 1.0
    %v3283 = vrcp.pop %v3282
    %v3284 = vmul.f32 1.0, %v3283
    %v3285 = vtanh.pop %v3278
    %v3286 = vmul.f32 %v3284, %v2849
    %3288 = vrot.lane.b32.xlu0 %v3285, 64
    %v3289 = vpop.permute.xlu0 %3288
    %v3291 = vmul.f32 %v3284, %v3289
    %3293 = vrot.lane.b32.xlu0 %v3291, 32
    %v3294 = vpop.permute.xlu0 %3293
    %v3296 = vadd.f32 %v3286, %v3294
    %v3297 = vtanh.pop %v3296
    %3299 = vrot.lane.b32.xlu0 %v3297, 64
    %v3300 = vpop.permute.xlu0 %3299
    %v3302 = vmul.f32 %v3284, %v3300
    %3304 = vrot.lane.b32.xlu0 %v3132, 32
    %v3305 = vpop.permute.xlu0 %3304
    %v3306 = vsel %vm238, %v3305, 0
    %3308 = vmatprep.subr.mxu0 0.0
    %3309 = vmatpush1.msra.mxu0 0.0
    %3310 = vmatprep.subr.mxu0 0.0
    %3311 = vmatpush1.msra.mxu0 0.0
    %3312 = vmatprep.subr.mxu0 0.0
    %3313 = vmatpush1.msra.mxu0 0.0
    %3314 = vmatprep.subr.mxu0 0.0
    %3315 = vmatpush1.msra.mxu0 0.0
    %3316 = vmatprep.subr.mxu0 0.0
    %3317 = vmatpush1.msra.mxu0 0.0
    %3318 = vmatprep.subr.mxu0 0.0
    %3319 = vmatpush1.msra.mxu0 0.0
    %3320 = vmatprep.subr.mxu0 0.0
    %3321 = vmatpush1.msra.mxu0 0.0
    %3322 = vmatprep.subr.mxu0 0.0
    %3323 = vmatpush1.msra.mxu0 0.0
    %3324 = vmatprep.subr.mxu0 0.0
    %3325 = vmatpush1.msra.mxu0 0.0
    %3326 = vmatprep.subr.mxu0 0.0
    %3327 = vmatpush1.msra.mxu0 0.0
    %3328 = vmatprep.subr.mxu0 0.0
    %3329 = vmatpush1.msra.mxu0 0.0
    %3330 = vmatprep.subr.mxu0 0.0
    %3331 = vmatpush1.msra.mxu0 0.0
    %3332 = vmatprep.subr.mxu0 0.0
    %3333 = vmatpush1.msra.mxu0 %v149
    %3334 = vmatprep.subr.mxu0 0.0
    %3335 = vmatpush1.msra.mxu0 %v148
    %3336 = vmatprep.subr.mxu0 0.0
    %3337 = vmatpush1.msra.mxu0 %v147
    %3338 = vmatprep.subr.mxu0 0.0
    %3339 = vmatpush1.msra.mxu0 %v146
    %3340 = vmatprep.subr.mxu0 0.0
    %3341 = vmatpush2.msra.mxu0 0.0
    %3342 = vmatprep.subr.mxu0 0.0
    %3343 = vmatpush2.msra.mxu0 0.0
    %3344 = vmatprep.subr.mxu0 0.0
    %3345 = vmatpush2.msra.mxu0 0.0
    %3346 = vmatprep.subr.mxu0 0.0
    %3347 = vmatpush2.msra.mxu0 0.0
    %3348 = vmatprep.subr.mxu0 0.0
    %3349 = vmatpush2.msra.mxu0 0.0
    %3350 = vmatprep.subr.mxu0 0.0
    %3351 = vmatpush2.msra.mxu0 0.0
    %3352 = vmatprep.subr.mxu0 0.0
    %3353 = vmatpush2.msra.mxu0 0.0
    %3354 = vmatprep.subr.mxu0 0.0
    %3355 = vmatpush2.msra.mxu0 0.0
    %3356 = vmatprep.subr.mxu0 0.0
    %3357 = vmatpush2.msra.mxu0 0.0
    %3358 = vmatprep.subr.mxu0 0.0
    %3359 = vmatpush2.msra.mxu0 0.0
    %3360 = vmatprep.subr.mxu0 0.0
    %3361 = vmatpush2.msra.mxu0 0.0
    %3362 = vmatprep.subr.mxu0 0.0
    %3363 = vmatpush2.msra.mxu0 0.0
    %3364 = vmatprep.subr.mxu0 0.0
    %3365 = vmatpush2.msra.mxu0 0.0
    %3366 = vmatprep.subr.mxu0 0.0
    %3367 = vmatpush2.msra.mxu0 0.0
    %3368 = vmatprep.subr.mxu0 0.0
    %3369 = vmatpush2.msra.mxu0 0.0
    %3370 = vmatprep.subr.mxu0 0.0
    %3371 = vmatpush2.msra.mxu0 0.0
    %3372 = vmatprep.mubr.f32.mxu0 0.0
    %3373 = vmatmul.mubr.f32.gmra.mxu0 %v3306
    %v3374 = vpop.f32.mrf.mxu0
    %v3375 = vadd.f32 0.0, %v3374
    %v3376 = vpop.f32.mrf.mxu0
    %3377 = vdwg.mxu0
    %v3379 = vrot.slane %v2962, 7
    %3380 = vrot.lane.b32.xlu0 %v3379, 32
    %v3381 = vpop.permute.xlu0 %3380
    %v3382 = vsel %vm238, %v3381, 0
    %3384 = vmatprep.subr.mxu0 0.0
    %3385 = vmatpush1.msra.mxu0 0.0
    %3386 = vmatprep.subr.mxu0 0.0
    %3387 = vmatpush1.msra.mxu0 0.0
    %3388 = vmatprep.subr.mxu0 0.0
    %3389 = vmatpush1.msra.mxu0 0.0
    %3390 = vmatprep.subr.mxu0 0.0
    %3391 = vmatpush1.msra.mxu0 0.0
    %3392 = vmatprep.subr.mxu0 0.0
    %3393 = vmatpush1.msra.mxu0 0.0
    %3394 = vmatprep.subr.mxu0 0.0
    %3395 = vmatpush1.msra.mxu0 0.0
    %3396 = vmatprep.subr.mxu0 0.0
    %3397 = vmatpush1.msra.mxu0 0.0
    %3398 = vmatprep.subr.mxu0 0.0
    %3399 = vmatpush1.msra.mxu0 0.0
    %3400 = vmatprep.subr.mxu0 0.0
    %3401 = vmatpush1.msra.mxu0 0.0
    %3402 = vmatprep.subr.mxu0 0.0
    %3403 = vmatpush1.msra.mxu0 0.0
    %3404 = vmatprep.subr.mxu0 0.0
    %3405 = vmatpush1.msra.mxu0 0.0
    %3406 = vmatprep.subr.mxu0 0.0
    %3407 = vmatpush1.msra.mxu0 0.0
    %3408 = vmatprep.subr.mxu0 0.0
    %3409 = vmatpush1.msra.mxu0 %v137
    %3410 = vmatprep.subr.mxu0 0.0
    %3411 = vmatpush1.msra.mxu0 %v136
    %3412 = vmatprep.subr.mxu0 0.0
    %3413 = vmatpush1.msra.mxu0 %v135
    %3414 = vmatprep.subr.mxu0 0.0
    %3415 = vmatpush1.msra.mxu0 %v134
    %3416 = vmatprep.subr.mxu0 0.0
    %3417 = vmatpush2.msra.mxu0 0.0
    %3418 = vmatprep.subr.mxu0 0.0
    %3419 = vmatpush2.msra.mxu0 0.0
    %3420 = vmatprep.subr.mxu0 0.0
    %3421 = vmatpush2.msra.mxu0 0.0
    %3422 = vmatprep.subr.mxu0 0.0
    %3423 = vmatpush2.msra.mxu0 0.0
    %3424 = vmatprep.subr.mxu0 0.0
    %3425 = vmatpush2.msra.mxu0 0.0
    %3426 = vmatprep.subr.mxu0 0.0
    %3427 = vmatpush2.msra.mxu0 0.0
    %3428 = vmatprep.subr.mxu0 0.0
    %3429 = vmatpush2.msra.mxu0 0.0
    %3430 = vmatprep.subr.mxu0 0.0
    %3431 = vmatpush2.msra.mxu0 0.0
    %3432 = vmatprep.subr.mxu0 0.0
    %3433 = vmatpush2.msra.mxu0 0.0
    %3434 = vmatprep.subr.mxu0 0.0
    %3435 = vmatpush2.msra.mxu0 0.0
    %3436 = vmatprep.subr.mxu0 0.0
    %3437 = vmatpush2.msra.mxu0 0.0
    %3438 = vmatprep.subr.mxu0 0.0
    %3439 = vmatpush2.msra.mxu0 0.0
    %3440 = vmatprep.subr.mxu0 0.0
    %3441 = vmatpush2.msra.mxu0 0.0
    %3442 = vmatprep.subr.mxu0 0.0
    %3443 = vmatpush2.msra.mxu0 0.0
    %3444 = vmatprep.subr.mxu0 0.0
    %3445 = vmatpush2.msra.mxu0 0.0
    %3446 = vmatprep.subr.mxu0 0.0
    %3447 = vmatpush2.msra.mxu0 0.0
    %3448 = vmatprep.mubr.f32.mxu0 0.0
    %3449 = vmatmul.mubr.f32.gmra.mxu0 %v3382
    %v3450 = vpop.f32.mrf.mxu0
    %v3451 = vadd.f32 %v3375, %v3450
    %v3452 = vpop.f32.mrf.mxu0
    %3453 = vdwg.mxu0
    %v3454 = vadd.f32 %v3451, %v155
    %v3455 = vxor.u32 %v3454, 2147483648
    %v3456 = vmul.f32 %v3455, 1.442695
    %v3457 = vpow.pop %v3456
    %v3458 = vadd.f32 %v3457, 1.0
    %v3459 = vrcp.pop %v3458
    %v3460 = vmul.f32 1.0, %v3459
    %v3461 = vtanh.pop %v3454
    %v3462 = vmul.f32 %v3460, %v3126
    %3464 = vrot.lane.b32.xlu0 %v3461, 64
    %v3465 = vpop.permute.xlu0 %3464
    %v3467 = vmul.f32 %v3460, %v3465
    %3469 = vrot.lane.b32.xlu0 %v3467, 32
    %v3470 = vpop.permute.xlu0 %3469
    %v3472 = vadd.f32 %v3462, %v3470
    %v3473 = vtanh.pop %v3472
    %3475 = vrot.lane.b32.xlu0 %v3473, 64
    %v3476 = vpop.permute.xlu0 %3475
    %v3478 = vmul.f32 %v3460, %v3476
    %3480 = vrot.lane.b32.xlu0 %v3302, 32
    %v3481 = vpop.permute.xlu0 %3480
    %v3482 = vsel %vm238, %v3481, 0
    %3484 = vmatprep.subr.mxu0 0.0
    %3485 = vmatpush1.msra.mxu0 0.0
    %3486 = vmatprep.subr.mxu0 0.0
    %3487 = vmatpush1.msra.mxu0 0.0
    %3488 = vmatprep.subr.mxu0 0.0
    %3489 = vmatpush1.msra.mxu0 0.0
    %3490 = vmatprep.subr.mxu0 0.0
    %3491 = vmatpush1.msra.mxu0 0.0
    %3492 = vmatprep.subr.mxu0 0.0
    %3493 = vmatpush1.msra.mxu0 0.0
    %3494 = vmatprep.subr.mxu0 0.0
    %3495 = vmatpush1.msra.mxu0 0.0
    %3496 = vmatprep.subr.mxu0 0.0
    %3497 = vmatpush1.msra.mxu0 0.0
    %3498 = vmatprep.subr.mxu0 0.0
    %3499 = vmatpush1.msra.mxu0 0.0
    %3500 = vmatprep.subr.mxu0 0.0
    %3501 = vmatpush1.msra.mxu0 0.0
    %3502 = vmatprep.subr.mxu0 0.0
    %3503 = vmatpush1.msra.mxu0 0.0
    %3504 = vmatprep.subr.mxu0 0.0
    %3505 = vmatpush1.msra.mxu0 0.0
    %3506 = vmatprep.subr.mxu0 0.0
    %3507 = vmatpush1.msra.mxu0 0.0
    %3508 = vmatprep.subr.mxu0 0.0
    %3509 = vmatpush1.msra.mxu0 %v153
    %3510 = vmatprep.subr.mxu0 0.0
    %3511 = vmatpush1.msra.mxu0 %v152
    %3512 = vmatprep.subr.mxu0 0.0
    %3513 = vmatpush1.msra.mxu0 %v151
    %3514 = vmatprep.subr.mxu0 0.0
    %3515 = vmatpush1.msra.mxu0 %v150
    %3516 = vmatprep.subr.mxu0 0.0
    %3517 = vmatpush2.msra.mxu0 0.0
    %3518 = vmatprep.subr.mxu0 0.0
    %3519 = vmatpush2.msra.mxu0 0.0
    %3520 = vmatprep.subr.mxu0 0.0
    %3521 = vmatpush2.msra.mxu0 0.0
    %3522 = vmatprep.subr.mxu0 0.0
    %3523 = vmatpush2.msra.mxu0 0.0
    %3524 = vmatprep.subr.mxu0 0.0
    %3525 = vmatpush2.msra.mxu0 0.0
    %3526 = vmatprep.subr.mxu0 0.0
    %3527 = vmatpush2.msra.mxu0 0.0
    %3528 = vmatprep.subr.mxu0 0.0
    %3529 = vmatpush2.msra.mxu0 0.0
    %3530 = vmatprep.subr.mxu0 0.0
    %3531 = vmatpush2.msra.mxu0 0.0
    %3532 = vmatprep.subr.mxu0 0.0
    %3533 = vmatpush2.msra.mxu0 0.0
    %3534 = vmatprep.subr.mxu0 0.0
    %3535 = vmatpush2.msra.mxu0 0.0
    %3536 = vmatprep.subr.mxu0 0.0
    %3537 = vmatpush2.msra.mxu0 0.0
    %3538 = vmatprep.subr.mxu0 0.0
    %3539 = vmatpush2.msra.mxu0 0.0
    %3540 = vmatprep.subr.mxu0 0.0
    %3541 = vmatpush2.msra.mxu0 0.0
    %3542 = vmatprep.subr.mxu0 0.0
    %3543 = vmatpush2.msra.mxu0 0.0
    %3544 = vmatprep.subr.mxu0 0.0
    %3545 = vmatpush2.msra.mxu0 0.0
    %3546 = vmatprep.subr.mxu0 0.0
    %3547 = vmatpush2.msra.mxu0 0.0
    %3548 = vmatprep.mubr.f32.mxu0 0.0
    %3549 = vmatmul.mubr.f32.gmra.mxu0 %v3482
    %v3550 = vpop.f32.mrf.mxu0
    %v3551 = vadd.f32 0.0, %v3550
    %v3552 = vpop.f32.mrf.mxu0
    %3553 = vdwg.mxu0
    %3554 = vmatprep.subr.mxu0 0.0
    %3555 = vmatpush1.msra.mxu0 0.0
    %3556 = vmatprep.subr.mxu0 0.0
    %3557 = vmatpush1.msra.mxu0 0.0
    %3558 = vmatprep.subr.mxu0 0.0
    %3559 = vmatpush1.msra.mxu0 0.0
    %3560 = vmatprep.subr.mxu0 0.0
    %3561 = vmatpush1.msra.mxu0 0.0
    %3562 = vmatprep.subr.mxu0 0.0
    %3563 = vmatpush1.msra.mxu0 0.0
    %3564 = vmatprep.subr.mxu0 0.0
    %3565 = vmatpush1.msra.mxu0 0.0
    %3566 = vmatprep.subr.mxu0 0.0
    %3567 = vmatpush1.msra.mxu0 0.0
    %3568 = vmatprep.subr.mxu0 0.0
    %3569 = vmatpush1.msra.mxu0 0.0
    %3570 = vmatprep.subr.mxu0 0.0
    %3571 = vmatpush1.msra.mxu0 0.0
    %3572 = vmatprep.subr.mxu0 0.0
    %3573 = vmatpush1.msra.mxu0 0.0
    %3574 = vmatprep.subr.mxu0 0.0
    %3575 = vmatpush1.msra.mxu0 0.0
    %3576 = vmatprep.subr.mxu0 0.0
    %3577 = vmatpush1.msra.mxu0 0.0
    %3578 = vmatprep.subr.mxu0 0.0
    %3579 = vmatpush1.msra.mxu0 %v141
    %3580 = vmatprep.subr.mxu0 0.0
    %3581 = vmatpush1.msra.mxu0 %v140
    %3582 = vmatprep.subr.mxu0 0.0
    %3583 = vmatpush1.msra.mxu0 %v139
    %3584 = vmatprep.subr.mxu0 0.0
    %3585 = vmatpush1.msra.mxu0 %v138
    %3586 = vmatprep.subr.mxu0 0.0
    %3587 = vmatpush2.msra.mxu0 0.0
    %3588 = vmatprep.subr.mxu0 0.0
    %3589 = vmatpush2.msra.mxu0 0.0
    %3590 = vmatprep.subr.mxu0 0.0
    %3591 = vmatpush2.msra.mxu0 0.0
    %3592 = vmatprep.subr.mxu0 0.0
    %3593 = vmatpush2.msra.mxu0 0.0
    %3594 = vmatprep.subr.mxu0 0.0
    %3595 = vmatpush2.msra.mxu0 0.0
    %3596 = vmatprep.subr.mxu0 0.0
    %3597 = vmatpush2.msra.mxu0 0.0
    %3598 = vmatprep.subr.mxu0 0.0
    %3599 = vmatpush2.msra.mxu0 0.0
    %3600 = vmatprep.subr.mxu0 0.0
    %3601 = vmatpush2.msra.mxu0 0.0
    %3602 = vmatprep.subr.mxu0 0.0
    %3603 = vmatpush2.msra.mxu0 0.0
    %3604 = vmatprep.subr.mxu0 0.0
    %3605 = vmatpush2.msra.mxu0 0.0
    %3606 = vmatprep.subr.mxu0 0.0
    %3607 = vmatpush2.msra.mxu0 0.0
    %3608 = vmatprep.subr.mxu0 0.0
    %3609 = vmatpush2.msra.mxu0 0.0
    %3610 = vmatprep.subr.mxu0 0.0
    %3611 = vmatpush2.msra.mxu0 0.0
    %3612 = vmatprep.subr.mxu0 0.0
    %3613 = vmatpush2.msra.mxu0 0.0
    %3614 = vmatprep.subr.mxu0 0.0
    %3615 = vmatpush2.msra.mxu0 0.0
    %3616 = vmatprep.subr.mxu0 0.0
    %3617 = vmatpush2.msra.mxu0 0.0
    %3618 = vmatprep.mubr.f32.mxu0 0.0
    %3619 = vmatmul.mubr.f32.gmra.mxu0 %v3306
    %v3620 = vpop.f32.mrf.mxu0
    %v3621 = vadd.f32 %v3551, %v3620
    %v3622 = vpop.f32.mrf.mxu0
    %3623 = vdwg.mxu0
    %v3624 = vadd.f32 %v3621, %v156
    %v3625 = vxor.u32 %v3624, 2147483648
    %v3626 = vmul.f32 %v3625, 1.442695
    %v3627 = vpow.pop %v3626
    %v3628 = vadd.f32 %v3627, 1.0
    %v3629 = vrcp.pop %v3628
    %v3630 = vmul.f32 1.0, %v3629
    %v3631 = vtanh.pop %v3624
    %v3632 = vmul.f32 %v3630, %v3296
    %3634 = vrot.lane.b32.xlu0 %v3631, 64
    %v3635 = vpop.permute.xlu0 %3634
    %v3637 = vmul.f32 %v3630, %v3635
    %3639 = vrot.lane.b32.xlu0 %v3637, 32
    %v3640 = vpop.permute.xlu0 %3639
    %v3642 = vadd.f32 %v3632, %v3640
    %v3643 = vtanh.pop %v3642
    %3645 = vrot.lane.b32.xlu0 %v3643, 64
    %v3646 = vpop.permute.xlu0 %3645
    %v3648 = vmul.f32 %v3630, %v3646
    %3650 = vrot.lane.b32.xlu0 %v3648, 32
    %v3651 = vpop.permute.xlu0 %3650
    %v3652 = vsel %vm238, %v3651, 0
    %3654 = vmatprep.subr.mxu0 0.0
    %3655 = vmatpush1.msra.mxu0 0.0
    %3656 = vmatprep.subr.mxu0 0.0
    %3657 = vmatpush1.msra.mxu0 0.0
    %3658 = vmatprep.subr.mxu0 0.0
    %3659 = vmatpush1.msra.mxu0 0.0
    %3660 = vmatprep.subr.mxu0 0.0
    %3661 = vmatpush1.msra.mxu0 0.0
    %3662 = vmatprep.subr.mxu0 0.0
    %3663 = vmatpush1.msra.mxu0 0.0
    %3664 = vmatprep.subr.mxu0 0.0
    %3665 = vmatpush1.msra.mxu0 0.0
    %3666 = vmatprep.subr.mxu0 0.0
    %3667 = vmatpush1.msra.mxu0 0.0
    %3668 = vmatprep.subr.mxu0 0.0
    %3669 = vmatpush1.msra.mxu0 0.0
    %3670 = vmatprep.subr.mxu0 0.0
    %3671 = vmatpush1.msra.mxu0 0.0
    %3672 = vmatprep.subr.mxu0 0.0
    %3673 = vmatpush1.msra.mxu0 0.0
    %3674 = vmatprep.subr.mxu0 0.0
    %3675 = vmatpush1.msra.mxu0 0.0
    %3676 = vmatprep.subr.mxu0 0.0
    %3677 = vmatpush1.msra.mxu0 0.0
    %3678 = vmatprep.subr.mxu0 0.0
    %3679 = vmatpush1.msra.mxu0 %v153
    %3680 = vmatprep.subr.mxu0 0.0
    %3681 = vmatpush1.msra.mxu0 %v152
    %3682 = vmatprep.subr.mxu0 0.0
    %3683 = vmatpush1.msra.mxu0 %v151
    %3684 = vmatprep.subr.mxu0 0.0
    %3685 = vmatpush1.msra.mxu0 %v150
    %3686 = vmatprep.subr.mxu0 0.0
    %3687 = vmatpush2.msra.mxu0 0.0
    %3688 = vmatprep.subr.mxu0 0.0
    %3689 = vmatpush2.msra.mxu0 0.0
    %3690 = vmatprep.subr.mxu0 0.0
    %3691 = vmatpush2.msra.mxu0 0.0
    %3692 = vmatprep.subr.mxu0 0.0
    %3693 = vmatpush2.msra.mxu0 0.0
    %3694 = vmatprep.subr.mxu0 0.0
    %3695 = vmatpush2.msra.mxu0 0.0
    %3696 = vmatprep.subr.mxu0 0.0
    %3697 = vmatpush2.msra.mxu0 0.0
    %3698 = vmatprep.subr.mxu0 0.0
    %3699 = vmatpush2.msra.mxu0 0.0
    %3700 = vmatprep.subr.mxu0 0.0
    %3701 = vmatpush2.msra.mxu0 0.0
    %3702 = vmatprep.subr.mxu0 0.0
    %3703 = vmatpush2.msra.mxu0 0.0
    %3704 = vmatprep.subr.mxu0 0.0
    %3705 = vmatpush2.msra.mxu0 0.0
    %3706 = vmatprep.subr.mxu0 0.0
    %3707 = vmatpush2.msra.mxu0 0.0
    %3708 = vmatprep.subr.mxu0 0.0
    %3709 = vmatpush2.msra.mxu0 0.0
    %3710 = vmatprep.subr.mxu0 0.0
    %3711 = vmatpush2.msra.mxu0 0.0
    %3712 = vmatprep.subr.mxu0 0.0
    %3713 = vmatpush2.msra.mxu0 0.0
    %3714 = vmatprep.subr.mxu0 0.0
    %3715 = vmatpush2.msra.mxu0 0.0
    %3716 = vmatprep.subr.mxu0 0.0
    %3717 = vmatpush2.msra.mxu0 0.0
    %3718 = vmatprep.mubr.f32.mxu0 0.0
    %3719 = vmatmul.mubr.f32.gmra.mxu0 %v3652
    %v3720 = vpop.f32.mrf.mxu0
    %v3721 = vadd.f32 0.0, %v3720
    %v3722 = vpop.f32.mrf.mxu0
    %3723 = vdwg.mxu0
    %3725 = vrot.lane.b32.xlu0 %v3478, 32
    %v3726 = vpop.permute.xlu0 %3725
    %v3727 = vsel %vm238, %v3726, 0
    %3729 = vmatprep.subr.mxu0 0.0
    %3730 = vmatpush1.msra.mxu0 0.0
    %3731 = vmatprep.subr.mxu0 0.0
    %3732 = vmatpush1.msra.mxu0 0.0
    %3733 = vmatprep.subr.mxu0 0.0
    %3734 = vmatpush1.msra.mxu0 0.0
    %3735 = vmatprep.subr.mxu0 0.0
    %3736 = vmatpush1.msra.mxu0 0.0
    %3737 = vmatprep.subr.mxu0 0.0
    %3738 = vmatpush1.msra.mxu0 0.0
    %3739 = vmatprep.subr.mxu0 0.0
    %3740 = vmatpush1.msra.mxu0 0.0
    %3741 = vmatprep.subr.mxu0 0.0
    %3742 = vmatpush1.msra.mxu0 0.0
    %3743 = vmatprep.subr.mxu0 0.0
    %3744 = vmatpush1.msra.mxu0 0.0
    %3745 = vmatprep.subr.mxu0 0.0
    %3746 = vmatpush1.msra.mxu0 0.0
    %3747 = vmatprep.subr.mxu0 0.0
    %3748 = vmatpush1.msra.mxu0 0.0
    %3749 = vmatprep.subr.mxu0 0.0
    %3750 = vmatpush1.msra.mxu0 0.0
    %3751 = vmatprep.subr.mxu0 0.0
    %3752 = vmatpush1.msra.mxu0 0.0
    %3753 = vmatprep.subr.mxu0 0.0
    %3754 = vmatpush1.msra.mxu0 %v141
    %3755 = vmatprep.subr.mxu0 0.0
    %3756 = vmatpush1.msra.mxu0 %v140
    %3757 = vmatprep.subr.mxu0 0.0
    %3758 = vmatpush1.msra.mxu0 %v139
    %3759 = vmatprep.subr.mxu0 0.0
    %3760 = vmatpush1.msra.mxu0 %v138
    %3761 = vmatprep.subr.mxu0 0.0
    %3762 = vmatpush2.msra.mxu0 0.0
    %3763 = vmatprep.subr.mxu0 0.0
    %3764 = vmatpush2.msra.mxu0 0.0
    %3765 = vmatprep.subr.mxu0 0.0
    %3766 = vmatpush2.msra.mxu0 0.0
    %3767 = vmatprep.subr.mxu0 0.0
    %3768 = vmatpush2.msra.mxu0 0.0
    %3769 = vmatprep.subr.mxu0 0.0
    %3770 = vmatpush2.msra.mxu0 0.0
    %3771 = vmatprep.subr.mxu0 0.0
    %3772 = vmatpush2.msra.mxu0 0.0
    %3773 = vmatprep.subr.mxu0 0.0
    %3774 = vmatpush2.msra.mxu0 0.0
    %3775 = vmatprep.subr.mxu0 0.0
    %3776 = vmatpush2.msra.mxu0 0.0
    %3777 = vmatprep.subr.mxu0 0.0
    %3778 = vmatpush2.msra.mxu0 0.0
    %3779 = vmatprep.subr.mxu0 0.0
    %3780 = vmatpush2.msra.mxu0 0.0
    %3781 = vmatprep.subr.mxu0 0.0
    %3782 = vmatpush2.msra.mxu0 0.0
    %3783 = vmatprep.subr.mxu0 0.0
    %3784 = vmatpush2.msra.mxu0 0.0
    %3785 = vmatprep.subr.mxu0 0.0
    %3786 = vmatpush2.msra.mxu0 0.0
    %3787 = vmatprep.subr.mxu0 0.0
    %3788 = vmatpush2.msra.mxu0 0.0
    %3789 = vmatprep.subr.mxu0 0.0
    %3790 = vmatpush2.msra.mxu0 0.0
    %3791 = vmatprep.subr.mxu0 0.0
    %3792 = vmatpush2.msra.mxu0 0.0
    %3793 = vmatprep.mubr.f32.mxu0 0.0
    %3794 = vmatmul.mubr.f32.gmra.mxu0 %v3727
    %v3795 = vpop.f32.mrf.mxu0
    %v3796 = vadd.f32 %v3721, %v3795
    %v3797 = vpop.f32.mrf.mxu0
    %3798 = vdwg.mxu0
    %v3799 = vadd.f32 %v3796, %v156
    %v3800 = vxor.u32 %v3799, 2147483648
    %v3801 = vmul.f32 %v3800, 1.442695
    %v3802 = vpow.pop %v3801
    %v3803 = vadd.f32 %v3802, 1.0
    %v3804 = vrcp.pop %v3803
    %v3805 = vmul.f32 1.0, %v3804
    %v3806 = vtanh.pop %v3799
    %v3807 = vmul.f32 %v3805, %v3642
    %3809 = vrot.lane.b32.xlu0 %v3806, 64
    %v3810 = vpop.permute.xlu0 %3809
    %v3812 = vmul.f32 %v3805, %v3810
    %3814 = vrot.lane.b32.xlu0 %v3812, 32
    %v3815 = vpop.permute.xlu0 %3814
    %v3817 = vadd.f32 %v3807, %v3815
    %v3818 = vtanh.pop %v3817
    %3820 = vrot.lane.b32.xlu0 %v3818, 64
    %v3821 = vpop.permute.xlu0 %3820
    %v3823 = vmul.f32 %v3805, %v3821
    %v3825 = vrot.slane %v3478, 7
    %v3828 = vrot.slane %v3823, 6
    %vm3830 = vcmask 1040384
    %v3831 = vsel %vm3830, %v3379, %v3825
    %vm3832 = vcmask 1041408
    %v3833 = vsel %vm3832, %v3831, %v3828
    %3835 = vrot.lane.b32.xlu0 %v3833, 32
    %v3836 = vpop.permute.xlu0 %3835
    %vm3838 = vcmask 256000
    %3839 = vst.msk [vmem:[#allocation14] sm:$0x7] %vm3838, %v3836
    %v3841 = vrot.slane %v2956, 7
    %v3844 = vrot.slane %v3472, 7
    %v3847 = vrot.slane %v3817, 6
    %v3849 = vsel %vm3830, %v3841, %v3844
    %v3850 = vsel %vm3832, %v3849, %v3847
    %3852 = vrot.lane.b32.xlu0 %v3850, 96
    %v3853 = vpop.permute.xlu0 %3852
    %3855 = vst.msk [vmem:[#allocation16] sm:$0x7] %vm3838, %v3853
    %v3856 = vrot.slane %v1514, 7
    %v3858 = vrot.slane %v1961, 6
    %v3860 = vrot.slane %v2408, 5
    %v3862 = vrot.slane %v2855, 4
    %v3864 = vrot.slane %v3302, 3
    %v3866 = vrot.slane %v3648, 2
    %v3868 = vrot.slane %v3823, 1
    %v3870 = vsel %vm3830, %v1067, %v3856
    %v3871 = vsel %vm3832, %v3870, %v3858
    %vm3872 = vcmask 1042432
    %v3873 = vsel %vm3872, %v3871, %v3860
    %vm3874 = vcmask 1043456
    %v3875 = vsel %vm3874, %v3873, %v3862
    %vm3876 = vcmask 1044480
    %v3877 = vsel %vm3876, %v3875, %v3864
    %vm3878 = vcmask 1045504
    %v3879 = vsel %vm3878, %v3877, %v3866
    %vm3880 = vcmask 1046528
    %v3881 = vsel %vm3880, %v3879, %v3868
    %v3882 = vld [vmem:[%s12] sm:$0xff]
    %v3883 = vld [vmem:[%s12 + $0x8] sm:$0xff]
    %v3884 = vld [vmem:[%s12 + $0x10] sm:$0xff]
    %v3885 = vld [vmem:[%s12 + $0x18] sm:$0xff]
    %v3886 = vld [vmem:[%s13] sm:$0x1]
    %v3888 = vlaneseq
    %v3889 = vshrl.u32 %v3888, 7
    %v3890 = vsub.s32 0, %v3889
    %v3891 = vrot.slane %v3886, %v3890
    %3894 = vrot.lane.b32.xlu0 %v3881, 32
    %v3895 = vpop.permute.xlu0 %3894
    %v3896 = vsel %vm238, %v3895, 0
    %3898 = vmatprep.subr.mxu0 0.0
    %3899 = vmatpush1.msra.mxu0 0.0
    %3900 = vmatprep.subr.mxu0 0.0
    %3901 = vmatpush1.msra.mxu0 0.0
    %3902 = vmatprep.subr.mxu0 0.0
    %3903 = vmatpush1.msra.mxu0 0.0
    %3904 = vmatprep.subr.mxu0 0.0
    %3905 = vmatpush1.msra.mxu0 0.0
    %3906 = vmatprep.subr.mxu0 0.0
    %3907 = vmatpush1.msra.mxu0 0.0
    %3908 = vmatprep.subr.mxu0 0.0
    %3909 = vmatpush1.msra.mxu0 0.0
    %3910 = vmatprep.subr.mxu0 0.0
    %3911 = vmatpush1.msra.mxu0 0.0
    %3912 = vmatprep.subr.mxu0 0.0
    %3913 = vmatpush1.msra.mxu0 0.0
    %3914 = vmatprep.subr.mxu0 0.0
    %3915 = vmatpush1.msra.mxu0 0.0
    %3916 = vmatprep.subr.mxu0 0.0
    %3917 = vmatpush1.msra.mxu0 0.0
    %3918 = vmatprep.subr.mxu0 0.0
    %3919 = vmatpush1.msra.mxu0 0.0
    %3920 = vmatprep.subr.mxu0 0.0
    %3921 = vmatpush1.msra.mxu0 0.0
    %3922 = vmatprep.subr.mxu0 0.0
    %3923 = vmatpush1.msra.mxu0 %v3885
    %3924 = vmatprep.subr.mxu0 0.0
    %3925 = vmatpush1.msra.mxu0 %v3884
    %3926 = vmatprep.subr.mxu0 0.0
    %3927 = vmatpush1.msra.mxu0 %v3883
    %3928 = vmatprep.subr.mxu0 0.0
    %3929 = vmatpush1.msra.mxu0 %v3882
    %3930 = vmatprep.subr.mxu0 0.0
    %3931 = vmatpush2.msra.mxu0 0.0
    %3932 = vmatprep.subr.mxu0 0.0
    %3933 = vmatpush2.msra.mxu0 0.0
    %3934 = vmatprep.subr.mxu0 0.0
    %3935 = vmatpush2.msra.mxu0 0.0
    %3936 = vmatprep.subr.mxu0 0.0
    %3937 = vmatpush2.msra.mxu0 0.0
    %3938 = vmatprep.subr.mxu0 0.0
    %3939 = vmatpush2.msra.mxu0 0.0
    %3940 = vmatprep.subr.mxu0 0.0
    %3941 = vmatpush2.msra.mxu0 0.0
    %3942 = vmatprep.subr.mxu0 0.0
    %3943 = vmatpush2.msra.mxu0 0.0
    %3944 = vmatprep.subr.mxu0 0.0
    %3945 = vmatpush2.msra.mxu0 0.0
    %3946 = vmatprep.subr.mxu0 0.0
    %3947 = vmatpush2.msra.mxu0 0.0
    %3948 = vmatprep.subr.mxu0 0.0
    %3949 = vmatpush2.msra.mxu0 0.0
    %3950 = vmatprep.subr.mxu0 0.0
    %3951 = vmatpush2.msra.mxu0 0.0
    %3952 = vmatprep.subr.mxu0 0.0
    %3953 = vmatpush2.msra.mxu0 0.0
    %3954 = vmatprep.subr.mxu0 0.0
    %3955 = vmatpush2.msra.mxu0 0.0
    %3956 = vmatprep.subr.mxu0 0.0
    %3957 = vmatpush2.msra.mxu0 0.0
    %3958 = vmatprep.subr.mxu0 0.0
    %3959 = vmatpush2.msra.mxu0 0.0
    %3960 = vmatprep.subr.mxu0 0.0
    %3961 = vmatpush2.msra.mxu0 0.0
    %3962 = vmatprep.mubr.f32.mxu0 0.0
    %3963 = vmatmul.mubr.f32.gmra.mxu0 %v3896
    %v3964 = vpop.f32.mrf.mxu0
    %v3965 = vadd.f32 %v3891, %v3964
    %v3966 = vpop.f32.mrf.mxu0
    %3967 = vdwg.mxu0
    %vm3968 = vcmask 97280
    %v3969 = vsel %vm3968, %v3965, -inf
    %3970 = vmax.xlane.f32.xlu0 %v3969
    %v3971 = vpop.xlane.xlu0 %3970
    %v3972 = vsub.f32 %v3965, %v3971
    %v3973 = vmul.f32 %v3972, 1.442695
    %v3974 = vpow.pop %v3973
    %v3975 = vsel %vm3968, %v3974, 0.0
    %3976 = vadd.xlane.f32.xlu0 %v3975
    %v3977 = vpop.xlane.xlu0 %3976
    %v3978 = vlog2.pop %v3977
    %v3979 = vmul.f32 %v3978, 0.6931472
    %v3980 = vsub.f32 %v3972, %v3979
    %3981 = vst.msk [vmem:[#allocation13] sm:$0xff] %vm3968, %v3980
    // Predicated region
    $region82: #{lstm_forward.1} parent=1 // pred_check
      _
    $region83: #{lstm_forward.1} parent=1 // pred_check_branch
      %3983 = sbr.rel (0) target = $region85
    $region84: #{lstm_forward.1} parent=1 // pred_region
      %s3985 = ssub.s32 128, 128
      %3986 = vsyncadd [#allocation4], %s3985
      %s3988 = sshll.u32 [#allocation13], 4
      %s3989 = int_to_ptr.vmem [resolvable:$true] %s3988
      %3991 = dma.vmem_to_hbm [thread:$0]  %s3989, 128, %s14, [#allocation4]
    $region85: #{lstm_forward.1} parent=1 // pred_fallthru
      _
    // Predicated region
    $region86: #{lstm_forward.1} parent=1 // pred_check
      _
    $region87: #{lstm_forward.1} parent=1 // pred_check_branch
      %3993 = sbr.rel (0) target = $region89
    $region88: #{lstm_forward.1} parent=1 // pred_region
      %s3995 = ssub.s32 64, 64
      %3996 = vsyncadd [#allocation15], %s3995
      %s3998 = sshll.u32 [#allocation14], 4
      %s3999 = int_to_ptr.vmem [resolvable:$true] %s3998
      %4001 = dma.vmem_to_hbm [thread:$0]  %s3999, 64, %s15, [#allocation15]
    $region89: #{lstm_forward.1} parent=1 // pred_fallthru
      _
    // Predicated region
    $region90: #{lstm_forward.1} parent=1 // pred_check
      _
    $region91: #{lstm_forward.1} parent=1 // pred_check_branch
      %4003 = sbr.rel (0) target = $region93
    $region92: #{lstm_forward.1} parent=1 // pred_region
      %s4005 = ssub.s32 64, 64
      %4006 = vsyncadd [#allocation15], %s4005
      %s4008 = sshll.u32 [#allocation16], 4
      %s4009 = int_to_ptr.vmem [resolvable:$true] %s4008
      %4011 = dma.vmem_to_hbm [thread:$0]  %s4009, 64, %s16, [#allocation15]
    $region93: #{lstm_forward.1} parent=1 // pred_fallthru
      _
    // Predicated region
    $region94: #{lstm_forward.1} parent=1 // pred_check
      _
    $region95: #{lstm_forward.1} parent=1 // pred_check_branch
      %4013 = sbr.rel (0) target = $region97
    $region96: #{lstm_forward.1} parent=1 // pred_region
      %4014 = dma.done [#allocation4], 128
    $region97: #{lstm_forward.1} parent=1 // pred_fallthru
      _
    // Predicated region
    $region98: #{lstm_forward.1} parent=1 // pred_check
      _
    $region99: #{lstm_forward.1} parent=1 // pred_check_branch
      %4016 = sbr.rel (0) target = $region101
    $region100: #{lstm_forward.1} parent=1 // pred_region
      %4017 = dma.done [#allocation15], 64
    $region101: #{lstm_forward.1} parent=1 // pred_fallthru
      _
    // Predicated region
    $region102: #{lstm_forward.1} parent=1 // pred_check
      _
    $region103: #{lstm_forward.1} parent=1 // pred_check_branch
      %4019 = sbr.rel (0) target = $region105
    $region104: #{lstm_forward.1} parent=1 // pred_region
      %4020 = dma.done [#allocation15], 64
    $region105: #{lstm_forward.1} parent=1 // pred_fallthru
      _
    %4021 = vsyncpa [#allocation3], 1
    %4022 = vsyncpa [#allocation6], 1
    %4023 = vsyncpa [#allocation9], 1
    %4024 = vsyncpa [#allocation12], 1
    %4025 = vsyncpa [#allocation4], 1
    %4026 = vsyncpa [#allocation15], 1

</llo_original>
